<compile_context>
chip_gen: v7x
topology: tpu7x:2x2x1
jax: 0.10.0
libtpu: 0.0.40
codegen_flags: <defaults>
</compile_context>

<pallas_src>
from functools import partial

import jax
import jax.numpy as jnp
import numpy as np
from jax.experimental import pallas as pl
from jax.experimental.pallas import tpu as pltpu


# --------------------------------------------------------------------------------------
# Kernel
# --------------------------------------------------------------------------------------
def make_lstm_cnn_kernel(seq_len, batch, vector_size, lstm_hidden, conv_heights,
                         num_filters, hidden_features, n_out=3):
    """Builds the Pallas kernel body with all static sizes closed over."""
    H, B, W, hid, F = seq_len, batch, vector_size, lstm_hidden, num_filters
    G2 = 8 * hid                                   # packed fwd+bwd gate width
    KF = sum(k * F for k in conv_heights)
    n_conv = len(conv_heights)

    # static column offsets inside the coalesced weight slab
    c_wih = 0
    c_whh = c_wih + G2
    c_wcv = c_whh + G2
    c_whd = c_wcv + KF
    c_wot = c_whd + hidden_features
    c_end = c_wot + n_out
    # static offsets inside the coalesced bias slab
    b_gate = 0
    b_conv = b_gate + G2
    b_hid = b_conv + n_conv * F
    b_out = b_hid + hidden_features
    b_end = b_out + n_out

    def tree(op, blocks):
        # balanced reduction tree over a list of equal-shaped values
        while len(blocks) > 1:
            nxt = [op(blocks[i], blocks[i + 1]) for i in range(0, len(blocks) - 1, 2)]
            if len(blocks) % 2:
                nxt.append(blocks[-1])
            blocks = nxt
        return blocks[0]

    def kernel(x_ref, wslab_ref, bslab_ref, out_ref):
        wslab = wslab_ref[...]                                  # (R, c_end)
        bslab = bslab_ref[...]                                  # (1, b_end)
        wih = wslab[0:2 * W, c_wih:c_whh]                       # (2W, 8*hid)  block-diag
        whh = wslab[0:2 * hid, c_whh:c_wcv]                     # (2*hid, 8*hid) block-diag
        wconv = wslab[0:2 * hid, c_wcv:c_whd]                   # (2*hid, sum_k k*F)
        whid = wslab[0:n_conv * F, c_whd:c_wot]                 # (n_conv*F, hidden)
        wout = wslab[0:hidden_features, c_wot:c_end]            # (hidden, 3)
        b_all = bslab[:, b_gate:b_conv]                         # (1, 8*hid)
        bconv = bslab[:, b_conv:b_hid]
        bhid = bslab[:, b_hid:b_out]
        bout = bslab[:, b_out:b_end]

        # ---- hoisted input projection for BOTH directions (bwd already time-reversed
        #      in x), biases folded in: one MXU matmul -------------------------------
        xproj = jnp.dot(x_ref[...], wih,
                        preferred_element_type=jnp.float32) + b_all      # (H*B, 8*hid)

        # ---- fused bidirectional recurrence: one matmul, one sigmoid, one tanh/step --
        h = jnp.zeros((B, 2 * hid), jnp.float32)                # [h_f | h_b]
        c = jnp.zeros((B, 2 * hid), jnp.float32)                # [c_f | c_b]
        hs_f, hs_b = [], []
        for s in range(H):
            gates = xproj[s * B:(s + 1) * B, :] + jnp.dot(
                h, whh, preferred_element_type=jnp.float32)     # (B, 8*hid)
            sg = jax.nn.sigmoid(gates)                          # ONE EUP op, both dirs
            i_g = sg[:, 0:2 * hid]
            f_g = sg[:, 2 * hid:4 * hid]
            g_g = 2.0 * sg[:, 4 * hid:6 * hid] - 1.0            # VPU fixup -> tanh(g)
            o_g = sg[:, 6 * hid:8 * hid]
            c = f_g * c + i_g * g_g
            h = o_g * jnp.tanh(c)                               # the only other EUP op
            hs_f.append(h[:, 0:hid])                            # fwd output at time s
            hs_b.append(h[:, hid:2 * hid])                      # bwd output at time H-1-s

        # assemble the time-major bidirectional sequence as VALUES (no scratch stores);
        # row t*B+b = concat(h_fwd_t[b], h_bwd_t[b])  (matches PyTorch output order)
        hseq = jnp.concatenate(
            [jnp.concatenate(hs_f, axis=0),
             jnp.concatenate(hs_b[::-1], axis=0)], axis=1)      # (H*B, 2*hid)

        # ---- entire conv stage as ONE matmul + VPU shift-add / balanced max tree ----
        y = jnp.dot(hseq, wconv, preferred_element_type=jnp.float32)     # (H*B, KF)

        maxz = []
        off = 0
        for k in conv_heights:
            L = H - k + 1
            z = tree(jnp.add,
                     [y[kh * B:(kh + L) * B, off + kh * F: off + (kh + 1) * F]
                      for kh in range(k)])                      # (L*B, F)
            maxz.append(tree(jnp.maximum,
                             [z[t * B:(t + 1) * B, :] for t in range(L)]))  # (B, F)
            off += k * F

        # bias is time-constant and ReLU monotone: max_t ReLU(z_t+b) == ReLU(max_t z_t+b)
        pooled = jnp.maximum(jnp.concatenate(maxz, axis=1) + bconv, 0.0)  # (B, n_conv*F)

        hidden = jnp.maximum(
            jnp.dot(pooled, whid, preferred_element_type=jnp.float32) + bhid, 0.0)
        out_ref[...] = (jnp.dot(hidden, wout,
                                preferred_element_type=jnp.float32) + bout)   # (B, 3)

    return kernel


# --------------------------------------------------------------------------------------
# Cold-path parameter packing (call once; keeps the per-call wrapper minimal)
# --------------------------------------------------------------------------------------
def pack_lstm_cnn_params(params, *, lstm_hidden=4, max_height=5, num_filters=2):
    hid, F = lstm_hidden, num_filters
    conv_heights = tuple(range(2, max_height + 1))
    f32 = lambda a: jnp.asarray(a, jnp.float32)

    W = params['w_ih_f'].shape[1]

    def scale_g_cols(w):     # tanh-via-sigmoid trick: scale g-gate columns x2
        return w.at[:, 2 * hid:3 * hid].multiply(2.0)

    wih_f = scale_g_cols(f32(params['w_ih_f']).T)               # (W, 4*hid)
    wih_b = scale_g_cols(f32(params['w_ih_b']).T)
    whh_f = scale_g_cols(f32(params['w_hh_f']).T)               # (hid, 4*hid)
    whh_b = scale_g_cols(f32(params['w_hh_b']).T)
    b_f = (f32(params['b_ih_f']) + f32(params['b_hh_f'])).at[2 * hid:3 * hid].multiply(2.0)
    b_b = (f32(params['b_ih_b']) + f32(params['b_hh_b'])).at[2 * hid:3 * hid].multiply(2.0)

    # pack both directions with gate columns interleaved by group:
    # [i_f i_b | f_f f_b | g_f g_b | o_f o_b]; wih / whh are block-diagonal so the
    # forward gates only see x_fwd / h_f and the backward gates only x_bwd / h_b.
    wih_all = jnp.zeros((2 * W, 8 * hid), jnp.float32)
    whh_bd = jnp.zeros((2 * hid, 8 * hid), jnp.float32)
    b_all = jnp.zeros((8 * hid,), jnp.float32)
    for gi in range(4):
        cf = slice(2 * gi * hid, 2 * gi * hid + hid)
        cb = slice(2 * gi * hid + hid, 2 * (gi + 1) * hid)
        gs = slice(gi * hid, (gi + 1) * hid)
        wih_all = wih_all.at[0:W, cf].set(wih_f[:, gs])
        wih_all = wih_all.at[W:2 * W, cb].set(wih_b[:, gs])
        whh_bd = whh_bd.at[0:hid, cf].set(whh_f[:, gs])
        whh_bd = whh_bd.at[hid:2 * hid, cb].set(whh_b[:, gs])
        b_all = b_all.at[cf].set(b_f[gs])
        b_all = b_all.at[cb].set(b_b[gs])

    # all conv kernels concatenated into one (2*hid, sum_k k*F) weight
    blocks = []
    for i, k in enumerate(conv_heights):
        wc = f32(params['conv_w'][i])                           # (F, 1, k, 2*hid)
        blocks.append(jnp.concatenate([wc[:, 0, kh, :].T for kh in range(k)], axis=1))
    wconv = jnp.concatenate(blocks, axis=1)                     # (2*hid, sum_k k*F)
    bconv = jnp.concatenate([f32(b) for b in params['conv_b']])

    whid = f32(params['w_hidden']).T                            # (n_conv*F, hidden)
    bhid = f32(params['b_hidden'])
    wout = f32(params['w_out']).T                               # (hidden, 3)
    bout = f32(params['b_out'])

    # coalesce: ONE weight slab (rows padded to a common height) + ONE bias slab
    mats = [wih_all, whh_bd, wconv, whid, wout]
    R = max(m.shape[0] for m in mats)
    wslab = jnp.concatenate(
        [jnp.pad(m, ((0, R - m.shape[0]), (0, 0))) for m in mats], axis=1)
    bslab = jnp.concatenate([b_all, bconv, bhid, bout]).reshape(1, -1)
    return wslab, bslab


# --------------------------------------------------------------------------------------
# Hot-path wrapper: minimal x re-layout + one pallas_call (3 VMEM inputs total)
# --------------------------------------------------------------------------------------
@partial(jax.jit,
         static_argnames=("lstm_hidden", "max_height", "num_filters", "hidden_features"))
def lstm_cnn_pallas(x, wslab, bslab, *, lstm_hidden=4, max_height=5, num_filters=2,
                    hidden_features=4):
    B = x.shape[0]
    H, W = x.shape[-2], x.shape[-1]
    conv_heights = tuple(range(2, max_height + 1))

    # time-major x with the backward direction's time reversal pre-applied:
    # row s*B+b = [x[b, s, :] | x[b, H-1-s, :]]  -> input projection is one matmul and
    # the per-step gate fetch is one contiguous row slice.
    xs = jnp.asarray(x, jnp.float32).reshape(B, H, W)
    x_fwd = jnp.transpose(xs, (1, 0, 2)).reshape(H * B, W)
    x_bwd = jnp.transpose(xs[:, ::-1, :], (1, 0, 2)).reshape(H * B, W)
    x_both = jnp.concatenate([x_fwd, x_bwd], axis=1)            # (H*B, 2*W)

    kernel = make_lstm_cnn_kernel(H, B, W, lstm_hidden, conv_heights,
                                  num_filters, hidden_features)

    return pl.pallas_call(
        kernel,
        out_shape=jax.ShapeDtypeStruct((B, 3), jnp.float32),
        in_specs=[pl.BlockSpec(memory_space=pltpu.MemorySpace.VMEM)] * 3,
        out_specs=pl.BlockSpec(memory_space=pltpu.MemorySpace.VMEM),
    )(x_both, wslab, bslab)


# --------------------------------------------------------------------------------------
# Pure-JAX reference matching the PyTorch LSTM_CNN forward pass
# --------------------------------------------------------------------------------------
def lstm_cnn_reference(x, params, *, lstm_hidden=4, max_height=5, num_filters=2):
    B = x.shape[0]
    H, W = x.shape[-2], x.shape[-1]
    hid = lstm_hidden
    conv_heights = tuple(range(2, max_height + 1))
    xs = jnp.asarray(x, jnp.float32).reshape(B, H, W)

    def direction(w_ih, w_hh, b_ih, b_hh, reverse):
        h = jnp.zeros((B, hid), jnp.float32)
        c = jnp.zeros((B, hid), jnp.float32)
        outs = [None] * H
        order = range(H - 1, -1, -1) if reverse else range(H)
        for t in order:
            g = xs[:, t, :] @ w_ih.T + b_ih + h @ w_hh.T + b_hh
            i = jax.nn.sigmoid(g[:, 0 * hid:1 * hid])
            f = jax.nn.sigmoid(g[:, 1 * hid:2 * hid])
            gg = jnp.tanh(g[:, 2 * hid:3 * hid])
            o = jax.nn.sigmoid(g[:, 3 * hid:4 * hid])
            c = f * c + i * gg
            h = o * jnp.tanh(c)
            outs[t] = h
        return jnp.stack(outs, axis=1)                          # (B, H, hid)

    fwd = direction(params['w_ih_f'], params['w_hh_f'],
                    params['b_ih_f'], params['b_hh_f'], False)
    bwd = direction(params['w_ih_b'], params['w_hh_b'],
                    params['b_ih_b'], params['b_hh_b'], True)
    seq = jnp.concatenate([fwd, bwd], axis=-1)                  # (B, H, 2*hid)

    feats = []
    for i, k in enumerate(conv_heights):
        wc = params['conv_w'][i][:, 0]                          # (F, k, 2*hid)
        bc = params['conv_b'][i]
        L = H - k + 1
        vals = jnp.stack(
            [jnp.einsum('bkd,fkd->bf', seq[:, t:t + k, :], wc) + bc for t in range(L)],
            axis=2)
        feats.append(jnp.max(jnp.maximum(vals, 0.0), axis=2))   # (B, F)
    feat = jnp.concatenate(feats, axis=1)
    hidden = jnp.maximum(feat @ params['w_hidden'].T + params['b_hidden'], 0.0)
    return hidden @ params['w_out'].T + params['b_out']


# --------------------------------------------------------------------------------------
if __name__ == "__main__":
    # Module defaults: vector_size=5, lstm_out=4, max_height_of_convolutions=5,
    # number_of_filters=2  ->  hidden_out_features = (5-1)*2/2 = 4, output = 3 classes.
    B, H = 2, 16
    vector_size, lstm_out = 5, 4
    max_height, num_filters = 5, 2
    hidden_features = int((max_height - 1) * num_filters / 2)   # 4
    D = 2 * lstm_out
    gate = 4 * lstm_out

    keys = iter(jax.random.split(jax.random.PRNGKey(0), 32))

    def u(shape, scale=0.2):
        return jax.random.uniform(next(keys), shape, jnp.float32, -scale, scale)

    params = dict(
        # bidirectional LSTM (PyTorch layout: weight_[ih|hh] = (4*hid, in)/(4*hid, hid))
        w_ih_f=u((gate, vector_size)), w_hh_f=u((gate, lstm_out)),
        b_ih_f=u((gate,)),             b_hh_f=u((gate,)),
        w_ih_b=u((gate, vector_size)), w_hh_b=u((gate, lstm_out)),
        b_ih_b=u((gate,)),             b_hh_b=u((gate,)),
        # Conv2d(1, F, kernel_size=(kh, 2*lstm_out)) for kh in 2..max_height
        conv_w=[u((num_filters, 1, kh, D)) for kh in range(2, max_height + 1)],
        conv_b=[u((num_filters,)) for _ in range(2, max_height + 1)],
        # fully connected layers
        w_hidden=u((hidden_features, (max_height - 1) * num_filters)),
        b_hidden=u((hidden_features,)),
        w_out=u((3, hidden_features)),
        b_out=u((3,)),
    )

    x = jax.random.normal(jax.random.PRNGKey(1), (B, 1, H, vector_size), jnp.float32)

    # cold path: pack parameters once
    wslab, bslab = pack_lstm_cnn_params(params, lstm_hidden=lstm_out,
                                        max_height=max_height, num_filters=num_filters)

    out = lstm_cnn_pallas(x, wslab, bslab, lstm_hidden=lstm_out, max_height=max_height,
                          num_filters=num_filters, hidden_features=hidden_features)
    out = jax.block_until_ready(out)
    assert out.shape == (B, 3) and out.dtype == jnp.float32

    ref = lstm_cnn_reference(x, params, lstm_hidden=lstm_out, max_height=max_height,
                             num_filters=num_filters)
    np.testing.assert_allclose(np.asarray(out), np.asarray(ref), atol=1e-4, rtol=1e-4)
    print("KERNEL_OK")
</pallas_src>

<mosaic_0001>
module attributes {stable_mosaic.version = 11 : i64} {
  func.func @kernel(%arg0: memref<32x10xf32, #tpu.memory_space<vmem>>, %arg1: memref<10x99xf32, #tpu.memory_space<vmem>>, %arg2: memref<1x47xf32, #tpu.memory_space<vmem>>, %arg3: memref<2x3xf32, #tpu.memory_space<vmem>>) attributes {dimension_semantics = [], scalar_prefetch = 0 : i64, scratch_operands = 0 : i64, tpu.core_type = #tpu.core_type<tc>} {
    %c0 = arith.constant 0 : index
    %c0_0 = arith.constant 0 : index
    %0 = vector.load %arg1[%c0, %c0_0] : memref<10x99xf32, #tpu.memory_space<vmem>>, vector<10x99xf32>
    %c0_1 = arith.constant 0 : index
    %c0_2 = arith.constant 0 : index
    %1 = vector.load %arg2[%c0_1, %c0_2] : memref<1x47xf32, #tpu.memory_space<vmem>>, vector<1x47xf32>
    %2 = vector.extract_strided_slice %0 {offsets = [0, 0], sizes = [10, 32], strides = [1, 1]} : vector<10x99xf32> to vector<10x32xf32>
    %3 = vector.extract_strided_slice %0 {offsets = [0, 32], sizes = [8, 32], strides = [1, 1]} : vector<10x99xf32> to vector<8x32xf32>
    %4 = vector.extract_strided_slice %0 {offsets = [0, 64], sizes = [8, 28], strides = [1, 1]} : vector<10x99xf32> to vector<8x28xf32>
    %5 = vector.extract_strided_slice %0 {offsets = [0, 92], sizes = [8, 4], strides = [1, 1]} : vector<10x99xf32> to vector<8x4xf32>
    %6 = vector.extract_strided_slice %0 {offsets = [0, 96], sizes = [4, 3], strides = [1, 1]} : vector<10x99xf32> to vector<4x3xf32>
    %7 = vector.extract_strided_slice %1 {offsets = [0, 0], sizes = [1, 32], strides = [1, 1]} : vector<1x47xf32> to vector<1x32xf32>
    %8 = vector.extract_strided_slice %1 {offsets = [0, 32], sizes = [1, 8], strides = [1, 1]} : vector<1x47xf32> to vector<1x8xf32>
    %9 = vector.extract_strided_slice %1 {offsets = [0, 40], sizes = [1, 4], strides = [1, 1]} : vector<1x47xf32> to vector<1x4xf32>
    %10 = vector.extract_strided_slice %1 {offsets = [0, 44], sizes = [1, 3], strides = [1, 1]} : vector<1x47xf32> to vector<1x3xf32>
    %c0_3 = arith.constant 0 : index
    %c0_4 = arith.constant 0 : index
    %11 = vector.load %arg0[%c0_3, %c0_4] : memref<32x10xf32, #tpu.memory_space<vmem>>, vector<32x10xf32>
    %cst = arith.constant dense<0.000000e+00> : vector<32x32xf32>
    %12 = tpu.matmul %11, %2, %cst {dimension_numbers = #tpu.dot_dimension_numbers<[1], [0], [0], [1], [0, 0, 1, 1], [], []>} : vector<32x10xf32>, vector<10x32xf32>, vector<32x32xf32> -> vector<32x32xf32>
    %13 = vector.broadcast %7 : vector<1x32xf32> to vector<32x32xf32>
    %14 = arith.addf %12, %13 : vector<32x32xf32>
    %cst_5 = arith.constant 0.000000e+00 : f32
    %15 = vector.broadcast %cst_5 : f32 to vector<2x8xf32>
    %cst_6 = arith.constant 0.000000e+00 : f32
    %16 = vector.broadcast %cst_6 : f32 to vector<2x8xf32>
    %17 = vector.extract_strided_slice %14 {offsets = [0, 0], sizes = [2, 32], strides = [1, 1]} : vector<32x32xf32> to vector<2x32xf32>
    %cst_7 = arith.constant dense<0.000000e+00> : vector<2x32xf32>
    %18 = tpu.matmul %15, %3, %cst_7 {dimension_numbers = #tpu.dot_dimension_numbers<[1], [0], [0], [1], [0, 0, 1, 1], [], []>} : vector<2x8xf32>, vector<8x32xf32>, vector<2x32xf32> -> vector<2x32xf32>
    %19 = arith.addf %17, %18 : vector<2x32xf32>
    %20 = arith.negf %19 : vector<2x32xf32>
    %21 = math.exp %20 : vector<2x32xf32>
    %cst_8 = arith.constant 1.000000e+00 : f32
    %22 = vector.broadcast %cst_8 : f32 to vector<2x32xf32>
    %23 = arith.addf %22, %21 : vector<2x32xf32>
    %24 = arith.divf %22, %23 : vector<2x32xf32>
    %25 = vector.extract_strided_slice %24 {offsets = [0, 0], sizes = [2, 8], strides = [1, 1]} : vector<2x32xf32> to vector<2x8xf32>
    %26 = vector.extract_strided_slice %24 {offsets = [0, 8], sizes = [2, 8], strides = [1, 1]} : vector<2x32xf32> to vector<2x8xf32>
    %27 = vector.extract_strided_slice %24 {offsets = [0, 16], sizes = [2, 8], strides = [1, 1]} : vector<2x32xf32> to vector<2x8xf32>
    %cst_9 = arith.constant 2.000000e+00 : f32
    %28 = vector.broadcast %cst_9 : f32 to vector<2x8xf32>
    %29 = arith.mulf %28, %27 : vector<2x8xf32>
    %cst_10 = arith.constant 1.000000e+00 : f32
    %30 = vector.broadcast %cst_10 : f32 to vector<2x8xf32>
    %31 = arith.subf %29, %30 : vector<2x8xf32>
    %32 = vector.extract_strided_slice %24 {offsets = [0, 24], sizes = [2, 8], strides = [1, 1]} : vector<2x32xf32> to vector<2x8xf32>
    %33 = arith.mulf %26, %16 : vector<2x8xf32>
    %34 = arith.mulf %25, %31 : vector<2x8xf32>
    %35 = arith.addf %33, %34 : vector<2x8xf32>
    %36 = math.tanh %35 : vector<2x8xf32>
    %37 = arith.mulf %32, %36 : vector<2x8xf32>
    %38 = vector.extract_strided_slice %37 {offsets = [0, 0], sizes = [2, 4], strides = [1, 1]} : vector<2x8xf32> to vector<2x4xf32>
    %39 = vector.extract_strided_slice %37 {offsets = [0, 4], sizes = [2, 4], strides = [1, 1]} : vector<2x8xf32> to vector<2x4xf32>
    %40 = vector.extract_strided_slice %14 {offsets = [2, 0], sizes = [2, 32], strides = [1, 1]} : vector<32x32xf32> to vector<2x32xf32>
    %cst_11 = arith.constant dense<0.000000e+00> : vector<2x32xf32>
    %41 = tpu.matmul %37, %3, %cst_11 {dimension_numbers = #tpu.dot_dimension_numbers<[1], [0], [0], [1], [0, 0, 1, 1], [], []>} : vector<2x8xf32>, vector<8x32xf32>, vector<2x32xf32> -> vector<2x32xf32>
    %42 = arith.addf %40, %41 : vector<2x32xf32>
    %43 = arith.negf %42 : vector<2x32xf32>
    %44 = math.exp %43 : vector<2x32xf32>
    %cst_12 = arith.constant 1.000000e+00 : f32
    %45 = vector.broadcast %cst_12 : f32 to vector<2x32xf32>
    %46 = arith.addf %45, %44 : vector<2x32xf32>
    %47 = arith.divf %45, %46 : vector<2x32xf32>
    %48 = vector.extract_strided_slice %47 {offsets = [0, 0], sizes = [2, 8], strides = [1, 1]} : vector<2x32xf32> to vector<2x8xf32>
    %49 = vector.extract_strided_slice %47 {offsets = [0, 8], sizes = [2, 8], strides = [1, 1]} : vector<2x32xf32> to vector<2x8xf32>
    %50 = vector.extract_strided_slice %47 {offsets = [0, 16], sizes = [2, 8], strides = [1, 1]} : vector<2x32xf32> to vector<2x8xf32>
    %cst_13 = arith.constant 2.000000e+00 : f32
    %51 = vector.broadcast %cst_13 : f32 to vector<2x8xf32>
    %52 = arith.mulf %51, %50 : vector<2x8xf32>
    %cst_14 = arith.constant 1.000000e+00 : f32
    %53 = vector.broadcast %cst_14 : f32 to vector<2x8xf32>
    %54 = arith.subf %52, %53 : vector<2x8xf32>
    %55 = vector.extract_strided_slice %47 {offsets = [0, 24], sizes = [2, 8], strides = [1, 1]} : vector<2x32xf32> to vector<2x8xf32>
    %56 = arith.mulf %49, %35 : vector<2x8xf32>
    %57 = arith.mulf %48, %54 : vector<2x8xf32>
    %58 = arith.addf %56, %57 : vector<2x8xf32>
    %59 = math.tanh %58 : vector<2x8xf32>
    %60 = arith.mulf %55, %59 : vector<2x8xf32>
    %61 = vector.extract_strided_slice %60 {offsets = [0, 0], sizes = [2, 4], strides = [1, 1]} : vector<2x8xf32> to vector<2x4xf32>
    %62 = vector.extract_strided_slice %60 {offsets = [0, 4], sizes = [2, 4], strides = [1, 1]} : vector<2x8xf32> to vector<2x4xf32>
    %63 = vector.extract_strided_slice %14 {offsets = [4, 0], sizes = [2, 32], strides = [1, 1]} : vector<32x32xf32> to vector<2x32xf32>
    %cst_15 = arith.constant dense<0.000000e+00> : vector<2x32xf32>
    %64 = tpu.matmul %60, %3, %cst_15 {dimension_numbers = #tpu.dot_dimension_numbers<[1], [0], [0], [1], [0, 0, 1, 1], [], []>} : vector<2x8xf32>, vector<8x32xf32>, vector<2x32xf32> -> vector<2x32xf32>
    %65 = arith.addf %63, %64 : vector<2x32xf32>
    %66 = arith.negf %65 : vector<2x32xf32>
    %67 = math.exp %66 : vector<2x32xf32>
    %cst_16 = arith.constant 1.000000e+00 : f32
    %68 = vector.broadcast %cst_16 : f32 to vector<2x32xf32>
    %69 = arith.addf %68, %67 : vector<2x32xf32>
    %70 = arith.divf %68, %69 : vector<2x32xf32>
    %71 = vector.extract_strided_slice %70 {offsets = [0, 0], sizes = [2, 8], strides = [1, 1]} : vector<2x32xf32> to vector<2x8xf32>
    %72 = vector.extract_strided_slice %70 {offsets = [0, 8], sizes = [2, 8], strides = [1, 1]} : vector<2x32xf32> to vector<2x8xf32>
    %73 = vector.extract_strided_slice %70 {offsets = [0, 16], sizes = [2, 8], strides = [1, 1]} : vector<2x32xf32> to vector<2x8xf32>
    %cst_17 = arith.constant 2.000000e+00 : f32
    %74 = vector.broadcast %cst_17 : f32 to vector<2x8xf32>
    %75 = arith.mulf %74, %73 : vector<2x8xf32>
    %cst_18 = arith.constant 1.000000e+00 : f32
    %76 = vector.broadcast %cst_18 : f32 to vector<2x8xf32>
    %77 = arith.subf %75, %76 : vector<2x8xf32>
    %78 = vector.extract_strided_slice %70 {offsets = [0, 24], sizes = [2, 8], strides = [1, 1]} : vector<2x32xf32> to vector<2x8xf32>
    %79 = arith.mulf %72, %58 : vector<2x8xf32>
    %80 = arith.mulf %71, %77 : vector<2x8xf32>
    %81 = arith.addf %79, %80 : vector<2x8xf32>
    %82 = math.tanh %81 : vector<2x8xf32>
    %83 = arith.mulf %78, %82 : vector<2x8xf32>
    %84 = vector.extract_strided_slice %83 {offsets = [0, 0], sizes = [2, 4], strides = [1, 1]} : vector<2x8xf32> to vector<2x4xf32>
    %85 = vector.extract_strided_slice %83 {offsets = [0, 4], sizes = [2, 4], strides = [1, 1]} : vector<2x8xf32> to vector<2x4xf32>
    %86 = vector.extract_strided_slice %14 {offsets = [6, 0], sizes = [2, 32], strides = [1, 1]} : vector<32x32xf32> to vector<2x32xf32>
    %cst_19 = arith.constant dense<0.000000e+00> : vector<2x32xf32>
    %87 = tpu.matmul %83, %3, %cst_19 {dimension_numbers = #tpu.dot_dimension_numbers<[1], [0], [0], [1], [0, 0, 1, 1], [], []>} : vector<2x8xf32>, vector<8x32xf32>, vector<2x32xf32> -> vector<2x32xf32>
    %88 = arith.addf %86, %87 : vector<2x32xf32>
    %89 = arith.negf %88 : vector<2x32xf32>
    %90 = math.exp %89 : vector<2x32xf32>
    %cst_20 = arith.constant 1.000000e+00 : f32
    %91 = vector.broadcast %cst_20 : f32 to vector<2x32xf32>
    %92 = arith.addf %91, %90 : vector<2x32xf32>
    %93 = arith.divf %91, %92 : vector<2x32xf32>
    %94 = vector.extract_strided_slice %93 {offsets = [0, 0], sizes = [2, 8], strides = [1, 1]} : vector<2x32xf32> to vector<2x8xf32>
    %95 = vector.extract_strided_slice %93 {offsets = [0, 8], sizes = [2, 8], strides = [1, 1]} : vector<2x32xf32> to vector<2x8xf32>
    %96 = vector.extract_strided_slice %93 {offsets = [0, 16], sizes = [2, 8], strides = [1, 1]} : vector<2x32xf32> to vector<2x8xf32>
    %cst_21 = arith.constant 2.000000e+00 : f32
    %97 = vector.broadcast %cst_21 : f32 to vector<2x8xf32>
    %98 = arith.mulf %97, %96 : vector<2x8xf32>
    %cst_22 = arith.constant 1.000000e+00 : f32
    %99 = vector.broadcast %cst_22 : f32 to vector<2x8xf32>
    %100 = arith.subf %98, %99 : vector<2x8xf32>
    %101 = vector.extract_strided_slice %93 {offsets = [0, 24], sizes = [2, 8], strides = [1, 1]} : vector<2x32xf32> to vector<2x8xf32>
    %102 = arith.mulf %95, %81 : vector<2x8xf32>
    %103 = arith.mulf %94, %100 : vector<2x8xf32>
    %104 = arith.addf %102, %103 : vector<2x8xf32>
    %105 = math.tanh %104 : vector<2x8xf32>
    %106 = arith.mulf %101, %105 : vector<2x8xf32>
    %107 = vector.extract_strided_slice %106 {offsets = [0, 0], sizes = [2, 4], strides = [1, 1]} : vector<2x8xf32> to vector<2x4xf32>
    %108 = vector.extract_strided_slice %106 {offsets = [0, 4], sizes = [2, 4], strides = [1, 1]} : vector<2x8xf32> to vector<2x4xf32>
    %109 = vector.extract_strided_slice %14 {offsets = [8, 0], sizes = [2, 32], strides = [1, 1]} : vector<32x32xf32> to vector<2x32xf32>
    %cst_23 = arith.constant dense<0.000000e+00> : vector<2x32xf32>
    %110 = tpu.matmul %106, %3, %cst_23 {dimension_numbers = #tpu.dot_dimension_numbers<[1], [0], [0], [1], [0, 0, 1, 1], [], []>} : vector<2x8xf32>, vector<8x32xf32>, vector<2x32xf32> -> vector<2x32xf32>
    %111 = arith.addf %109, %110 : vector<2x32xf32>
    %112 = arith.negf %111 : vector<2x32xf32>
    %113 = math.exp %112 : vector<2x32xf32>
    %cst_24 = arith.constant 1.000000e+00 : f32
    %114 = vector.broadcast %cst_24 : f32 to vector<2x32xf32>
    %115 = arith.addf %114, %113 : vector<2x32xf32>
    %116 = arith.divf %114, %115 : vector<2x32xf32>
    %117 = vector.extract_strided_slice %116 {offsets = [0, 0], sizes = [2, 8], strides = [1, 1]} : vector<2x32xf32> to vector<2x8xf32>
    %118 = vector.extract_strided_slice %116 {offsets = [0, 8], sizes = [2, 8], strides = [1, 1]} : vector<2x32xf32> to vector<2x8xf32>
    %119 = vector.extract_strided_slice %116 {offsets = [0, 16], sizes = [2, 8], strides = [1, 1]} : vector<2x32xf32> to vector<2x8xf32>
    %cst_25 = arith.constant 2.000000e+00 : f32
    %120 = vector.broadcast %cst_25 : f32 to vector<2x8xf32>
    %121 = arith.mulf %120, %119 : vector<2x8xf32>
    %cst_26 = arith.constant 1.000000e+00 : f32
    %122 = vector.broadcast %cst_26 : f32 to vector<2x8xf32>
    %123 = arith.subf %121, %122 : vector<2x8xf32>
    %124 = vector.extract_strided_slice %116 {offsets = [0, 24], sizes = [2, 8], strides = [1, 1]} : vector<2x32xf32> to vector<2x8xf32>
    %125 = arith.mulf %118, %104 : vector<2x8xf32>
    %126 = arith.mulf %117, %123 : vector<2x8xf32>
    %127 = arith.addf %125, %126 : vector<2x8xf32>
    %128 = math.tanh %127 : vector<2x8xf32>
    %129 = arith.mulf %124, %128 : vector<2x8xf32>
    %130 = vector.extract_strided_slice %129 {offsets = [0, 0], sizes = [2, 4], strides = [1, 1]} : vector<2x8xf32> to vector<2x4xf32>
    %131 = vector.extract_strided_slice %129 {offsets = [0, 4], sizes = [2, 4], strides = [1, 1]} : vector<2x8xf32> to vector<2x4xf32>
    %132 = vector.extract_strided_slice %14 {offsets = [10, 0], sizes = [2, 32], strides = [1, 1]} : vector<32x32xf32> to vector<2x32xf32>
    %cst_27 = arith.constant dense<0.000000e+00> : vector<2x32xf32>
    %133 = tpu.matmul %129, %3, %cst_27 {dimension_numbers = #tpu.dot_dimension_numbers<[1], [0], [0], [1], [0, 0, 1, 1], [], []>} : vector<2x8xf32>, vector<8x32xf32>, vector<2x32xf32> -> vector<2x32xf32>
    %134 = arith.addf %132, %133 : vector<2x32xf32>
    %135 = arith.negf %134 : vector<2x32xf32>
    %136 = math.exp %135 : vector<2x32xf32>
    %cst_28 = arith.constant 1.000000e+00 : f32
    %137 = vector.broadcast %cst_28 : f32 to vector<2x32xf32>
    %138 = arith.addf %137, %136 : vector<2x32xf32>
    %139 = arith.divf %137, %138 : vector<2x32xf32>
    %140 = vector.extract_strided_slice %139 {offsets = [0, 0], sizes = [2, 8], strides = [1, 1]} : vector<2x32xf32> to vector<2x8xf32>
    %141 = vector.extract_strided_slice %139 {offsets = [0, 8], sizes = [2, 8], strides = [1, 1]} : vector<2x32xf32> to vector<2x8xf32>
    %142 = vector.extract_strided_slice %139 {offsets = [0, 16], sizes = [2, 8], strides = [1, 1]} : vector<2x32xf32> to vector<2x8xf32>
    %cst_29 = arith.constant 2.000000e+00 : f32
    %143 = vector.broadcast %cst_29 : f32 to vector<2x8xf32>
    %144 = arith.mulf %143, %142 : vector<2x8xf32>
    %cst_30 = arith.constant 1.000000e+00 : f32
    %145 = vector.broadcast %cst_30 : f32 to vector<2x8xf32>
    %146 = arith.subf %144, %145 : vector<2x8xf32>
    %147 = vector.extract_strided_slice %139 {offsets = [0, 24], sizes = [2, 8], strides = [1, 1]} : vector<2x32xf32> to vector<2x8xf32>
    %148 = arith.mulf %141, %127 : vector<2x8xf32>
    %149 = arith.mulf %140, %146 : vector<2x8xf32>
    %150 = arith.addf %148, %149 : vector<2x8xf32>
    %151 = math.tanh %150 : vector<2x8xf32>
    %152 = arith.mulf %147, %151 : vector<2x8xf32>
    %153 = vector.extract_strided_slice %152 {offsets = [0, 0], sizes = [2, 4], strides = [1, 1]} : vector<2x8xf32> to vector<2x4xf32>
    %154 = vector.extract_strided_slice %152 {offsets = [0, 4], sizes = [2, 4], strides = [1, 1]} : vector<2x8xf32> to vector<2x4xf32>
    %155 = vector.extract_strided_slice %14 {offsets = [12, 0], sizes = [2, 32], strides = [1, 1]} : vector<32x32xf32> to vector<2x32xf32>
    %cst_31 = arith.constant dense<0.000000e+00> : vector<2x32xf32>
    %156 = tpu.matmul %152, %3, %cst_31 {dimension_numbers = #tpu.dot_dimension_numbers<[1], [0], [0], [1], [0, 0, 1, 1], [], []>} : vector<2x8xf32>, vector<8x32xf32>, vector<2x32xf32> -> vector<2x32xf32>
    %157 = arith.addf %155, %156 : vector<2x32xf32>
    %158 = arith.negf %157 : vector<2x32xf32>
    %159 = math.exp %158 : vector<2x32xf32>
    %cst_32 = arith.constant 1.000000e+00 : f32
    %160 = vector.broadcast %cst_32 : f32 to vector<2x32xf32>
    %161 = arith.addf %160, %159 : vector<2x32xf32>
    %162 = arith.divf %160, %161 : vector<2x32xf32>
    %163 = vector.extract_strided_slice %162 {offsets = [0, 0], sizes = [2, 8], strides = [1, 1]} : vector<2x32xf32> to vector<2x8xf32>
    %164 = vector.extract_strided_slice %162 {offsets = [0, 8], sizes = [2, 8], strides = [1, 1]} : vector<2x32xf32> to vector<2x8xf32>
    %165 = vector.extract_strided_slice %162 {offsets = [0, 16], sizes = [2, 8], strides = [1, 1]} : vector<2x32xf32> to vector<2x8xf32>
    %cst_33 = arith.constant 2.000000e+00 : f32
    %166 = vector.broadcast %cst_33 : f32 to vector<2x8xf32>
    %167 = arith.mulf %166, %165 : vector<2x8xf32>
    %cst_34 = arith.constant 1.000000e+00 : f32
    %168 = vector.broadcast %cst_34 : f32 to vector<2x8xf32>
    %169 = arith.subf %167, %168 : vector<2x8xf32>
    %170 = vector.extract_strided_slice %162 {offsets = [0, 24], sizes = [2, 8], strides = [1, 1]} : vector<2x32xf32> to vector<2x8xf32>
    %171 = arith.mulf %164, %150 : vector<2x8xf32>
    %172 = arith.mulf %163, %169 : vector<2x8xf32>
    %173 = arith.addf %171, %172 : vector<2x8xf32>
    %174 = math.tanh %173 : vector<2x8xf32>
    %175 = arith.mulf %170, %174 : vector<2x8xf32>
    %176 = vector.extract_strided_slice %175 {offsets = [0, 0], sizes = [2, 4], strides = [1, 1]} : vector<2x8xf32> to vector<2x4xf32>
    %177 = vector.extract_strided_slice %175 {offsets = [0, 4], sizes = [2, 4], strides = [1, 1]} : vector<2x8xf32> to vector<2x4xf32>
    %178 = vector.extract_strided_slice %14 {offsets = [14, 0], sizes = [2, 32], strides = [1, 1]} : vector<32x32xf32> to vector<2x32xf32>
    %cst_35 = arith.constant dense<0.000000e+00> : vector<2x32xf32>
    %179 = tpu.matmul %175, %3, %cst_35 {dimension_numbers = #tpu.dot_dimension_numbers<[1], [0], [0], [1], [0, 0, 1, 1], [], []>} : vector<2x8xf32>, vector<8x32xf32>, vector<2x32xf32> -> vector<2x32xf32>
    %180 = arith.addf %178, %179 : vector<2x32xf32>
    %181 = arith.negf %180 : vector<2x32xf32>
    %182 = math.exp %181 : vector<2x32xf32>
    %cst_36 = arith.constant 1.000000e+00 : f32
    %183 = vector.broadcast %cst_36 : f32 to vector<2x32xf32>
    %184 = arith.addf %183, %182 : vector<2x32xf32>
    %185 = arith.divf %183, %184 : vector<2x32xf32>
    %186 = vector.extract_strided_slice %185 {offsets = [0, 0], sizes = [2, 8], strides = [1, 1]} : vector<2x32xf32> to vector<2x8xf32>
    %187 = vector.extract_strided_slice %185 {offsets = [0, 8], sizes = [2, 8], strides = [1, 1]} : vector<2x32xf32> to vector<2x8xf32>
    %188 = vector.extract_strided_slice %185 {offsets = [0, 16], sizes = [2, 8], strides = [1, 1]} : vector<2x32xf32> to vector<2x8xf32>
    %cst_37 = arith.constant 2.000000e+00 : f32
    %189 = vector.broadcast %cst_37 : f32 to vector<2x8xf32>
    %190 = arith.mulf %189, %188 : vector<2x8xf32>
    %cst_38 = arith.constant 1.000000e+00 : f32
    %191 = vector.broadcast %cst_38 : f32 to vector<2x8xf32>
    %192 = arith.subf %190, %191 : vector<2x8xf32>
    %193 = vector.extract_strided_slice %185 {offsets = [0, 24], sizes = [2, 8], strides = [1, 1]} : vector<2x32xf32> to vector<2x8xf32>
    %194 = arith.mulf %187, %173 : vector<2x8xf32>
    %195 = arith.mulf %186, %192 : vector<2x8xf32>
    %196 = arith.addf %194, %195 : vector<2x8xf32>
    %197 = math.tanh %196 : vector<2x8xf32>
    %198 = arith.mulf %193, %197 : vector<2x8xf32>
    %199 = vector.extract_strided_slice %198 {offsets = [0, 0], sizes = [2, 4], strides = [1, 1]} : vector<2x8xf32> to vector<2x4xf32>
    %200 = vector.extract_strided_slice %198 {offsets = [0, 4], sizes = [2, 4], strides = [1, 1]} : vector<2x8xf32> to vector<2x4xf32>
    %201 = vector.extract_strided_slice %14 {offsets = [16, 0], sizes = [2, 32], strides = [1, 1]} : vector<32x32xf32> to vector<2x32xf32>
    %cst_39 = arith.constant dense<0.000000e+00> : vector<2x32xf32>
    %202 = tpu.matmul %198, %3, %cst_39 {dimension_numbers = #tpu.dot_dimension_numbers<[1], [0], [0], [1], [0, 0, 1, 1], [], []>} : vector<2x8xf32>, vector<8x32xf32>, vector<2x32xf32> -> vector<2x32xf32>
    %203 = arith.addf %201, %202 : vector<2x32xf32>
    %204 = arith.negf %203 : vector<2x32xf32>
    %205 = math.exp %204 : vector<2x32xf32>
    %cst_40 = arith.constant 1.000000e+00 : f32
    %206 = vector.broadcast %cst_40 : f32 to vector<2x32xf32>
    %207 = arith.addf %206, %205 : vector<2x32xf32>
    %208 = arith.divf %206, %207 : vector<2x32xf32>
    %209 = vector.extract_strided_slice %208 {offsets = [0, 0], sizes = [2, 8], strides = [1, 1]} : vector<2x32xf32> to vector<2x8xf32>
    %210 = vector.extract_strided_slice %208 {offsets = [0, 8], sizes = [2, 8], strides = [1, 1]} : vector<2x32xf32> to vector<2x8xf32>
    %211 = vector.extract_strided_slice %208 {offsets = [0, 16], sizes = [2, 8], strides = [1, 1]} : vector<2x32xf32> to vector<2x8xf32>
    %cst_41 = arith.constant 2.000000e+00 : f32
    %212 = vector.broadcast %cst_41 : f32 to vector<2x8xf32>
    %213 = arith.mulf %212, %211 : vector<2x8xf32>
    %cst_42 = arith.constant 1.000000e+00 : f32
    %214 = vector.broadcast %cst_42 : f32 to vector<2x8xf32>
    %215 = arith.subf %213, %214 : vector<2x8xf32>
    %216 = vector.extract_strided_slice %208 {offsets = [0, 24], sizes = [2, 8], strides = [1, 1]} : vector<2x32xf32> to vector<2x8xf32>
    %217 = arith.mulf %210, %196 : vector<2x8xf32>
    %218 = arith.mulf %209, %215 : vector<2x8xf32>
    %219 = arith.addf %217, %218 : vector<2x8xf32>
    %220 = math.tanh %219 : vector<2x8xf32>
    %221 = arith.mulf %216, %220 : vector<2x8xf32>
    %222 = vector.extract_strided_slice %221 {offsets = [0, 0], sizes = [2, 4], strides = [1, 1]} : vector<2x8xf32> to vector<2x4xf32>
    %223 = vector.extract_strided_slice %221 {offsets = [0, 4], sizes = [2, 4], strides = [1, 1]} : vector<2x8xf32> to vector<2x4xf32>
    %224 = vector.extract_strided_slice %14 {offsets = [18, 0], sizes = [2, 32], strides = [1, 1]} : vector<32x32xf32> to vector<2x32xf32>
    %cst_43 = arith.constant dense<0.000000e+00> : vector<2x32xf32>
    %225 = tpu.matmul %221, %3, %cst_43 {dimension_numbers = #tpu.dot_dimension_numbers<[1], [0], [0], [1], [0, 0, 1, 1], [], []>} : vector<2x8xf32>, vector<8x32xf32>, vector<2x32xf32> -> vector<2x32xf32>
    %226 = arith.addf %224, %225 : vector<2x32xf32>
    %227 = arith.negf %226 : vector<2x32xf32>
    %228 = math.exp %227 : vector<2x32xf32>
    %cst_44 = arith.constant 1.000000e+00 : f32
    %229 = vector.broadcast %cst_44 : f32 to vector<2x32xf32>
    %230 = arith.addf %229, %228 : vector<2x32xf32>
    %231 = arith.divf %229, %230 : vector<2x32xf32>
    %232 = vector.extract_strided_slice %231 {offsets = [0, 0], sizes = [2, 8], strides = [1, 1]} : vector<2x32xf32> to vector<2x8xf32>
    %233 = vector.extract_strided_slice %231 {offsets = [0, 8], sizes = [2, 8], strides = [1, 1]} : vector<2x32xf32> to vector<2x8xf32>
    %234 = vector.extract_strided_slice %231 {offsets = [0, 16], sizes = [2, 8], strides = [1, 1]} : vector<2x32xf32> to vector<2x8xf32>
    %cst_45 = arith.constant 2.000000e+00 : f32
    %235 = vector.broadcast %cst_45 : f32 to vector<2x8xf32>
    %236 = arith.mulf %235, %234 : vector<2x8xf32>
    %cst_46 = arith.constant 1.000000e+00 : f32
    %237 = vector.broadcast %cst_46 : f32 to vector<2x8xf32>
    %238 = arith.subf %236, %237 : vector<2x8xf32>
    %239 = vector.extract_strided_slice %231 {offsets = [0, 24], sizes = [2, 8], strides = [1, 1]} : vector<2x32xf32> to vector<2x8xf32>
    %240 = arith.mulf %233, %219 : vector<2x8xf32>
    %241 = arith.mulf %232, %238 : vector<2x8xf32>
    %242 = arith.addf %240, %241 : vector<2x8xf32>
    %243 = math.tanh %242 : vector<2x8xf32>
    %244 = arith.mulf %239, %243 : vector<2x8xf32>
    %245 = vector.extract_strided_slice %244 {offsets = [0, 0], sizes = [2, 4], strides = [1, 1]} : vector<2x8xf32> to vector<2x4xf32>
    %246 = vector.extract_strided_slice %244 {offsets = [0, 4], sizes = [2, 4], strides = [1, 1]} : vector<2x8xf32> to vector<2x4xf32>
    %247 = vector.extract_strided_slice %14 {offsets = [20, 0], sizes = [2, 32], strides = [1, 1]} : vector<32x32xf32> to vector<2x32xf32>
    %cst_47 = arith.constant dense<0.000000e+00> : vector<2x32xf32>
    %248 = tpu.matmul %244, %3, %cst_47 {dimension_numbers = #tpu.dot_dimension_numbers<[1], [0], [0], [1], [0, 0, 1, 1], [], []>} : vector<2x8xf32>, vector<8x32xf32>, vector<2x32xf32> -> vector<2x32xf32>
    %249 = arith.addf %247, %248 : vector<2x32xf32>
    %250 = arith.negf %249 : vector<2x32xf32>
    %251 = math.exp %250 : vector<2x32xf32>
    %cst_48 = arith.constant 1.000000e+00 : f32
    %252 = vector.broadcast %cst_48 : f32 to vector<2x32xf32>
    %253 = arith.addf %252, %251 : vector<2x32xf32>
    %254 = arith.divf %252, %253 : vector<2x32xf32>
    %255 = vector.extract_strided_slice %254 {offsets = [0, 0], sizes = [2, 8], strides = [1, 1]} : vector<2x32xf32> to vector<2x8xf32>
    %256 = vector.extract_strided_slice %254 {offsets = [0, 8], sizes = [2, 8], strides = [1, 1]} : vector<2x32xf32> to vector<2x8xf32>
    %257 = vector.extract_strided_slice %254 {offsets = [0, 16], sizes = [2, 8], strides = [1, 1]} : vector<2x32xf32> to vector<2x8xf32>
    %cst_49 = arith.constant 2.000000e+00 : f32
    %258 = vector.broadcast %cst_49 : f32 to vector<2x8xf32>
    %259 = arith.mulf %258, %257 : vector<2x8xf32>
    %cst_50 = arith.constant 1.000000e+00 : f32
    %260 = vector.broadcast %cst_50 : f32 to vector<2x8xf32>
    %261 = arith.subf %259, %260 : vector<2x8xf32>
    %262 = vector.extract_strided_slice %254 {offsets = [0, 24], sizes = [2, 8], strides = [1, 1]} : vector<2x32xf32> to vector<2x8xf32>
    %263 = arith.mulf %256, %242 : vector<2x8xf32>
    %264 = arith.mulf %255, %261 : vector<2x8xf32>
    %265 = arith.addf %263, %264 : vector<2x8xf32>
    %266 = math.tanh %265 : vector<2x8xf32>
    %267 = arith.mulf %262, %266 : vector<2x8xf32>
    %268 = vector.extract_strided_slice %267 {offsets = [0, 0], sizes = [2, 4], strides = [1, 1]} : vector<2x8xf32> to vector<2x4xf32>
    %269 = vector.extract_strided_slice %267 {offsets = [0, 4], sizes = [2, 4], strides = [1, 1]} : vector<2x8xf32> to vector<2x4xf32>
    %270 = vector.extract_strided_slice %14 {offsets = [22, 0], sizes = [2, 32], strides = [1, 1]} : vector<32x32xf32> to vector<2x32xf32>
    %cst_51 = arith.constant dense<0.000000e+00> : vector<2x32xf32>
    %271 = tpu.matmul %267, %3, %cst_51 {dimension_numbers = #tpu.dot_dimension_numbers<[1], [0], [0], [1], [0, 0, 1, 1], [], []>} : vector<2x8xf32>, vector<8x32xf32>, vector<2x32xf32> -> vector<2x32xf32>
    %272 = arith.addf %270, %271 : vector<2x32xf32>
    %273 = arith.negf %272 : vector<2x32xf32>
    %274 = math.exp %273 : vector<2x32xf32>
    %cst_52 = arith.constant 1.000000e+00 : f32
    %275 = vector.broadcast %cst_52 : f32 to vector<2x32xf32>
    %276 = arith.addf %275, %274 : vector<2x32xf32>
    %277 = arith.divf %275, %276 : vector<2x32xf32>
    %278 = vector.extract_strided_slice %277 {offsets = [0, 0], sizes = [2, 8], strides = [1, 1]} : vector<2x32xf32> to vector<2x8xf32>
    %279 = vector.extract_strided_slice %277 {offsets = [0, 8], sizes = [2, 8], strides = [1, 1]} : vector<2x32xf32> to vector<2x8xf32>
    %280 = vector.extract_strided_slice %277 {offsets = [0, 16], sizes = [2, 8], strides = [1, 1]} : vector<2x32xf32> to vector<2x8xf32>
    %cst_53 = arith.constant 2.000000e+00 : f32
    %281 = vector.broadcast %cst_53 : f32 to vector<2x8xf32>
    %282 = arith.mulf %281, %280 : vector<2x8xf32>
    %cst_54 = arith.constant 1.000000e+00 : f32
    %283 = vector.broadcast %cst_54 : f32 to vector<2x8xf32>
    %284 = arith.subf %282, %283 : vector<2x8xf32>
    %285 = vector.extract_strided_slice %277 {offsets = [0, 24], sizes = [2, 8], strides = [1, 1]} : vector<2x32xf32> to vector<2x8xf32>
    %286 = arith.mulf %279, %265 : vector<2x8xf32>
    %287 = arith.mulf %278, %284 : vector<2x8xf32>
    %288 = arith.addf %286, %287 : vector<2x8xf32>
    %289 = math.tanh %288 : vector<2x8xf32>
    %290 = arith.mulf %285, %289 : vector<2x8xf32>
    %291 = vector.extract_strided_slice %290 {offsets = [0, 0], sizes = [2, 4], strides = [1, 1]} : vector<2x8xf32> to vector<2x4xf32>
    %292 = vector.extract_strided_slice %290 {offsets = [0, 4], sizes = [2, 4], strides = [1, 1]} : vector<2x8xf32> to vector<2x4xf32>
    %293 = vector.extract_strided_slice %14 {offsets = [24, 0], sizes = [2, 32], strides = [1, 1]} : vector<32x32xf32> to vector<2x32xf32>
    %cst_55 = arith.constant dense<0.000000e+00> : vector<2x32xf32>
    %294 = tpu.matmul %290, %3, %cst_55 {dimension_numbers = #tpu.dot_dimension_numbers<[1], [0], [0], [1], [0, 0, 1, 1], [], []>} : vector<2x8xf32>, vector<8x32xf32>, vector<2x32xf32> -> vector<2x32xf32>
    %295 = arith.addf %293, %294 : vector<2x32xf32>
    %296 = arith.negf %295 : vector<2x32xf32>
    %297 = math.exp %296 : vector<2x32xf32>
    %cst_56 = arith.constant 1.000000e+00 : f32
    %298 = vector.broadcast %cst_56 : f32 to vector<2x32xf32>
    %299 = arith.addf %298, %297 : vector<2x32xf32>
    %300 = arith.divf %298, %299 : vector<2x32xf32>
    %301 = vector.extract_strided_slice %300 {offsets = [0, 0], sizes = [2, 8], strides = [1, 1]} : vector<2x32xf32> to vector<2x8xf32>
    %302 = vector.extract_strided_slice %300 {offsets = [0, 8], sizes = [2, 8], strides = [1, 1]} : vector<2x32xf32> to vector<2x8xf32>
    %303 = vector.extract_strided_slice %300 {offsets = [0, 16], sizes = [2, 8], strides = [1, 1]} : vector<2x32xf32> to vector<2x8xf32>
    %cst_57 = arith.constant 2.000000e+00 : f32
    %304 = vector.broadcast %cst_57 : f32 to vector<2x8xf32>
    %305 = arith.mulf %304, %303 : vector<2x8xf32>
    %cst_58 = arith.constant 1.000000e+00 : f32
    %306 = vector.broadcast %cst_58 : f32 to vector<2x8xf32>
    %307 = arith.subf %305, %306 : vector<2x8xf32>
    %308 = vector.extract_strided_slice %300 {offsets = [0, 24], sizes = [2, 8], strides = [1, 1]} : vector<2x32xf32> to vector<2x8xf32>
    %309 = arith.mulf %302, %288 : vector<2x8xf32>
    %310 = arith.mulf %301, %307 : vector<2x8xf32>
    %311 = arith.addf %309, %310 : vector<2x8xf32>
    %312 = math.tanh %311 : vector<2x8xf32>
    %313 = arith.mulf %308, %312 : vector<2x8xf32>
    %314 = vector.extract_strided_slice %313 {offsets = [0, 0], sizes = [2, 4], strides = [1, 1]} : vector<2x8xf32> to vector<2x4xf32>
    %315 = vector.extract_strided_slice %313 {offsets = [0, 4], sizes = [2, 4], strides = [1, 1]} : vector<2x8xf32> to vector<2x4xf32>
    %316 = vector.extract_strided_slice %14 {offsets = [26, 0], sizes = [2, 32], strides = [1, 1]} : vector<32x32xf32> to vector<2x32xf32>
    %cst_59 = arith.constant dense<0.000000e+00> : vector<2x32xf32>
    %317 = tpu.matmul %313, %3, %cst_59 {dimension_numbers = #tpu.dot_dimension_numbers<[1], [0], [0], [1], [0, 0, 1, 1], [], []>} : vector<2x8xf32>, vector<8x32xf32>, vector<2x32xf32> -> vector<2x32xf32>
    %318 = arith.addf %316, %317 : vector<2x32xf32>
    %319 = arith.negf %318 : vector<2x32xf32>
    %320 = math.exp %319 : vector<2x32xf32>
    %cst_60 = arith.constant 1.000000e+00 : f32
    %321 = vector.broadcast %cst_60 : f32 to vector<2x32xf32>
    %322 = arith.addf %321, %320 : vector<2x32xf32>
    %323 = arith.divf %321, %322 : vector<2x32xf32>
    %324 = vector.extract_strided_slice %323 {offsets = [0, 0], sizes = [2, 8], strides = [1, 1]} : vector<2x32xf32> to vector<2x8xf32>
    %325 = vector.extract_strided_slice %323 {offsets = [0, 8], sizes = [2, 8], strides = [1, 1]} : vector<2x32xf32> to vector<2x8xf32>
    %326 = vector.extract_strided_slice %323 {offsets = [0, 16], sizes = [2, 8], strides = [1, 1]} : vector<2x32xf32> to vector<2x8xf32>
    %cst_61 = arith.constant 2.000000e+00 : f32
    %327 = vector.broadcast %cst_61 : f32 to vector<2x8xf32>
    %328 = arith.mulf %327, %326 : vector<2x8xf32>
    %cst_62 = arith.constant 1.000000e+00 : f32
    %329 = vector.broadcast %cst_62 : f32 to vector<2x8xf32>
    %330 = arith.subf %328, %329 : vector<2x8xf32>
    %331 = vector.extract_strided_slice %323 {offsets = [0, 24], sizes = [2, 8], strides = [1, 1]} : vector<2x32xf32> to vector<2x8xf32>
    %332 = arith.mulf %325, %311 : vector<2x8xf32>
    %333 = arith.mulf %324, %330 : vector<2x8xf32>
    %334 = arith.addf %332, %333 : vector<2x8xf32>
    %335 = math.tanh %334 : vector<2x8xf32>
    %336 = arith.mulf %331, %335 : vector<2x8xf32>
    %337 = vector.extract_strided_slice %336 {offsets = [0, 0], sizes = [2, 4], strides = [1, 1]} : vector<2x8xf32> to vector<2x4xf32>
    %338 = vector.extract_strided_slice %336 {offsets = [0, 4], sizes = [2, 4], strides = [1, 1]} : vector<2x8xf32> to vector<2x4xf32>
    %339 = vector.extract_strided_slice %14 {offsets = [28, 0], sizes = [2, 32], strides = [1, 1]} : vector<32x32xf32> to vector<2x32xf32>
    %cst_63 = arith.constant dense<0.000000e+00> : vector<2x32xf32>
    %340 = tpu.matmul %336, %3, %cst_63 {dimension_numbers = #tpu.dot_dimension_numbers<[1], [0], [0], [1], [0, 0, 1, 1], [], []>} : vector<2x8xf32>, vector<8x32xf32>, vector<2x32xf32> -> vector<2x32xf32>
    %341 = arith.addf %339, %340 : vector<2x32xf32>
    %342 = arith.negf %341 : vector<2x32xf32>
    %343 = math.exp %342 : vector<2x32xf32>
    %cst_64 = arith.constant 1.000000e+00 : f32
    %344 = vector.broadcast %cst_64 : f32 to vector<2x32xf32>
    %345 = arith.addf %344, %343 : vector<2x32xf32>
    %346 = arith.divf %344, %345 : vector<2x32xf32>
    %347 = vector.extract_strided_slice %346 {offsets = [0, 0], sizes = [2, 8], strides = [1, 1]} : vector<2x32xf32> to vector<2x8xf32>
    %348 = vector.extract_strided_slice %346 {offsets = [0, 8], sizes = [2, 8], strides = [1, 1]} : vector<2x32xf32> to vector<2x8xf32>
    %349 = vector.extract_strided_slice %346 {offsets = [0, 16], sizes = [2, 8], strides = [1, 1]} : vector<2x32xf32> to vector<2x8xf32>
    %cst_65 = arith.constant 2.000000e+00 : f32
    %350 = vector.broadcast %cst_65 : f32 to vector<2x8xf32>
    %351 = arith.mulf %350, %349 : vector<2x8xf32>
    %cst_66 = arith.constant 1.000000e+00 : f32
    %352 = vector.broadcast %cst_66 : f32 to vector<2x8xf32>
    %353 = arith.subf %351, %352 : vector<2x8xf32>
    %354 = vector.extract_strided_slice %346 {offsets = [0, 24], sizes = [2, 8], strides = [1, 1]} : vector<2x32xf32> to vector<2x8xf32>
    %355 = arith.mulf %348, %334 : vector<2x8xf32>
    %356 = arith.mulf %347, %353 : vector<2x8xf32>
    %357 = arith.addf %355, %356 : vector<2x8xf32>
    %358 = math.tanh %357 : vector<2x8xf32>
    %359 = arith.mulf %354, %358 : vector<2x8xf32>
    %360 = vector.extract_strided_slice %359 {offsets = [0, 0], sizes = [2, 4], strides = [1, 1]} : vector<2x8xf32> to vector<2x4xf32>
    %361 = vector.extract_strided_slice %359 {offsets = [0, 4], sizes = [2, 4], strides = [1, 1]} : vector<2x8xf32> to vector<2x4xf32>
    %362 = vector.extract_strided_slice %14 {offsets = [30, 0], sizes = [2, 32], strides = [1, 1]} : vector<32x32xf32> to vector<2x32xf32>
    %cst_67 = arith.constant dense<0.000000e+00> : vector<2x32xf32>
    %363 = tpu.matmul %359, %3, %cst_67 {dimension_numbers = #tpu.dot_dimension_numbers<[1], [0], [0], [1], [0, 0, 1, 1], [], []>} : vector<2x8xf32>, vector<8x32xf32>, vector<2x32xf32> -> vector<2x32xf32>
    %364 = arith.addf %362, %363 : vector<2x32xf32>
    %365 = arith.negf %364 : vector<2x32xf32>
    %366 = math.exp %365 : vector<2x32xf32>
    %cst_68 = arith.constant 1.000000e+00 : f32
    %367 = vector.broadcast %cst_68 : f32 to vector<2x32xf32>
    %368 = arith.addf %367, %366 : vector<2x32xf32>
    %369 = arith.divf %367, %368 : vector<2x32xf32>
    %370 = vector.extract_strided_slice %369 {offsets = [0, 0], sizes = [2, 8], strides = [1, 1]} : vector<2x32xf32> to vector<2x8xf32>
    %371 = vector.extract_strided_slice %369 {offsets = [0, 8], sizes = [2, 8], strides = [1, 1]} : vector<2x32xf32> to vector<2x8xf32>
    %372 = vector.extract_strided_slice %369 {offsets = [0, 16], sizes = [2, 8], strides = [1, 1]} : vector<2x32xf32> to vector<2x8xf32>
    %cst_69 = arith.constant 2.000000e+00 : f32
    %373 = vector.broadcast %cst_69 : f32 to vector<2x8xf32>
    %374 = arith.mulf %373, %372 : vector<2x8xf32>
    %cst_70 = arith.constant 1.000000e+00 : f32
    %375 = vector.broadcast %cst_70 : f32 to vector<2x8xf32>
    %376 = arith.subf %374, %375 : vector<2x8xf32>
    %377 = vector.extract_strided_slice %369 {offsets = [0, 24], sizes = [2, 8], strides = [1, 1]} : vector<2x32xf32> to vector<2x8xf32>
    %378 = arith.mulf %371, %357 : vector<2x8xf32>
    %379 = arith.mulf %370, %376 : vector<2x8xf32>
    %380 = arith.addf %378, %379 : vector<2x8xf32>
    %381 = math.tanh %380 : vector<2x8xf32>
    %382 = arith.mulf %377, %381 : vector<2x8xf32>
    %383 = vector.extract_strided_slice %382 {offsets = [0, 0], sizes = [2, 4], strides = [1, 1]} : vector<2x8xf32> to vector<2x4xf32>
    %384 = vector.extract_strided_slice %382 {offsets = [0, 4], sizes = [2, 4], strides = [1, 1]} : vector<2x8xf32> to vector<2x4xf32>
    %385 = tpu.concatenate %38, %61, %84, %107, %130, %153, %176, %199, %222, %245, %268, %291, %314, %337, %360, %383 in 0 : vector<2x4xf32>, vector<2x4xf32>, vector<2x4xf32>, vector<2x4xf32>, vector<2x4xf32>, vector<2x4xf32>, vector<2x4xf32>, vector<2x4xf32>, vector<2x4xf32>, vector<2x4xf32>, vector<2x4xf32>, vector<2x4xf32>, vector<2x4xf32>, vector<2x4xf32>, vector<2x4xf32>, vector<2x4xf32> -> vector<32x4xf32>
    %386 = tpu.concatenate %384, %361, %338, %315, %292, %269, %246, %223, %200, %177, %154, %131, %108, %85, %62, %39 in 0 : vector<2x4xf32>, vector<2x4xf32>, vector<2x4xf32>, vector<2x4xf32>, vector<2x4xf32>, vector<2x4xf32>, vector<2x4xf32>, vector<2x4xf32>, vector<2x4xf32>, vector<2x4xf32>, vector<2x4xf32>, vector<2x4xf32>, vector<2x4xf32>, vector<2x4xf32>, vector<2x4xf32>, vector<2x4xf32> -> vector<32x4xf32>
    %387 = tpu.concatenate %385, %386 in 1 : vector<32x4xf32>, vector<32x4xf32> -> vector<32x8xf32>
    %cst_71 = arith.constant dense<0.000000e+00> : vector<32x28xf32>
    %388 = tpu.matmul %387, %4, %cst_71 {dimension_numbers = #tpu.dot_dimension_numbers<[1], [0], [0], [1], [0, 0, 1, 1], [], []>} : vector<32x8xf32>, vector<8x28xf32>, vector<32x28xf32> -> vector<32x28xf32>
    %389 = vector.extract_strided_slice %388 {offsets = [0, 0], sizes = [30, 2], strides = [1, 1]} : vector<32x28xf32> to vector<30x2xf32>
    %390 = vector.extract_strided_slice %388 {offsets = [2, 2], sizes = [30, 2], strides = [1, 1]} : vector<32x28xf32> to vector<30x2xf32>
    %391 = arith.addf %389, %390 : vector<30x2xf32>
    %392 = vector.extract_strided_slice %391 {offsets = [0, 0], sizes = [2, 2], strides = [1, 1]} : vector<30x2xf32> to vector<2x2xf32>
    %393 = vector.extract_strided_slice %391 {offsets = [2, 0], sizes = [2, 2], strides = [1, 1]} : vector<30x2xf32> to vector<2x2xf32>
    %394 = vector.extract_strided_slice %391 {offsets = [4, 0], sizes = [2, 2], strides = [1, 1]} : vector<30x2xf32> to vector<2x2xf32>
    %395 = vector.extract_strided_slice %391 {offsets = [6, 0], sizes = [2, 2], strides = [1, 1]} : vector<30x2xf32> to vector<2x2xf32>
    %396 = vector.extract_strided_slice %391 {offsets = [8, 0], sizes = [2, 2], strides = [1, 1]} : vector<30x2xf32> to vector<2x2xf32>
    %397 = vector.extract_strided_slice %391 {offsets = [10, 0], sizes = [2, 2], strides = [1, 1]} : vector<30x2xf32> to vector<2x2xf32>
    %398 = vector.extract_strided_slice %391 {offsets = [12, 0], sizes = [2, 2], strides = [1, 1]} : vector<30x2xf32> to vector<2x2xf32>
    %399 = vector.extract_strided_slice %391 {offsets = [14, 0], sizes = [2, 2], strides = [1, 1]} : vector<30x2xf32> to vector<2x2xf32>
    %400 = vector.extract_strided_slice %391 {offsets = [16, 0], sizes = [2, 2], strides = [1, 1]} : vector<30x2xf32> to vector<2x2xf32>
    %401 = vector.extract_strided_slice %391 {offsets = [18, 0], sizes = [2, 2], strides = [1, 1]} : vector<30x2xf32> to vector<2x2xf32>
    %402 = vector.extract_strided_slice %391 {offsets = [20, 0], sizes = [2, 2], strides = [1, 1]} : vector<30x2xf32> to vector<2x2xf32>
    %403 = vector.extract_strided_slice %391 {offsets = [22, 0], sizes = [2, 2], strides = [1, 1]} : vector<30x2xf32> to vector<2x2xf32>
    %404 = vector.extract_strided_slice %391 {offsets = [24, 0], sizes = [2, 2], strides = [1, 1]} : vector<30x2xf32> to vector<2x2xf32>
    %405 = vector.extract_strided_slice %391 {offsets = [26, 0], sizes = [2, 2], strides = [1, 1]} : vector<30x2xf32> to vector<2x2xf32>
    %406 = vector.extract_strided_slice %391 {offsets = [28, 0], sizes = [2, 2], strides = [1, 1]} : vector<30x2xf32> to vector<2x2xf32>
    %407 = arith.maximumf %392, %393 : vector<2x2xf32>
    %408 = arith.maximumf %394, %395 : vector<2x2xf32>
    %409 = arith.maximumf %396, %397 : vector<2x2xf32>
    %410 = arith.maximumf %398, %399 : vector<2x2xf32>
    %411 = arith.maximumf %400, %401 : vector<2x2xf32>
    %412 = arith.maximumf %402, %403 : vector<2x2xf32>
    %413 = arith.maximumf %404, %405 : vector<2x2xf32>
    %414 = arith.maximumf %407, %408 : vector<2x2xf32>
    %415 = arith.maximumf %409, %410 : vector<2x2xf32>
    %416 = arith.maximumf %411, %412 : vector<2x2xf32>
    %417 = arith.maximumf %413, %406 : vector<2x2xf32>
    %418 = arith.maximumf %414, %415 : vector<2x2xf32>
    %419 = arith.maximumf %416, %417 : vector<2x2xf32>
    %420 = arith.maximumf %418, %419 : vector<2x2xf32>
    %421 = vector.extract_strided_slice %388 {offsets = [0, 4], sizes = [28, 2], strides = [1, 1]} : vector<32x28xf32> to vector<28x2xf32>
    %422 = vector.extract_strided_slice %388 {offsets = [2, 6], sizes = [28, 2], strides = [1, 1]} : vector<32x28xf32> to vector<28x2xf32>
    %423 = vector.extract_strided_slice %388 {offsets = [4, 8], sizes = [28, 2], strides = [1, 1]} : vector<32x28xf32> to vector<28x2xf32>
    %424 = arith.addf %421, %422 : vector<28x2xf32>
    %425 = arith.addf %424, %423 : vector<28x2xf32>
    %426 = vector.extract_strided_slice %425 {offsets = [0, 0], sizes = [2, 2], strides = [1, 1]} : vector<28x2xf32> to vector<2x2xf32>
    %427 = vector.extract_strided_slice %425 {offsets = [2, 0], sizes = [2, 2], strides = [1, 1]} : vector<28x2xf32> to vector<2x2xf32>
    %428 = vector.extract_strided_slice %425 {offsets = [4, 0], sizes = [2, 2], strides = [1, 1]} : vector<28x2xf32> to vector<2x2xf32>
    %429 = vector.extract_strided_slice %425 {offsets = [6, 0], sizes = [2, 2], strides = [1, 1]} : vector<28x2xf32> to vector<2x2xf32>
    %430 = vector.extract_strided_slice %425 {offsets = [8, 0], sizes = [2, 2], strides = [1, 1]} : vector<28x2xf32> to vector<2x2xf32>
    %431 = vector.extract_strided_slice %425 {offsets = [10, 0], sizes = [2, 2], strides = [1, 1]} : vector<28x2xf32> to vector<2x2xf32>
    %432 = vector.extract_strided_slice %425 {offsets = [12, 0], sizes = [2, 2], strides = [1, 1]} : vector<28x2xf32> to vector<2x2xf32>
    %433 = vector.extract_strided_slice %425 {offsets = [14, 0], sizes = [2, 2], strides = [1, 1]} : vector<28x2xf32> to vector<2x2xf32>
    %434 = vector.extract_strided_slice %425 {offsets = [16, 0], sizes = [2, 2], strides = [1, 1]} : vector<28x2xf32> to vector<2x2xf32>
    %435 = vector.extract_strided_slice %425 {offsets = [18, 0], sizes = [2, 2], strides = [1, 1]} : vector<28x2xf32> to vector<2x2xf32>
    %436 = vector.extract_strided_slice %425 {offsets = [20, 0], sizes = [2, 2], strides = [1, 1]} : vector<28x2xf32> to vector<2x2xf32>
    %437 = vector.extract_strided_slice %425 {offsets = [22, 0], sizes = [2, 2], strides = [1, 1]} : vector<28x2xf32> to vector<2x2xf32>
    %438 = vector.extract_strided_slice %425 {offsets = [24, 0], sizes = [2, 2], strides = [1, 1]} : vector<28x2xf32> to vector<2x2xf32>
    %439 = vector.extract_strided_slice %425 {offsets = [26, 0], sizes = [2, 2], strides = [1, 1]} : vector<28x2xf32> to vector<2x2xf32>
    %440 = arith.maximumf %426, %427 : vector<2x2xf32>
    %441 = arith.maximumf %428, %429 : vector<2x2xf32>
    %442 = arith.maximumf %430, %431 : vector<2x2xf32>
    %443 = arith.maximumf %432, %433 : vector<2x2xf32>
    %444 = arith.maximumf %434, %435 : vector<2x2xf32>
    %445 = arith.maximumf %436, %437 : vector<2x2xf32>
    %446 = arith.maximumf %438, %439 : vector<2x2xf32>
    %447 = arith.maximumf %440, %441 : vector<2x2xf32>
    %448 = arith.maximumf %442, %443 : vector<2x2xf32>
    %449 = arith.maximumf %444, %445 : vector<2x2xf32>
    %450 = arith.maximumf %447, %448 : vector<2x2xf32>
    %451 = arith.maximumf %449, %446 : vector<2x2xf32>
    %452 = arith.maximumf %450, %451 : vector<2x2xf32>
    %453 = vector.extract_strided_slice %388 {offsets = [0, 10], sizes = [26, 2], strides = [1, 1]} : vector<32x28xf32> to vector<26x2xf32>
    %454 = vector.extract_strided_slice %388 {offsets = [2, 12], sizes = [26, 2], strides = [1, 1]} : vector<32x28xf32> to vector<26x2xf32>
    %455 = vector.extract_strided_slice %388 {offsets = [4, 14], sizes = [26, 2], strides = [1, 1]} : vector<32x28xf32> to vector<26x2xf32>
    %456 = vector.extract_strided_slice %388 {offsets = [6, 16], sizes = [26, 2], strides = [1, 1]} : vector<32x28xf32> to vector<26x2xf32>
    %457 = arith.addf %453, %454 : vector<26x2xf32>
    %458 = arith.addf %455, %456 : vector<26x2xf32>
    %459 = arith.addf %457, %458 : vector<26x2xf32>
    %460 = vector.extract_strided_slice %459 {offsets = [0, 0], sizes = [2, 2], strides = [1, 1]} : vector<26x2xf32> to vector<2x2xf32>
    %461 = vector.extract_strided_slice %459 {offsets = [2, 0], sizes = [2, 2], strides = [1, 1]} : vector<26x2xf32> to vector<2x2xf32>
    %462 = vector.extract_strided_slice %459 {offsets = [4, 0], sizes = [2, 2], strides = [1, 1]} : vector<26x2xf32> to vector<2x2xf32>
    %463 = vector.extract_strided_slice %459 {offsets = [6, 0], sizes = [2, 2], strides = [1, 1]} : vector<26x2xf32> to vector<2x2xf32>
    %464 = vector.extract_strided_slice %459 {offsets = [8, 0], sizes = [2, 2], strides = [1, 1]} : vector<26x2xf32> to vector<2x2xf32>
    %465 = vector.extract_strided_slice %459 {offsets = [10, 0], sizes = [2, 2], strides = [1, 1]} : vector<26x2xf32> to vector<2x2xf32>
    %466 = vector.extract_strided_slice %459 {offsets = [12, 0], sizes = [2, 2], strides = [1, 1]} : vector<26x2xf32> to vector<2x2xf32>
    %467 = vector.extract_strided_slice %459 {offsets = [14, 0], sizes = [2, 2], strides = [1, 1]} : vector<26x2xf32> to vector<2x2xf32>
    %468 = vector.extract_strided_slice %459 {offsets = [16, 0], sizes = [2, 2], strides = [1, 1]} : vector<26x2xf32> to vector<2x2xf32>
    %469 = vector.extract_strided_slice %459 {offsets = [18, 0], sizes = [2, 2], strides = [1, 1]} : vector<26x2xf32> to vector<2x2xf32>
    %470 = vector.extract_strided_slice %459 {offsets = [20, 0], sizes = [2, 2], strides = [1, 1]} : vector<26x2xf32> to vector<2x2xf32>
    %471 = vector.extract_strided_slice %459 {offsets = [22, 0], sizes = [2, 2], strides = [1, 1]} : vector<26x2xf32> to vector<2x2xf32>
    %472 = vector.extract_strided_slice %459 {offsets = [24, 0], sizes = [2, 2], strides = [1, 1]} : vector<26x2xf32> to vector<2x2xf32>
    %473 = arith.maximumf %460, %461 : vector<2x2xf32>
    %474 = arith.maximumf %462, %463 : vector<2x2xf32>
    %475 = arith.maximumf %464, %465 : vector<2x2xf32>
    %476 = arith.maximumf %466, %467 : vector<2x2xf32>
    %477 = arith.maximumf %468, %469 : vector<2x2xf32>
    %478 = arith.maximumf %470, %471 : vector<2x2xf32>
    %479 = arith.maximumf %473, %474 : vector<2x2xf32>
    %480 = arith.maximumf %475, %476 : vector<2x2xf32>
    %481 = arith.maximumf %477, %478 : vector<2x2xf32>
    %482 = arith.maximumf %479, %480 : vector<2x2xf32>
    %483 = arith.maximumf %481, %472 : vector<2x2xf32>
    %484 = arith.maximumf %482, %483 : vector<2x2xf32>
    %485 = vector.extract_strided_slice %388 {offsets = [0, 18], sizes = [24, 2], strides = [1, 1]} : vector<32x28xf32> to vector<24x2xf32>
    %486 = vector.extract_strided_slice %388 {offsets = [2, 20], sizes = [24, 2], strides = [1, 1]} : vector<32x28xf32> to vector<24x2xf32>
    %487 = vector.extract_strided_slice %388 {offsets = [4, 22], sizes = [24, 2], strides = [1, 1]} : vector<32x28xf32> to vector<24x2xf32>
    %488 = vector.extract_strided_slice %388 {offsets = [6, 24], sizes = [24, 2], strides = [1, 1]} : vector<32x28xf32> to vector<24x2xf32>
    %489 = vector.extract_strided_slice %388 {offsets = [8, 26], sizes = [24, 2], strides = [1, 1]} : vector<32x28xf32> to vector<24x2xf32>
    %490 = arith.addf %485, %486 : vector<24x2xf32>
    %491 = arith.addf %487, %488 : vector<24x2xf32>
    %492 = arith.addf %490, %491 : vector<24x2xf32>
    %493 = arith.addf %492, %489 : vector<24x2xf32>
    %494 = vector.extract_strided_slice %493 {offsets = [0, 0], sizes = [2, 2], strides = [1, 1]} : vector<24x2xf32> to vector<2x2xf32>
    %495 = vector.extract_strided_slice %493 {offsets = [2, 0], sizes = [2, 2], strides = [1, 1]} : vector<24x2xf32> to vector<2x2xf32>
    %496 = vector.extract_strided_slice %493 {offsets = [4, 0], sizes = [2, 2], strides = [1, 1]} : vector<24x2xf32> to vector<2x2xf32>
    %497 = vector.extract_strided_slice %493 {offsets = [6, 0], sizes = [2, 2], strides = [1, 1]} : vector<24x2xf32> to vector<2x2xf32>
    %498 = vector.extract_strided_slice %493 {offsets = [8, 0], sizes = [2, 2], strides = [1, 1]} : vector<24x2xf32> to vector<2x2xf32>
    %499 = vector.extract_strided_slice %493 {offsets = [10, 0], sizes = [2, 2], strides = [1, 1]} : vector<24x2xf32> to vector<2x2xf32>
    %500 = vector.extract_strided_slice %493 {offsets = [12, 0], sizes = [2, 2], strides = [1, 1]} : vector<24x2xf32> to vector<2x2xf32>
    %501 = vector.extract_strided_slice %493 {offsets = [14, 0], sizes = [2, 2], strides = [1, 1]} : vector<24x2xf32> to vector<2x2xf32>
    %502 = vector.extract_strided_slice %493 {offsets = [16, 0], sizes = [2, 2], strides = [1, 1]} : vector<24x2xf32> to vector<2x2xf32>
    %503 = vector.extract_strided_slice %493 {offsets = [18, 0], sizes = [2, 2], strides = [1, 1]} : vector<24x2xf32> to vector<2x2xf32>
    %504 = vector.extract_strided_slice %493 {offsets = [20, 0], sizes = [2, 2], strides = [1, 1]} : vector<24x2xf32> to vector<2x2xf32>
    %505 = vector.extract_strided_slice %493 {offsets = [22, 0], sizes = [2, 2], strides = [1, 1]} : vector<24x2xf32> to vector<2x2xf32>
    %506 = arith.maximumf %494, %495 : vector<2x2xf32>
    %507 = arith.maximumf %496, %497 : vector<2x2xf32>
    %508 = arith.maximumf %498, %499 : vector<2x2xf32>
    %509 = arith.maximumf %500, %501 : vector<2x2xf32>
    %510 = arith.maximumf %502, %503 : vector<2x2xf32>
    %511 = arith.maximumf %504, %505 : vector<2x2xf32>
    %512 = arith.maximumf %506, %507 : vector<2x2xf32>
    %513 = arith.maximumf %508, %509 : vector<2x2xf32>
    %514 = arith.maximumf %510, %511 : vector<2x2xf32>
    %515 = arith.maximumf %512, %513 : vector<2x2xf32>
    %516 = arith.maximumf %515, %514 : vector<2x2xf32>
    %517 = tpu.concatenate %420, %452, %484, %516 in 1 : vector<2x2xf32>, vector<2x2xf32>, vector<2x2xf32>, vector<2x2xf32> -> vector<2x8xf32>
    %518 = vector.broadcast %8 : vector<1x8xf32> to vector<2x8xf32>
    %519 = arith.addf %517, %518 : vector<2x8xf32>
    %cst_72 = arith.constant 0.000000e+00 : f32
    %520 = vector.broadcast %cst_72 : f32 to vector<2x8xf32>
    %521 = arith.maximumf %519, %520 : vector<2x8xf32>
    %cst_73 = arith.constant dense<0.000000e+00> : vector<2x4xf32>
    %522 = tpu.matmul %521, %5, %cst_73 {dimension_numbers = #tpu.dot_dimension_numbers<[1], [0], [0], [1], [0, 0, 1, 1], [], []>} : vector<2x8xf32>, vector<8x4xf32>, vector<2x4xf32> -> vector<2x4xf32>
    %523 = vector.broadcast %9 : vector<1x4xf32> to vector<2x4xf32>
    %524 = arith.addf %522, %523 : vector<2x4xf32>
    %cst_74 = arith.constant 0.000000e+00 : f32
    %525 = vector.broadcast %cst_74 : f32 to vector<2x4xf32>
    %526 = arith.maximumf %524, %525 : vector<2x4xf32>
    %cst_75 = arith.constant dense<0.000000e+00> : vector<2x3xf32>
    %527 = tpu.matmul %526, %6, %cst_75 {dimension_numbers = #tpu.dot_dimension_numbers<[1], [0], [0], [1], [0, 0, 1, 1], [], []>} : vector<2x4xf32>, vector<4x3xf32>, vector<2x3xf32> -> vector<2x3xf32>
    %528 = vector.broadcast %10 : vector<1x3xf32> to vector<2x3xf32>
    %529 = arith.addf %527, %528 : vector<2x3xf32>
    %c0_76 = arith.constant 0 : index
    %c0_77 = arith.constant 0 : index
    %530 = vector.load %arg3[%c0_76, %c0_77] : memref<2x3xf32, #tpu.memory_space<vmem>>, vector<2x3xf32>
    tpu.vector_store %arg3[%c0_76, %c0_77], %529 {strides = array<i32>} : memref<2x3xf32, #tpu.memory_space<vmem>>, vector<2x3xf32>,
    return
  }
}

</mosaic_0001>

<llo_original>
// kernel: lstm_cnn_pallas.1
$region0: #{lstm_cnn_pallas.1}
  #allocation0 [shape = 'u32[]', space=smem, size = 0x4, offset = 0x4, fixed_abs, tag = 'smem constant byte address 0x4 - core index']
  #allocation1 [shape = 'u32[144,128]{1,0:T(1,128)}', space=vmem, size = 0x12000, scoped, tag = 'internal scratch']
  %s0 = inlined_call_operand.vmem [shape: f32[32,10], index: 0, kind: input, shape index: {}]
  %s1 = inlined_call_operand.vmem [shape: f32[10,99], index: 1, kind: input, shape index: {}]
  %s2 = inlined_call_operand.vmem [shape: f32[1,47], index: 2, kind: input, shape index: {}]
  %s3 = inlined_call_operand.hbm [shape: f32[2,3], index: 3, kind: output, shape index: {}]
  %s4 = sld [smem:[#allocation0]]
  $region22: #{lstm_cnn_pallas.1} parent=0
    _
  %s6 = ssub.s32 1, %s4
  %s7 = scalar_select 0, %s6, %s4
  $region1: #{lstm_cnn_pallas.1} parent=0
    #allocation2 [shape = 'u8[1024]{0}', space=vmem, size = 0x400, scoped, tag = 'output window, operand 0, single buffered']
    #allocation3 [shape = 's32[1]{0}', space=sflag, size = 0x4, scoped, tag = 'scoped memory for lstm_cnn_pallas.1']
    %8 = vsyncpa [#allocation3], 0
    // Predicated region
    $region2: #{lstm_cnn_pallas.1} parent=1 // pred_check
      _
    $region3: #{lstm_cnn_pallas.1} parent=1 // pred_check_branch
      %10 = sbr.rel (0) target = $region5
    $region4: #{lstm_cnn_pallas.1} parent=1 // pred_region
      _
    $region5: #{lstm_cnn_pallas.1} parent=1 // pred_fallthru
      _
    // Predicated region
    $region6: #{lstm_cnn_pallas.1} parent=1 // pred_check
      _
    $region7: #{lstm_cnn_pallas.1} parent=1 // pred_check_branch
      %12 = sbr.rel (0) target = $region9
    $region8: #{lstm_cnn_pallas.1} parent=1 // pred_region
      _
    $region9: #{lstm_cnn_pallas.1} parent=1 // pred_fallthru
      _
    // Predicated region
    $region10: #{lstm_cnn_pallas.1} parent=1 // pred_check
      _
    $region11: #{lstm_cnn_pallas.1} parent=1 // pred_check_branch
      %14 = sbr.rel (0) target = $region13
    $region12: #{lstm_cnn_pallas.1} parent=1 // pred_region
      _
    $region13: #{lstm_cnn_pallas.1} parent=1 // pred_fallthru
      _
    %v15 = vld [vmem:[%s1] sm:$0xff]
    %v16 = vld [vmem:[%s1 + $0x8] sm:$0x3]
    %v17 = vld [vmem:[%s2] sm:$0x1]
    %v18 = vld [vmem:[%s0] sm:$0xff]
    %v19 = vld [vmem:[%s0 + $0x8] sm:$0xff]
    %v20 = vld [vmem:[%s0 + $0x10] sm:$0xff]
    %v21 = vld [vmem:[%s0 + $0x18] sm:$0xff]
    %v23 = vlaneseq
    %v24 = vshrl.u32 %v23, 7
    %v25 = vsub.s32 0, %v24
    %v26 = vrot.slane %v17, %v25
    %vm28 = vcmask 80896
    %v30 = vsel %vm28, %v18, 0
    %v33 = vsel %vm28, %v19, 0
    %v36 = vsel %vm28, %v20, 0
    %v39 = vsel %vm28, %v21, 0
    %vm41 = vcmask 1041408
    %v43 = vsel %vm41, %v16, 0
    %45 = vmatprep.subr.mxu0 0.0
    %46 = vmatpush1.msra.mxu0 %v15
    %47 = vmatprep.subr.mxu0 0.0
    %48 = vmatpush1.msra.mxu0 %v43
    %49 = vmatprep.subr.mxu0 0.0
    %50 = vmatpush1.msra.mxu0 0.0
    %51 = vmatprep.subr.mxu0 0.0
    %52 = vmatpush1.msra.mxu0 0.0
    %53 = vmatprep.subr.mxu0 0.0
    %54 = vmatpush1.msra.mxu0 0.0
    %55 = vmatprep.subr.mxu0 0.0
    %56 = vmatpush1.msra.mxu0 0.0
    %57 = vmatprep.subr.mxu0 0.0
    %58 = vmatpush1.msra.mxu0 0.0
    %59 = vmatprep.subr.mxu0 0.0
    %60 = vmatpush1.msra.mxu0 0.0
    %61 = vmatprep.subr.mxu0 0.0
    %62 = vmatpush1.msra.mxu0 0.0
    %63 = vmatprep.subr.mxu0 0.0
    %64 = vmatpush1.msra.mxu0 0.0
    %65 = vmatprep.subr.mxu0 0.0
    %66 = vmatpush1.msra.mxu0 0.0
    %67 = vmatprep.subr.mxu0 0.0
    %68 = vmatpush1.msra.mxu0 0.0
    %69 = vmatprep.subr.mxu0 0.0
    %70 = vmatpush1.msra.mxu0 0.0
    %71 = vmatprep.subr.mxu0 0.0
    %72 = vmatpush1.msra.mxu0 0.0
    %73 = vmatprep.subr.mxu0 0.0
    %74 = vmatpush1.msra.mxu0 0.0
    %75 = vmatprep.subr.mxu0 0.0
    %76 = vmatpush1.msra.mxu0 0.0
    %77 = vmatprep.subr.mxu0 0.0
    %78 = vmatpush1.msra.mxu0 0.0
    %79 = vmatprep.subr.mxu0 0.0
    %80 = vmatpush1.msra.mxu0 0.0
    %81 = vmatprep.subr.mxu0 0.0
    %82 = vmatpush1.msra.mxu0 0.0
    %83 = vmatprep.subr.mxu0 0.0
    %84 = vmatpush1.msra.mxu0 0.0
    %85 = vmatprep.subr.mxu0 0.0
    %86 = vmatpush1.msra.mxu0 0.0
    %87 = vmatprep.subr.mxu0 0.0
    %88 = vmatpush1.msra.mxu0 0.0
    %89 = vmatprep.subr.mxu0 0.0
    %90 = vmatpush1.msra.mxu0 0.0
    %91 = vmatprep.subr.mxu0 0.0
    %92 = vmatpush1.msra.mxu0 0.0
    %93 = vmatprep.subr.mxu0 0.0
    %94 = vmatpush1.msra.mxu0 0.0
    %95 = vmatprep.subr.mxu0 0.0
    %96 = vmatpush1.msra.mxu0 0.0
    %97 = vmatprep.subr.mxu0 0.0
    %98 = vmatpush1.msra.mxu0 0.0
    %99 = vmatprep.subr.mxu0 0.0
    %100 = vmatpush1.msra.mxu0 0.0
    %101 = vmatprep.subr.mxu0 0.0
    %102 = vmatpush1.msra.mxu0 0.0
    %103 = vmatprep.subr.mxu0 0.0
    %104 = vmatpush1.msra.mxu0 0.0
    %105 = vmatprep.subr.mxu0 0.0
    %106 = vmatpush1.msra.mxu0 0.0
    %107 = vmatprep.subr.mxu0 0.0
    %108 = vmatpush1.msra.mxu0 0.0
    %109 = vmatprep.mubr.f32.mxu0 0.0
    %110 = vmatmul.mubr.f32.gmra.mrb[0].mxu0 %v30
    %v111 = vpop.f32.mrb[0].mxu0
    %v112 = vadd.f32 %v26, %v111
    %v113 = vpop.f32.mrb[0].mxu0
    %114 = vmatprep.mubr.f32.mxu0 0.0
    %115 = vmatmul.mubr.f32.gmra.mrb[0].mxu0 %v33
    %v116 = vpop.f32.mrb[0].mxu0
    %v117 = vadd.f32 %v26, %v116
    %v118 = vpop.f32.mrb[0].mxu0
    %119 = vmatprep.mubr.f32.mxu0 0.0
    %120 = vmatmul.mubr.f32.gmra.mrb[0].mxu0 %v36
    %v121 = vpop.f32.mrb[0].mxu0
    %v122 = vadd.f32 %v26, %v121
    %v123 = vpop.f32.mrb[0].mxu0
    %124 = vmatprep.mubr.f32.mxu0 0.0
    %125 = vmatmul.mubr.f32.gmra.mrb[0].mxu0 %v39
    %v126 = vpop.f32.mrb[0].mxu0
    %v127 = vadd.f32 %v26, %v126
    %v128 = vpop.f32.mrb[0].mxu0
    %129 = vdwg.mxu0
    %131 = vrot.lane.b32.xlu0 %v15, 96
    %v132 = vpop.permute.xlu0 %131
    %vm134 = vcmask 64512
    %v136 = vsel %vm134, 0.0, 0
    %138 = vmatprep.subr.mxu0 0.0
    %139 = vmatpush1.msra.mxu0 %v132
    %140 = vmatprep.subr.mxu0 0.0
    %141 = vmatpush1.msra.mxu0 0.0
    %142 = vmatprep.subr.mxu0 0.0
    %143 = vmatpush1.msra.mxu0 0.0
    %144 = vmatprep.subr.mxu0 0.0
    %145 = vmatpush1.msra.mxu0 0.0
    %146 = vmatprep.subr.mxu0 0.0
    %147 = vmatpush1.msra.mxu0 0.0
    %148 = vmatprep.subr.mxu0 0.0
    %149 = vmatpush1.msra.mxu0 0.0
    %150 = vmatprep.subr.mxu0 0.0
    %151 = vmatpush1.msra.mxu0 0.0
    %152 = vmatprep.subr.mxu0 0.0
    %153 = vmatpush1.msra.mxu0 0.0
    %154 = vmatprep.subr.mxu0 0.0
    %155 = vmatpush1.msra.mxu0 0.0
    %156 = vmatprep.subr.mxu0 0.0
    %157 = vmatpush1.msra.mxu0 0.0
    %158 = vmatprep.subr.mxu0 0.0
    %159 = vmatpush1.msra.mxu0 0.0
    %160 = vmatprep.subr.mxu0 0.0
    %161 = vmatpush1.msra.mxu0 0.0
    %162 = vmatprep.subr.mxu0 0.0
    %163 = vmatpush1.msra.mxu0 0.0
    %164 = vmatprep.subr.mxu0 0.0
    %165 = vmatpush1.msra.mxu0 0.0
    %166 = vmatprep.subr.mxu0 0.0
    %167 = vmatpush1.msra.mxu0 0.0
    %168 = vmatprep.subr.mxu0 0.0
    %169 = vmatpush1.msra.mxu0 0.0
    %170 = vmatprep.subr.mxu0 0.0
    %171 = vmatpush1.msra.mxu0 0.0
    %172 = vmatprep.subr.mxu0 0.0
    %173 = vmatpush1.msra.mxu0 0.0
    %174 = vmatprep.subr.mxu0 0.0
    %175 = vmatpush1.msra.mxu0 0.0
    %176 = vmatprep.subr.mxu0 0.0
    %177 = vmatpush1.msra.mxu0 0.0
    %178 = vmatprep.subr.mxu0 0.0
    %179 = vmatpush1.msra.mxu0 0.0
    %180 = vmatprep.subr.mxu0 0.0
    %181 = vmatpush1.msra.mxu0 0.0
    %182 = vmatprep.subr.mxu0 0.0
    %183 = vmatpush1.msra.mxu0 0.0
    %184 = vmatprep.subr.mxu0 0.0
    %185 = vmatpush1.msra.mxu0 0.0
    %186 = vmatprep.subr.mxu0 0.0
    %187 = vmatpush1.msra.mxu0 0.0
    %188 = vmatprep.subr.mxu0 0.0
    %189 = vmatpush1.msra.mxu0 0.0
    %190 = vmatprep.subr.mxu0 0.0
    %191 = vmatpush1.msra.mxu0 0.0
    %192 = vmatprep.subr.mxu0 0.0
    %193 = vmatpush1.msra.mxu0 0.0
    %194 = vmatprep.subr.mxu0 0.0
    %195 = vmatpush1.msra.mxu0 0.0
    %196 = vmatprep.subr.mxu0 0.0
    %197 = vmatpush1.msra.mxu0 0.0
    %198 = vmatprep.subr.mxu0 0.0
    %199 = vmatpush1.msra.mxu0 0.0
    %200 = vmatprep.subr.mxu0 0.0
    %201 = vmatpush1.msra.mxu0 0.0
    %202 = vmatprep.mubr.f32.mxu0 0.0
    %203 = vmatmul.mubr.f32.gmra.mrb[0].mxu0 %v136
    %v204 = vpop.f32.mrb[0].mxu0
    %v205 = vadd.f32 0.0, %v204
    %v206 = vpop.f32.mrb[0].mxu0
    %207 = vdwg.mxu0
    %v208 = vadd.f32 %v112, %v205
    %v209 = vxor.u32 %v208, 2147483648
    %v210 = vmul.f32 %v209, 1.442695
    %v211 = vpow.pop %v210
    %v212 = vadd.f32 %v211, 1.0
    %v213 = vrcp.pop %v212
    %v214 = vmul.f32 1.0, %v213
    %v215 = vmul.f32 %v214, 2.0
    %v216 = vsub.f32 %v215, 1.0
    %v217 = vmul.f32 %v214, 0.0
    %219 = vrot.lane.b32.xlu0 %v216, 112
    %v220 = vpop.permute.xlu0 %219
    %v222 = vmul.f32 %v214, %v220
    %224 = vrot.lane.b32.xlu0 %v222, 8
    %v225 = vpop.permute.xlu0 %224
    %v227 = vadd.f32 %v217, %v225
    %v228 = vtanh.pop %v227
    %230 = vrot.lane.b32.xlu0 %v228, 16
    %v231 = vpop.permute.xlu0 %230
    %v233 = vmul.f32 %v214, %v231
    %235 = vrot.lane.b32.xlu0 %v233, 104
    %v236 = vpop.permute.xlu0 %235
    %v237 = vsel %vm134, %v236, 0
    %239 = vmatprep.subr.mxu0 0.0
    %240 = vmatpush1.msra.mxu0 %v132
    %241 = vmatprep.subr.mxu0 0.0
    %242 = vmatpush1.msra.mxu0 0.0
    %243 = vmatprep.subr.mxu0 0.0
    %244 = vmatpush1.msra.mxu0 0.0
    %245 = vmatprep.subr.mxu0 0.0
    %246 = vmatpush1.msra.mxu0 0.0
    %247 = vmatprep.subr.mxu0 0.0
    %248 = vmatpush1.msra.mxu0 0.0
    %249 = vmatprep.subr.mxu0 0.0
    %250 = vmatpush1.msra.mxu0 0.0
    %251 = vmatprep.subr.mxu0 0.0
    %252 = vmatpush1.msra.mxu0 0.0
    %253 = vmatprep.subr.mxu0 0.0
    %254 = vmatpush1.msra.mxu0 0.0
    %255 = vmatprep.subr.mxu0 0.0
    %256 = vmatpush1.msra.mxu0 0.0
    %257 = vmatprep.subr.mxu0 0.0
    %258 = vmatpush1.msra.mxu0 0.0
    %259 = vmatprep.subr.mxu0 0.0
    %260 = vmatpush1.msra.mxu0 0.0
    %261 = vmatprep.subr.mxu0 0.0
    %262 = vmatpush1.msra.mxu0 0.0
    %263 = vmatprep.subr.mxu0 0.0
    %264 = vmatpush1.msra.mxu0 0.0
    %265 = vmatprep.subr.mxu0 0.0
    %266 = vmatpush1.msra.mxu0 0.0
    %267 = vmatprep.subr.mxu0 0.0
    %268 = vmatpush1.msra.mxu0 0.0
    %269 = vmatprep.subr.mxu0 0.0
    %270 = vmatpush1.msra.mxu0 0.0
    %271 = vmatprep.subr.mxu0 0.0
    %272 = vmatpush1.msra.mxu0 0.0
    %273 = vmatprep.subr.mxu0 0.0
    %274 = vmatpush1.msra.mxu0 0.0
    %275 = vmatprep.subr.mxu0 0.0
    %276 = vmatpush1.msra.mxu0 0.0
    %277 = vmatprep.subr.mxu0 0.0
    %278 = vmatpush1.msra.mxu0 0.0
    %279 = vmatprep.subr.mxu0 0.0
    %280 = vmatpush1.msra.mxu0 0.0
    %281 = vmatprep.subr.mxu0 0.0
    %282 = vmatpush1.msra.mxu0 0.0
    %283 = vmatprep.subr.mxu0 0.0
    %284 = vmatpush1.msra.mxu0 0.0
    %285 = vmatprep.subr.mxu0 0.0
    %286 = vmatpush1.msra.mxu0 0.0
    %287 = vmatprep.subr.mxu0 0.0
    %288 = vmatpush1.msra.mxu0 0.0
    %289 = vmatprep.subr.mxu0 0.0
    %290 = vmatpush1.msra.mxu0 0.0
    %291 = vmatprep.subr.mxu0 0.0
    %292 = vmatpush1.msra.mxu0 0.0
    %293 = vmatprep.subr.mxu0 0.0
    %294 = vmatpush1.msra.mxu0 0.0
    %295 = vmatprep.subr.mxu0 0.0
    %296 = vmatpush1.msra.mxu0 0.0
    %297 = vmatprep.subr.mxu0 0.0
    %298 = vmatpush1.msra.mxu0 0.0
    %299 = vmatprep.subr.mxu0 0.0
    %300 = vmatpush1.msra.mxu0 0.0
    %301 = vmatprep.subr.mxu0 0.0
    %302 = vmatpush1.msra.mxu0 0.0
    %303 = vmatprep.mubr.f32.mxu0 0.0
    %304 = vmatmul.mubr.f32.gmra.mrb[0].mxu0 %v237
    %v305 = vpop.f32.mrb[0].mxu0
    %v306 = vadd.f32 0.0, %v305
    %v307 = vpop.f32.mrb[0].mxu0
    %308 = vdwg.mxu0
    %v310 = vrot.slane %v306, 6
    %v312 = vadd.f32 %v112, %v310
    %v313 = vxor.u32 %v312, 2147483648
    %v314 = vmul.f32 %v313, 1.442695
    %v315 = vpow.pop %v314
    %v316 = vadd.f32 %v315, 1.0
    %v317 = vrcp.pop %v316
    %v318 = vmul.f32 1.0, %v317
    %v319 = vmul.f32 %v318, 2.0
    %v320 = vsub.f32 %v319, 1.0
    %v322 = vrot.slane %v227, 6
    %v324 = vmul.f32 %v318, %v322
    %326 = vrot.lane.b32.xlu0 %v320, 112
    %v327 = vpop.permute.xlu0 %326
    %v329 = vmul.f32 %v318, %v327
    %331 = vrot.lane.b32.xlu0 %v329, 8
    %v332 = vpop.permute.xlu0 %331
    %v334 = vadd.f32 %v324, %v332
    %v335 = vtanh.pop %v334
    %337 = vrot.lane.b32.xlu0 %v335, 16
    %v338 = vpop.permute.xlu0 %337
    %v340 = vmul.f32 %v318, %v338
    %v342 = vrot.slane %v340, 2
    %343 = vrot.lane.b32.xlu0 %v342, 104
    %v344 = vpop.permute.xlu0 %343
    %v345 = vsel %vm134, %v344, 0
    %347 = vmatprep.subr.mxu0 0.0
    %348 = vmatpush1.msra.mxu0 %v132
    %349 = vmatprep.subr.mxu0 0.0
    %350 = vmatpush1.msra.mxu0 0.0
    %351 = vmatprep.subr.mxu0 0.0
    %352 = vmatpush1.msra.mxu0 0.0
    %353 = vmatprep.subr.mxu0 0.0
    %354 = vmatpush1.msra.mxu0 0.0
    %355 = vmatprep.subr.mxu0 0.0
    %356 = vmatpush1.msra.mxu0 0.0
    %357 = vmatprep.subr.mxu0 0.0
    %358 = vmatpush1.msra.mxu0 0.0
    %359 = vmatprep.subr.mxu0 0.0
    %360 = vmatpush1.msra.mxu0 0.0
    %361 = vmatprep.subr.mxu0 0.0
    %362 = vmatpush1.msra.mxu0 0.0
    %363 = vmatprep.subr.mxu0 0.0
    %364 = vmatpush1.msra.mxu0 0.0
    %365 = vmatprep.subr.mxu0 0.0
    %366 = vmatpush1.msra.mxu0 0.0
    %367 = vmatprep.subr.mxu0 0.0
    %368 = vmatpush1.msra.mxu0 0.0
    %369 = vmatprep.subr.mxu0 0.0
    %370 = vmatpush1.msra.mxu0 0.0
    %371 = vmatprep.subr.mxu0 0.0
    %372 = vmatpush1.msra.mxu0 0.0
    %373 = vmatprep.subr.mxu0 0.0
    %374 = vmatpush1.msra.mxu0 0.0
    %375 = vmatprep.subr.mxu0 0.0
    %376 = vmatpush1.msra.mxu0 0.0
    %377 = vmatprep.subr.mxu0 0.0
    %378 = vmatpush1.msra.mxu0 0.0
    %379 = vmatprep.subr.mxu0 0.0
    %380 = vmatpush1.msra.mxu0 0.0
    %381 = vmatprep.subr.mxu0 0.0
    %382 = vmatpush1.msra.mxu0 0.0
    %383 = vmatprep.subr.mxu0 0.0
    %384 = vmatpush1.msra.mxu0 0.0
    %385 = vmatprep.subr.mxu0 0.0
    %386 = vmatpush1.msra.mxu0 0.0
    %387 = vmatprep.subr.mxu0 0.0
    %388 = vmatpush1.msra.mxu0 0.0
    %389 = vmatprep.subr.mxu0 0.0
    %390 = vmatpush1.msra.mxu0 0.0
    %391 = vmatprep.subr.mxu0 0.0
    %392 = vmatpush1.msra.mxu0 0.0
    %393 = vmatprep.subr.mxu0 0.0
    %394 = vmatpush1.msra.mxu0 0.0
    %395 = vmatprep.subr.mxu0 0.0
    %396 = vmatpush1.msra.mxu0 0.0
    %397 = vmatprep.subr.mxu0 0.0
    %398 = vmatpush1.msra.mxu0 0.0
    %399 = vmatprep.subr.mxu0 0.0
    %400 = vmatpush1.msra.mxu0 0.0
    %401 = vmatprep.subr.mxu0 0.0
    %402 = vmatpush1.msra.mxu0 0.0
    %403 = vmatprep.subr.mxu0 0.0
    %404 = vmatpush1.msra.mxu0 0.0
    %405 = vmatprep.subr.mxu0 0.0
    %406 = vmatpush1.msra.mxu0 0.0
    %407 = vmatprep.subr.mxu0 0.0
    %408 = vmatpush1.msra.mxu0 0.0
    %409 = vmatprep.subr.mxu0 0.0
    %410 = vmatpush1.msra.mxu0 0.0
    %411 = vmatprep.mubr.f32.mxu0 0.0
    %412 = vmatmul.mubr.f32.gmra.mrb[0].mxu0 %v345
    %v413 = vpop.f32.mrb[0].mxu0
    %v414 = vadd.f32 0.0, %v413
    %v415 = vpop.f32.mrb[0].mxu0
    %416 = vdwg.mxu0
    %v418 = vrot.slane %v414, 4
    %v420 = vadd.f32 %v112, %v418
    %v421 = vxor.u32 %v420, 2147483648
    %v422 = vmul.f32 %v421, 1.442695
    %v423 = vpow.pop %v422
    %v424 = vadd.f32 %v423, 1.0
    %v425 = vrcp.pop %v424
    %v426 = vmul.f32 1.0, %v425
    %v427 = vmul.f32 %v426, 2.0
    %v428 = vsub.f32 %v427, 1.0
    %v430 = vrot.slane %v334, 6
    %v432 = vmul.f32 %v426, %v430
    %434 = vrot.lane.b32.xlu0 %v428, 112
    %v435 = vpop.permute.xlu0 %434
    %v437 = vmul.f32 %v426, %v435
    %439 = vrot.lane.b32.xlu0 %v437, 8
    %v440 = vpop.permute.xlu0 %439
    %v442 = vadd.f32 %v432, %v440
    %v443 = vtanh.pop %v442
    %445 = vrot.lane.b32.xlu0 %v443, 16
    %v446 = vpop.permute.xlu0 %445
    %v448 = vmul.f32 %v426, %v446
    %v450 = vrot.slane %v448, 4
    %451 = vrot.lane.b32.xlu0 %v450, 104
    %v452 = vpop.permute.xlu0 %451
    %v453 = vsel %vm134, %v452, 0
    %455 = vmatprep.subr.mxu0 0.0
    %456 = vmatpush1.msra.mxu0 %v132
    %457 = vmatprep.subr.mxu0 0.0
    %458 = vmatpush1.msra.mxu0 0.0
    %459 = vmatprep.subr.mxu0 0.0
    %460 = vmatpush1.msra.mxu0 0.0
    %461 = vmatprep.subr.mxu0 0.0
    %462 = vmatpush1.msra.mxu0 0.0
    %463 = vmatprep.subr.mxu0 0.0
    %464 = vmatpush1.msra.mxu0 0.0
    %465 = vmatprep.subr.mxu0 0.0
    %466 = vmatpush1.msra.mxu0 0.0
    %467 = vmatprep.subr.mxu0 0.0
    %468 = vmatpush1.msra.mxu0 0.0
    %469 = vmatprep.subr.mxu0 0.0
    %470 = vmatpush1.msra.mxu0 0.0
    %471 = vmatprep.subr.mxu0 0.0
    %472 = vmatpush1.msra.mxu0 0.0
    %473 = vmatprep.subr.mxu0 0.0
    %474 = vmatpush1.msra.mxu0 0.0
    %475 = vmatprep.subr.mxu0 0.0
    %476 = vmatpush1.msra.mxu0 0.0
    %477 = vmatprep.subr.mxu0 0.0
    %478 = vmatpush1.msra.mxu0 0.0
    %479 = vmatprep.subr.mxu0 0.0
    %480 = vmatpush1.msra.mxu0 0.0
    %481 = vmatprep.subr.mxu0 0.0
    %482 = vmatpush1.msra.mxu0 0.0
    %483 = vmatprep.subr.mxu0 0.0
    %484 = vmatpush1.msra.mxu0 0.0
    %485 = vmatprep.subr.mxu0 0.0
    %486 = vmatpush1.msra.mxu0 0.0
    %487 = vmatprep.subr.mxu0 0.0
    %488 = vmatpush1.msra.mxu0 0.0
    %489 = vmatprep.subr.mxu0 0.0
    %490 = vmatpush1.msra.mxu0 0.0
    %491 = vmatprep.subr.mxu0 0.0
    %492 = vmatpush1.msra.mxu0 0.0
    %493 = vmatprep.subr.mxu0 0.0
    %494 = vmatpush1.msra.mxu0 0.0
    %495 = vmatprep.subr.mxu0 0.0
    %496 = vmatpush1.msra.mxu0 0.0
    %497 = vmatprep.subr.mxu0 0.0
    %498 = vmatpush1.msra.mxu0 0.0
    %499 = vmatprep.subr.mxu0 0.0
    %500 = vmatpush1.msra.mxu0 0.0
    %501 = vmatprep.subr.mxu0 0.0
    %502 = vmatpush1.msra.mxu0 0.0
    %503 = vmatprep.subr.mxu0 0.0
    %504 = vmatpush1.msra.mxu0 0.0
    %505 = vmatprep.subr.mxu0 0.0
    %506 = vmatpush1.msra.mxu0 0.0
    %507 = vmatprep.subr.mxu0 0.0
    %508 = vmatpush1.msra.mxu0 0.0
    %509 = vmatprep.subr.mxu0 0.0
    %510 = vmatpush1.msra.mxu0 0.0
    %511 = vmatprep.subr.mxu0 0.0
    %512 = vmatpush1.msra.mxu0 0.0
    %513 = vmatprep.subr.mxu0 0.0
    %514 = vmatpush1.msra.mxu0 0.0
    %515 = vmatprep.subr.mxu0 0.0
    %516 = vmatpush1.msra.mxu0 0.0
    %517 = vmatprep.subr.mxu0 0.0
    %518 = vmatpush1.msra.mxu0 0.0
    %519 = vmatprep.mubr.f32.mxu0 0.0
    %520 = vmatmul.mubr.f32.gmra.mrb[0].mxu0 %v453
    %v521 = vpop.f32.mrb[0].mxu0
    %v522 = vadd.f32 0.0, %v521
    %v523 = vpop.f32.mrb[0].mxu0
    %524 = vdwg.mxu0
    %v526 = vrot.slane %v522, 2
    %v528 = vadd.f32 %v112, %v526
    %v529 = vxor.u32 %v528, 2147483648
    %v530 = vmul.f32 %v529, 1.442695
    %v531 = vpow.pop %v530
    %v532 = vadd.f32 %v531, 1.0
    %v533 = vrcp.pop %v532
    %v534 = vmul.f32 1.0, %v533
    %v535 = vmul.f32 %v534, 2.0
    %v536 = vsub.f32 %v535, 1.0
    %v538 = vrot.slane %v442, 6
    %v540 = vmul.f32 %v534, %v538
    %542 = vrot.lane.b32.xlu0 %v536, 112
    %v543 = vpop.permute.xlu0 %542
    %v545 = vmul.f32 %v534, %v543
    %547 = vrot.lane.b32.xlu0 %v545, 8
    %v548 = vpop.permute.xlu0 %547
    %v550 = vadd.f32 %v540, %v548
    %v551 = vtanh.pop %v550
    %553 = vrot.lane.b32.xlu0 %v551, 16
    %v554 = vpop.permute.xlu0 %553
    %v556 = vmul.f32 %v534, %v554
    %v558 = vrot.slane %v556, 6
    %559 = vrot.lane.b32.xlu0 %v558, 104
    %v560 = vpop.permute.xlu0 %559
    %v561 = vsel %vm134, %v560, 0
    %563 = vmatprep.subr.mxu0 0.0
    %564 = vmatpush1.msra.mxu0 %v132
    %565 = vmatprep.subr.mxu0 0.0
    %566 = vmatpush1.msra.mxu0 0.0
    %567 = vmatprep.subr.mxu0 0.0
    %568 = vmatpush1.msra.mxu0 0.0
    %569 = vmatprep.subr.mxu0 0.0
    %570 = vmatpush1.msra.mxu0 0.0
    %571 = vmatprep.subr.mxu0 0.0
    %572 = vmatpush1.msra.mxu0 0.0
    %573 = vmatprep.subr.mxu0 0.0
    %574 = vmatpush1.msra.mxu0 0.0
    %575 = vmatprep.subr.mxu0 0.0
    %576 = vmatpush1.msra.mxu0 0.0
    %577 = vmatprep.subr.mxu0 0.0
    %578 = vmatpush1.msra.mxu0 0.0
    %579 = vmatprep.subr.mxu0 0.0
    %580 = vmatpush1.msra.mxu0 0.0
    %581 = vmatprep.subr.mxu0 0.0
    %582 = vmatpush1.msra.mxu0 0.0
    %583 = vmatprep.subr.mxu0 0.0
    %584 = vmatpush1.msra.mxu0 0.0
    %585 = vmatprep.subr.mxu0 0.0
    %586 = vmatpush1.msra.mxu0 0.0
    %587 = vmatprep.subr.mxu0 0.0
    %588 = vmatpush1.msra.mxu0 0.0
    %589 = vmatprep.subr.mxu0 0.0
    %590 = vmatpush1.msra.mxu0 0.0
    %591 = vmatprep.subr.mxu0 0.0
    %592 = vmatpush1.msra.mxu0 0.0
    %593 = vmatprep.subr.mxu0 0.0
    %594 = vmatpush1.msra.mxu0 0.0
    %595 = vmatprep.subr.mxu0 0.0
    %596 = vmatpush1.msra.mxu0 0.0
    %597 = vmatprep.subr.mxu0 0.0
    %598 = vmatpush1.msra.mxu0 0.0
    %599 = vmatprep.subr.mxu0 0.0
    %600 = vmatpush1.msra.mxu0 0.0
    %601 = vmatprep.subr.mxu0 0.0
    %602 = vmatpush1.msra.mxu0 0.0
    %603 = vmatprep.subr.mxu0 0.0
    %604 = vmatpush1.msra.mxu0 0.0
    %605 = vmatprep.subr.mxu0 0.0
    %606 = vmatpush1.msra.mxu0 0.0
    %607 = vmatprep.subr.mxu0 0.0
    %608 = vmatpush1.msra.mxu0 0.0
    %609 = vmatprep.subr.mxu0 0.0
    %610 = vmatpush1.msra.mxu0 0.0
    %611 = vmatprep.subr.mxu0 0.0
    %612 = vmatpush1.msra.mxu0 0.0
    %613 = vmatprep.subr.mxu0 0.0
    %614 = vmatpush1.msra.mxu0 0.0
    %615 = vmatprep.subr.mxu0 0.0
    %616 = vmatpush1.msra.mxu0 0.0
    %617 = vmatprep.subr.mxu0 0.0
    %618 = vmatpush1.msra.mxu0 0.0
    %619 = vmatprep.subr.mxu0 0.0
    %620 = vmatpush1.msra.mxu0 0.0
    %621 = vmatprep.subr.mxu0 0.0
    %622 = vmatpush1.msra.mxu0 0.0
    %623 = vmatprep.subr.mxu0 0.0
    %624 = vmatpush1.msra.mxu0 0.0
    %625 = vmatprep.subr.mxu0 0.0
    %626 = vmatpush1.msra.mxu0 0.0
    %627 = vmatprep.mubr.f32.mxu0 0.0
    %628 = vmatmul.mubr.f32.gmra.mrb[0].mxu0 %v561
    %v629 = vpop.f32.mrb[0].mxu0
    %v630 = vadd.f32 0.0, %v629
    %v631 = vpop.f32.mrb[0].mxu0
    %632 = vdwg.mxu0
    %v633 = vadd.f32 %v117, %v630
    %v634 = vxor.u32 %v633, 2147483648
    %v635 = vmul.f32 %v634, 1.442695
    %v636 = vpow.pop %v635
    %v637 = vadd.f32 %v636, 1.0
    %v638 = vrcp.pop %v637
    %v639 = vmul.f32 1.0, %v638
    %v640 = vmul.f32 %v639, 2.0
    %v641 = vsub.f32 %v640, 1.0
    %v643 = vrot.slane %v550, 6
    %v645 = vmul.f32 %v639, %v643
    %647 = vrot.lane.b32.xlu0 %v641, 112
    %v648 = vpop.permute.xlu0 %647
    %v650 = vmul.f32 %v639, %v648
    %652 = vrot.lane.b32.xlu0 %v650, 8
    %v653 = vpop.permute.xlu0 %652
    %v655 = vadd.f32 %v645, %v653
    %v656 = vtanh.pop %v655
    %658 = vrot.lane.b32.xlu0 %v656, 16
    %v659 = vpop.permute.xlu0 %658
    %v661 = vmul.f32 %v639, %v659
    %663 = vrot.lane.b32.xlu0 %v661, 104
    %v664 = vpop.permute.xlu0 %663
    %v665 = vsel %vm134, %v664, 0
    %667 = vmatprep.subr.mxu0 0.0
    %668 = vmatpush1.msra.mxu0 %v132
    %669 = vmatprep.subr.mxu0 0.0
    %670 = vmatpush1.msra.mxu0 0.0
    %671 = vmatprep.subr.mxu0 0.0
    %672 = vmatpush1.msra.mxu0 0.0
    %673 = vmatprep.subr.mxu0 0.0
    %674 = vmatpush1.msra.mxu0 0.0
    %675 = vmatprep.subr.mxu0 0.0
    %676 = vmatpush1.msra.mxu0 0.0
    %677 = vmatprep.subr.mxu0 0.0
    %678 = vmatpush1.msra.mxu0 0.0
    %679 = vmatprep.subr.mxu0 0.0
    %680 = vmatpush1.msra.mxu0 0.0
    %681 = vmatprep.subr.mxu0 0.0
    %682 = vmatpush1.msra.mxu0 0.0
    %683 = vmatprep.subr.mxu0 0.0
    %684 = vmatpush1.msra.mxu0 0.0
    %685 = vmatprep.subr.mxu0 0.0
    %686 = vmatpush1.msra.mxu0 0.0
    %687 = vmatprep.subr.mxu0 0.0
    %688 = vmatpush1.msra.mxu0 0.0
    %689 = vmatprep.subr.mxu0 0.0
    %690 = vmatpush1.msra.mxu0 0.0
    %691 = vmatprep.subr.mxu0 0.0
    %692 = vmatpush1.msra.mxu0 0.0
    %693 = vmatprep.subr.mxu0 0.0
    %694 = vmatpush1.msra.mxu0 0.0
    %695 = vmatprep.subr.mxu0 0.0
    %696 = vmatpush1.msra.mxu0 0.0
    %697 = vmatprep.subr.mxu0 0.0
    %698 = vmatpush1.msra.mxu0 0.0
    %699 = vmatprep.subr.mxu0 0.0
    %700 = vmatpush1.msra.mxu0 0.0
    %701 = vmatprep.subr.mxu0 0.0
    %702 = vmatpush1.msra.mxu0 0.0
    %703 = vmatprep.subr.mxu0 0.0
    %704 = vmatpush1.msra.mxu0 0.0
    %705 = vmatprep.subr.mxu0 0.0
    %706 = vmatpush1.msra.mxu0 0.0
    %707 = vmatprep.subr.mxu0 0.0
    %708 = vmatpush1.msra.mxu0 0.0
    %709 = vmatprep.subr.mxu0 0.0
    %710 = vmatpush1.msra.mxu0 0.0
    %711 = vmatprep.subr.mxu0 0.0
    %712 = vmatpush1.msra.mxu0 0.0
    %713 = vmatprep.subr.mxu0 0.0
    %714 = vmatpush1.msra.mxu0 0.0
    %715 = vmatprep.subr.mxu0 0.0
    %716 = vmatpush1.msra.mxu0 0.0
    %717 = vmatprep.subr.mxu0 0.0
    %718 = vmatpush1.msra.mxu0 0.0
    %719 = vmatprep.subr.mxu0 0.0
    %720 = vmatpush1.msra.mxu0 0.0
    %721 = vmatprep.subr.mxu0 0.0
    %722 = vmatpush1.msra.mxu0 0.0
    %723 = vmatprep.subr.mxu0 0.0
    %724 = vmatpush1.msra.mxu0 0.0
    %725 = vmatprep.subr.mxu0 0.0
    %726 = vmatpush1.msra.mxu0 0.0
    %727 = vmatprep.subr.mxu0 0.0
    %728 = vmatpush1.msra.mxu0 0.0
    %729 = vmatprep.subr.mxu0 0.0
    %730 = vmatpush1.msra.mxu0 0.0
    %731 = vmatprep.mubr.f32.mxu0 0.0
    %732 = vmatmul.mubr.f32.gmra.mrb[0].mxu0 %v665
    %v733 = vpop.f32.mrb[0].mxu0
    %v734 = vadd.f32 0.0, %v733
    %v735 = vpop.f32.mrb[0].mxu0
    %736 = vdwg.mxu0
    %v738 = vrot.slane %v734, 6
    %v740 = vadd.f32 %v117, %v738
    %v741 = vxor.u32 %v740, 2147483648
    %v742 = vmul.f32 %v741, 1.442695
    %v743 = vpow.pop %v742
    %v744 = vadd.f32 %v743, 1.0
    %v745 = vrcp.pop %v744
    %v746 = vmul.f32 1.0, %v745
    %v747 = vmul.f32 %v746, 2.0
    %v748 = vsub.f32 %v747, 1.0
    %v750 = vrot.slane %v655, 6
    %v752 = vmul.f32 %v746, %v750
    %754 = vrot.lane.b32.xlu0 %v748, 112
    %v755 = vpop.permute.xlu0 %754
    %v757 = vmul.f32 %v746, %v755
    %759 = vrot.lane.b32.xlu0 %v757, 8
    %v760 = vpop.permute.xlu0 %759
    %v762 = vadd.f32 %v752, %v760
    %v763 = vtanh.pop %v762
    %765 = vrot.lane.b32.xlu0 %v763, 16
    %v766 = vpop.permute.xlu0 %765
    %v768 = vmul.f32 %v746, %v766
    %v770 = vrot.slane %v768, 2
    %771 = vrot.lane.b32.xlu0 %v770, 104
    %v772 = vpop.permute.xlu0 %771
    %v773 = vsel %vm134, %v772, 0
    %775 = vmatprep.subr.mxu0 0.0
    %776 = vmatpush1.msra.mxu0 %v132
    %777 = vmatprep.subr.mxu0 0.0
    %778 = vmatpush1.msra.mxu0 0.0
    %779 = vmatprep.subr.mxu0 0.0
    %780 = vmatpush1.msra.mxu0 0.0
    %781 = vmatprep.subr.mxu0 0.0
    %782 = vmatpush1.msra.mxu0 0.0
    %783 = vmatprep.subr.mxu0 0.0
    %784 = vmatpush1.msra.mxu0 0.0
    %785 = vmatprep.subr.mxu0 0.0
    %786 = vmatpush1.msra.mxu0 0.0
    %787 = vmatprep.subr.mxu0 0.0
    %788 = vmatpush1.msra.mxu0 0.0
    %789 = vmatprep.subr.mxu0 0.0
    %790 = vmatpush1.msra.mxu0 0.0
    %791 = vmatprep.subr.mxu0 0.0
    %792 = vmatpush1.msra.mxu0 0.0
    %793 = vmatprep.subr.mxu0 0.0
    %794 = vmatpush1.msra.mxu0 0.0
    %795 = vmatprep.subr.mxu0 0.0
    %796 = vmatpush1.msra.mxu0 0.0
    %797 = vmatprep.subr.mxu0 0.0
    %798 = vmatpush1.msra.mxu0 0.0
    %799 = vmatprep.subr.mxu0 0.0
    %800 = vmatpush1.msra.mxu0 0.0
    %801 = vmatprep.subr.mxu0 0.0
    %802 = vmatpush1.msra.mxu0 0.0
    %803 = vmatprep.subr.mxu0 0.0
    %804 = vmatpush1.msra.mxu0 0.0
    %805 = vmatprep.subr.mxu0 0.0
    %806 = vmatpush1.msra.mxu0 0.0
    %807 = vmatprep.subr.mxu0 0.0
    %808 = vmatpush1.msra.mxu0 0.0
    %809 = vmatprep.subr.mxu0 0.0
    %810 = vmatpush1.msra.mxu0 0.0
    %811 = vmatprep.subr.mxu0 0.0
    %812 = vmatpush1.msra.mxu0 0.0
    %813 = vmatprep.subr.mxu0 0.0
    %814 = vmatpush1.msra.mxu0 0.0
    %815 = vmatprep.subr.mxu0 0.0
    %816 = vmatpush1.msra.mxu0 0.0
    %817 = vmatprep.subr.mxu0 0.0
    %818 = vmatpush1.msra.mxu0 0.0
    %819 = vmatprep.subr.mxu0 0.0
    %820 = vmatpush1.msra.mxu0 0.0
    %821 = vmatprep.subr.mxu0 0.0
    %822 = vmatpush1.msra.mxu0 0.0
    %823 = vmatprep.subr.mxu0 0.0
    %824 = vmatpush1.msra.mxu0 0.0
    %825 = vmatprep.subr.mxu0 0.0
    %826 = vmatpush1.msra.mxu0 0.0
    %827 = vmatprep.subr.mxu0 0.0
    %828 = vmatpush1.msra.mxu0 0.0
    %829 = vmatprep.subr.mxu0 0.0
    %830 = vmatpush1.msra.mxu0 0.0
    %831 = vmatprep.subr.mxu0 0.0
    %832 = vmatpush1.msra.mxu0 0.0
    %833 = vmatprep.subr.mxu0 0.0
    %834 = vmatpush1.msra.mxu0 0.0
    %835 = vmatprep.subr.mxu0 0.0
    %836 = vmatpush1.msra.mxu0 0.0
    %837 = vmatprep.subr.mxu0 0.0
    %838 = vmatpush1.msra.mxu0 0.0
    %839 = vmatprep.mubr.f32.mxu0 0.0
    %840 = vmatmul.mubr.f32.gmra.mrb[0].mxu0 %v773
    %v841 = vpop.f32.mrb[0].mxu0
    %v842 = vadd.f32 0.0, %v841
    %v843 = vpop.f32.mrb[0].mxu0
    %844 = vdwg.mxu0
    %v846 = vrot.slane %v842, 4
    %v848 = vadd.f32 %v117, %v846
    %v849 = vxor.u32 %v848, 2147483648
    %v850 = vmul.f32 %v849, 1.442695
    %v851 = vpow.pop %v850
    %v852 = vadd.f32 %v851, 1.0
    %v853 = vrcp.pop %v852
    %v854 = vmul.f32 1.0, %v853
    %v855 = vmul.f32 %v854, 2.0
    %v856 = vsub.f32 %v855, 1.0
    %v858 = vrot.slane %v762, 6
    %v860 = vmul.f32 %v854, %v858
    %862 = vrot.lane.b32.xlu0 %v856, 112
    %v863 = vpop.permute.xlu0 %862
    %v865 = vmul.f32 %v854, %v863
    %867 = vrot.lane.b32.xlu0 %v865, 8
    %v868 = vpop.permute.xlu0 %867
    %v870 = vadd.f32 %v860, %v868
    %v871 = vtanh.pop %v870
    %873 = vrot.lane.b32.xlu0 %v871, 16
    %v874 = vpop.permute.xlu0 %873
    %v876 = vmul.f32 %v854, %v874
    %v878 = vrot.slane %v876, 4
    %879 = vrot.lane.b32.xlu0 %v878, 104
    %v880 = vpop.permute.xlu0 %879
    %v881 = vsel %vm134, %v880, 0
    %883 = vmatprep.subr.mxu0 0.0
    %884 = vmatpush1.msra.mxu0 %v132
    %885 = vmatprep.subr.mxu0 0.0
    %886 = vmatpush1.msra.mxu0 0.0
    %887 = vmatprep.subr.mxu0 0.0
    %888 = vmatpush1.msra.mxu0 0.0
    %889 = vmatprep.subr.mxu0 0.0
    %890 = vmatpush1.msra.mxu0 0.0
    %891 = vmatprep.subr.mxu0 0.0
    %892 = vmatpush1.msra.mxu0 0.0
    %893 = vmatprep.subr.mxu0 0.0
    %894 = vmatpush1.msra.mxu0 0.0
    %895 = vmatprep.subr.mxu0 0.0
    %896 = vmatpush1.msra.mxu0 0.0
    %897 = vmatprep.subr.mxu0 0.0
    %898 = vmatpush1.msra.mxu0 0.0
    %899 = vmatprep.subr.mxu0 0.0
    %900 = vmatpush1.msra.mxu0 0.0
    %901 = vmatprep.subr.mxu0 0.0
    %902 = vmatpush1.msra.mxu0 0.0
    %903 = vmatprep.subr.mxu0 0.0
    %904 = vmatpush1.msra.mxu0 0.0
    %905 = vmatprep.subr.mxu0 0.0
    %906 = vmatpush1.msra.mxu0 0.0
    %907 = vmatprep.subr.mxu0 0.0
    %908 = vmatpush1.msra.mxu0 0.0
    %909 = vmatprep.subr.mxu0 0.0
    %910 = vmatpush1.msra.mxu0 0.0
    %911 = vmatprep.subr.mxu0 0.0
    %912 = vmatpush1.msra.mxu0 0.0
    %913 = vmatprep.subr.mxu0 0.0
    %914 = vmatpush1.msra.mxu0 0.0
    %915 = vmatprep.subr.mxu0 0.0
    %916 = vmatpush1.msra.mxu0 0.0
    %917 = vmatprep.subr.mxu0 0.0
    %918 = vmatpush1.msra.mxu0 0.0
    %919 = vmatprep.subr.mxu0 0.0
    %920 = vmatpush1.msra.mxu0 0.0
    %921 = vmatprep.subr.mxu0 0.0
    %922 = vmatpush1.msra.mxu0 0.0
    %923 = vmatprep.subr.mxu0 0.0
    %924 = vmatpush1.msra.mxu0 0.0
    %925 = vmatprep.subr.mxu0 0.0
    %926 = vmatpush1.msra.mxu0 0.0
    %927 = vmatprep.subr.mxu0 0.0
    %928 = vmatpush1.msra.mxu0 0.0
    %929 = vmatprep.subr.mxu0 0.0
    %930 = vmatpush1.msra.mxu0 0.0
    %931 = vmatprep.subr.mxu0 0.0
    %932 = vmatpush1.msra.mxu0 0.0
    %933 = vmatprep.subr.mxu0 0.0
    %934 = vmatpush1.msra.mxu0 0.0
    %935 = vmatprep.subr.mxu0 0.0
    %936 = vmatpush1.msra.mxu0 0.0
    %937 = vmatprep.subr.mxu0 0.0
    %938 = vmatpush1.msra.mxu0 0.0
    %939 = vmatprep.subr.mxu0 0.0
    %940 = vmatpush1.msra.mxu0 0.0
    %941 = vmatprep.subr.mxu0 0.0
    %942 = vmatpush1.msra.mxu0 0.0
    %943 = vmatprep.subr.mxu0 0.0
    %944 = vmatpush1.msra.mxu0 0.0
    %945 = vmatprep.subr.mxu0 0.0
    %946 = vmatpush1.msra.mxu0 0.0
    %947 = vmatprep.mubr.f32.mxu0 0.0
    %948 = vmatmul.mubr.f32.gmra.mrb[0].mxu0 %v881
    %v949 = vpop.f32.mrb[0].mxu0
    %v950 = vadd.f32 0.0, %v949
    %v951 = vpop.f32.mrb[0].mxu0
    %952 = vdwg.mxu0
    %v954 = vrot.slane %v950, 2
    %v956 = vadd.f32 %v117, %v954
    %v957 = vxor.u32 %v956, 2147483648
    %v958 = vmul.f32 %v957, 1.442695
    %v959 = vpow.pop %v958
    %v960 = vadd.f32 %v959, 1.0
    %v961 = vrcp.pop %v960
    %v962 = vmul.f32 1.0, %v961
    %v963 = vmul.f32 %v962, 2.0
    %v964 = vsub.f32 %v963, 1.0
    %v966 = vrot.slane %v870, 6
    %v968 = vmul.f32 %v962, %v966
    %970 = vrot.lane.b32.xlu0 %v964, 112
    %v971 = vpop.permute.xlu0 %970
    %v973 = vmul.f32 %v962, %v971
    %975 = vrot.lane.b32.xlu0 %v973, 8
    %v976 = vpop.permute.xlu0 %975
    %v978 = vadd.f32 %v968, %v976
    %v979 = vtanh.pop %v978
    %981 = vrot.lane.b32.xlu0 %v979, 16
    %v982 = vpop.permute.xlu0 %981
    %v984 = vmul.f32 %v962, %v982
    %v986 = vrot.slane %v984, 6
    %987 = vrot.lane.b32.xlu0 %v986, 104
    %v988 = vpop.permute.xlu0 %987
    %v989 = vsel %vm134, %v988, 0
    %991 = vmatprep.subr.mxu0 0.0
    %992 = vmatpush1.msra.mxu0 %v132
    %993 = vmatprep.subr.mxu0 0.0
    %994 = vmatpush1.msra.mxu0 0.0
    %995 = vmatprep.subr.mxu0 0.0
    %996 = vmatpush1.msra.mxu0 0.0
    %997 = vmatprep.subr.mxu0 0.0
    %998 = vmatpush1.msra.mxu0 0.0
    %999 = vmatprep.subr.mxu0 0.0
    %1000 = vmatpush1.msra.mxu0 0.0
    %1001 = vmatprep.subr.mxu0 0.0
    %1002 = vmatpush1.msra.mxu0 0.0
    %1003 = vmatprep.subr.mxu0 0.0
    %1004 = vmatpush1.msra.mxu0 0.0
    %1005 = vmatprep.subr.mxu0 0.0
    %1006 = vmatpush1.msra.mxu0 0.0
    %1007 = vmatprep.subr.mxu0 0.0
    %1008 = vmatpush1.msra.mxu0 0.0
    %1009 = vmatprep.subr.mxu0 0.0
    %1010 = vmatpush1.msra.mxu0 0.0
    %1011 = vmatprep.subr.mxu0 0.0
    %1012 = vmatpush1.msra.mxu0 0.0
    %1013 = vmatprep.subr.mxu0 0.0
    %1014 = vmatpush1.msra.mxu0 0.0
    %1015 = vmatprep.subr.mxu0 0.0
    %1016 = vmatpush1.msra.mxu0 0.0
    %1017 = vmatprep.subr.mxu0 0.0
    %1018 = vmatpush1.msra.mxu0 0.0
    %1019 = vmatprep.subr.mxu0 0.0
    %1020 = vmatpush1.msra.mxu0 0.0
    %1021 = vmatprep.subr.mxu0 0.0
    %1022 = vmatpush1.msra.mxu0 0.0
    %1023 = vmatprep.subr.mxu0 0.0
    %1024 = vmatpush1.msra.mxu0 0.0
    %1025 = vmatprep.subr.mxu0 0.0
    %1026 = vmatpush1.msra.mxu0 0.0
    %1027 = vmatprep.subr.mxu0 0.0
    %1028 = vmatpush1.msra.mxu0 0.0
    %1029 = vmatprep.subr.mxu0 0.0
    %1030 = vmatpush1.msra.mxu0 0.0
    %1031 = vmatprep.subr.mxu0 0.0
    %1032 = vmatpush1.msra.mxu0 0.0
    %1033 = vmatprep.subr.mxu0 0.0
    %1034 = vmatpush1.msra.mxu0 0.0
    %1035 = vmatprep.subr.mxu0 0.0
    %1036 = vmatpush1.msra.mxu0 0.0
    %1037 = vmatprep.subr.mxu0 0.0
    %1038 = vmatpush1.msra.mxu0 0.0
    %1039 = vmatprep.subr.mxu0 0.0
    %1040 = vmatpush1.msra.mxu0 0.0
    %1041 = vmatprep.subr.mxu0 0.0
    %1042 = vmatpush1.msra.mxu0 0.0
    %1043 = vmatprep.subr.mxu0 0.0
    %1044 = vmatpush1.msra.mxu0 0.0
    %1045 = vmatprep.subr.mxu0 0.0
    %1046 = vmatpush1.msra.mxu0 0.0
    %1047 = vmatprep.subr.mxu0 0.0
    %1048 = vmatpush1.msra.mxu0 0.0
    %1049 = vmatprep.subr.mxu0 0.0
    %1050 = vmatpush1.msra.mxu0 0.0
    %1051 = vmatprep.subr.mxu0 0.0
    %1052 = vmatpush1.msra.mxu0 0.0
    %1053 = vmatprep.subr.mxu0 0.0
    %1054 = vmatpush1.msra.mxu0 0.0
    %1055 = vmatprep.mubr.f32.mxu0 0.0
    %1056 = vmatmul.mubr.f32.gmra.mrb[0].mxu0 %v989
    %v1057 = vpop.f32.mrb[0].mxu0
    %v1058 = vadd.f32 0.0, %v1057
    %v1059 = vpop.f32.mrb[0].mxu0
    %1060 = vdwg.mxu0
    %v1061 = vadd.f32 %v122, %v1058
    %v1062 = vxor.u32 %v1061, 2147483648
    %v1063 = vmul.f32 %v1062, 1.442695
    %v1064 = vpow.pop %v1063
    %v1065 = vadd.f32 %v1064, 1.0
    %v1066 = vrcp.pop %v1065
    %v1067 = vmul.f32 1.0, %v1066
    %v1068 = vmul.f32 %v1067, 2.0
    %v1069 = vsub.f32 %v1068, 1.0
    %v1071 = vrot.slane %v978, 6
    %v1073 = vmul.f32 %v1067, %v1071
    %1075 = vrot.lane.b32.xlu0 %v1069, 112
    %v1076 = vpop.permute.xlu0 %1075
    %v1078 = vmul.f32 %v1067, %v1076
    %1080 = vrot.lane.b32.xlu0 %v1078, 8
    %v1081 = vpop.permute.xlu0 %1080
    %v1083 = vadd.f32 %v1073, %v1081
    %v1084 = vtanh.pop %v1083
    %1086 = vrot.lane.b32.xlu0 %v1084, 16
    %v1087 = vpop.permute.xlu0 %1086
    %v1089 = vmul.f32 %v1067, %v1087
    %1091 = vrot.lane.b32.xlu0 %v1089, 104
    %v1092 = vpop.permute.xlu0 %1091
    %v1093 = vsel %vm134, %v1092, 0
    %1095 = vmatprep.subr.mxu0 0.0
    %1096 = vmatpush1.msra.mxu0 %v132
    %1097 = vmatprep.subr.mxu0 0.0
    %1098 = vmatpush1.msra.mxu0 0.0
    %1099 = vmatprep.subr.mxu0 0.0
    %1100 = vmatpush1.msra.mxu0 0.0
    %1101 = vmatprep.subr.mxu0 0.0
    %1102 = vmatpush1.msra.mxu0 0.0
    %1103 = vmatprep.subr.mxu0 0.0
    %1104 = vmatpush1.msra.mxu0 0.0
    %1105 = vmatprep.subr.mxu0 0.0
    %1106 = vmatpush1.msra.mxu0 0.0
    %1107 = vmatprep.subr.mxu0 0.0
    %1108 = vmatpush1.msra.mxu0 0.0
    %1109 = vmatprep.subr.mxu0 0.0
    %1110 = vmatpush1.msra.mxu0 0.0
    %1111 = vmatprep.subr.mxu0 0.0
    %1112 = vmatpush1.msra.mxu0 0.0
    %1113 = vmatprep.subr.mxu0 0.0
    %1114 = vmatpush1.msra.mxu0 0.0
    %1115 = vmatprep.subr.mxu0 0.0
    %1116 = vmatpush1.msra.mxu0 0.0
    %1117 = vmatprep.subr.mxu0 0.0
    %1118 = vmatpush1.msra.mxu0 0.0
    %1119 = vmatprep.subr.mxu0 0.0
    %1120 = vmatpush1.msra.mxu0 0.0
    %1121 = vmatprep.subr.mxu0 0.0
    %1122 = vmatpush1.msra.mxu0 0.0
    %1123 = vmatprep.subr.mxu0 0.0
    %1124 = vmatpush1.msra.mxu0 0.0
    %1125 = vmatprep.subr.mxu0 0.0
    %1126 = vmatpush1.msra.mxu0 0.0
    %1127 = vmatprep.subr.mxu0 0.0
    %1128 = vmatpush1.msra.mxu0 0.0
    %1129 = vmatprep.subr.mxu0 0.0
    %1130 = vmatpush1.msra.mxu0 0.0
    %1131 = vmatprep.subr.mxu0 0.0
    %1132 = vmatpush1.msra.mxu0 0.0
    %1133 = vmatprep.subr.mxu0 0.0
    %1134 = vmatpush1.msra.mxu0 0.0
    %1135 = vmatprep.subr.mxu0 0.0
    %1136 = vmatpush1.msra.mxu0 0.0
    %1137 = vmatprep.subr.mxu0 0.0
    %1138 = vmatpush1.msra.mxu0 0.0
    %1139 = vmatprep.subr.mxu0 0.0
    %1140 = vmatpush1.msra.mxu0 0.0
    %1141 = vmatprep.subr.mxu0 0.0
    %1142 = vmatpush1.msra.mxu0 0.0
    %1143 = vmatprep.subr.mxu0 0.0
    %1144 = vmatpush1.msra.mxu0 0.0
    %1145 = vmatprep.subr.mxu0 0.0
    %1146 = vmatpush1.msra.mxu0 0.0
    %1147 = vmatprep.subr.mxu0 0.0
    %1148 = vmatpush1.msra.mxu0 0.0
    %1149 = vmatprep.subr.mxu0 0.0
    %1150 = vmatpush1.msra.mxu0 0.0
    %1151 = vmatprep.subr.mxu0 0.0
    %1152 = vmatpush1.msra.mxu0 0.0
    %1153 = vmatprep.subr.mxu0 0.0
    %1154 = vmatpush1.msra.mxu0 0.0
    %1155 = vmatprep.subr.mxu0 0.0
    %1156 = vmatpush1.msra.mxu0 0.0
    %1157 = vmatprep.subr.mxu0 0.0
    %1158 = vmatpush1.msra.mxu0 0.0
    %1159 = vmatprep.mubr.f32.mxu0 0.0
    %1160 = vmatmul.mubr.f32.gmra.mrb[0].mxu0 %v1093
    %v1161 = vpop.f32.mrb[0].mxu0
    %v1162 = vadd.f32 0.0, %v1161
    %v1163 = vpop.f32.mrb[0].mxu0
    %1164 = vdwg.mxu0
    %v1166 = vrot.slane %v1162, 6
    %v1168 = vadd.f32 %v122, %v1166
    %v1169 = vxor.u32 %v1168, 2147483648
    %v1170 = vmul.f32 %v1169, 1.442695
    %v1171 = vpow.pop %v1170
    %v1172 = vadd.f32 %v1171, 1.0
    %v1173 = vrcp.pop %v1172
    %v1174 = vmul.f32 1.0, %v1173
    %v1175 = vmul.f32 %v1174, 2.0
    %v1176 = vsub.f32 %v1175, 1.0
    %v1178 = vrot.slane %v1083, 6
    %v1180 = vmul.f32 %v1174, %v1178
    %1182 = vrot.lane.b32.xlu0 %v1176, 112
    %v1183 = vpop.permute.xlu0 %1182
    %v1185 = vmul.f32 %v1174, %v1183
    %1187 = vrot.lane.b32.xlu0 %v1185, 8
    %v1188 = vpop.permute.xlu0 %1187
    %v1190 = vadd.f32 %v1180, %v1188
    %v1191 = vtanh.pop %v1190
    %1193 = vrot.lane.b32.xlu0 %v1191, 16
    %v1194 = vpop.permute.xlu0 %1193
    %v1196 = vmul.f32 %v1174, %v1194
    %v1198 = vrot.slane %v1196, 2
    %1199 = vrot.lane.b32.xlu0 %v1198, 104
    %v1200 = vpop.permute.xlu0 %1199
    %v1201 = vsel %vm134, %v1200, 0
    %1203 = vmatprep.subr.mxu0 0.0
    %1204 = vmatpush1.msra.mxu0 %v132
    %1205 = vmatprep.subr.mxu0 0.0
    %1206 = vmatpush1.msra.mxu0 0.0
    %1207 = vmatprep.subr.mxu0 0.0
    %1208 = vmatpush1.msra.mxu0 0.0
    %1209 = vmatprep.subr.mxu0 0.0
    %1210 = vmatpush1.msra.mxu0 0.0
    %1211 = vmatprep.subr.mxu0 0.0
    %1212 = vmatpush1.msra.mxu0 0.0
    %1213 = vmatprep.subr.mxu0 0.0
    %1214 = vmatpush1.msra.mxu0 0.0
    %1215 = vmatprep.subr.mxu0 0.0
    %1216 = vmatpush1.msra.mxu0 0.0
    %1217 = vmatprep.subr.mxu0 0.0
    %1218 = vmatpush1.msra.mxu0 0.0
    %1219 = vmatprep.subr.mxu0 0.0
    %1220 = vmatpush1.msra.mxu0 0.0
    %1221 = vmatprep.subr.mxu0 0.0
    %1222 = vmatpush1.msra.mxu0 0.0
    %1223 = vmatprep.subr.mxu0 0.0
    %1224 = vmatpush1.msra.mxu0 0.0
    %1225 = vmatprep.subr.mxu0 0.0
    %1226 = vmatpush1.msra.mxu0 0.0
    %1227 = vmatprep.subr.mxu0 0.0
    %1228 = vmatpush1.msra.mxu0 0.0
    %1229 = vmatprep.subr.mxu0 0.0
    %1230 = vmatpush1.msra.mxu0 0.0
    %1231 = vmatprep.subr.mxu0 0.0
    %1232 = vmatpush1.msra.mxu0 0.0
    %1233 = vmatprep.subr.mxu0 0.0
    %1234 = vmatpush1.msra.mxu0 0.0
    %1235 = vmatprep.subr.mxu0 0.0
    %1236 = vmatpush1.msra.mxu0 0.0
    %1237 = vmatprep.subr.mxu0 0.0
    %1238 = vmatpush1.msra.mxu0 0.0
    %1239 = vmatprep.subr.mxu0 0.0
    %1240 = vmatpush1.msra.mxu0 0.0
    %1241 = vmatprep.subr.mxu0 0.0
    %1242 = vmatpush1.msra.mxu0 0.0
    %1243 = vmatprep.subr.mxu0 0.0
    %1244 = vmatpush1.msra.mxu0 0.0
    %1245 = vmatprep.subr.mxu0 0.0
    %1246 = vmatpush1.msra.mxu0 0.0
    %1247 = vmatprep.subr.mxu0 0.0
    %1248 = vmatpush1.msra.mxu0 0.0
    %1249 = vmatprep.subr.mxu0 0.0
    %1250 = vmatpush1.msra.mxu0 0.0
    %1251 = vmatprep.subr.mxu0 0.0
    %1252 = vmatpush1.msra.mxu0 0.0
    %1253 = vmatprep.subr.mxu0 0.0
    %1254 = vmatpush1.msra.mxu0 0.0
    %1255 = vmatprep.subr.mxu0 0.0
    %1256 = vmatpush1.msra.mxu0 0.0
    %1257 = vmatprep.subr.mxu0 0.0
    %1258 = vmatpush1.msra.mxu0 0.0
    %1259 = vmatprep.subr.mxu0 0.0
    %1260 = vmatpush1.msra.mxu0 0.0
    %1261 = vmatprep.subr.mxu0 0.0
    %1262 = vmatpush1.msra.mxu0 0.0
    %1263 = vmatprep.subr.mxu0 0.0
    %1264 = vmatpush1.msra.mxu0 0.0
    %1265 = vmatprep.subr.mxu0 0.0
    %1266 = vmatpush1.msra.mxu0 0.0
    %1267 = vmatprep.mubr.f32.mxu0 0.0
    %1268 = vmatmul.mubr.f32.gmra.mrb[0].mxu0 %v1201
    %v1269 = vpop.f32.mrb[0].mxu0
    %v1270 = vadd.f32 0.0, %v1269
    %v1271 = vpop.f32.mrb[0].mxu0
    %1272 = vdwg.mxu0
    %v1274 = vrot.slane %v1270, 4
    %v1276 = vadd.f32 %v122, %v1274
    %v1277 = vxor.u32 %v1276, 2147483648
    %v1278 = vmul.f32 %v1277, 1.442695
    %v1279 = vpow.pop %v1278
    %v1280 = vadd.f32 %v1279, 1.0
    %v1281 = vrcp.pop %v1280
    %v1282 = vmul.f32 1.0, %v1281
    %v1283 = vmul.f32 %v1282, 2.0
    %v1284 = vsub.f32 %v1283, 1.0
    %v1286 = vrot.slane %v1190, 6
    %v1288 = vmul.f32 %v1282, %v1286
    %1290 = vrot.lane.b32.xlu0 %v1284, 112
    %v1291 = vpop.permute.xlu0 %1290
    %v1293 = vmul.f32 %v1282, %v1291
    %1295 = vrot.lane.b32.xlu0 %v1293, 8
    %v1296 = vpop.permute.xlu0 %1295
    %v1298 = vadd.f32 %v1288, %v1296
    %v1299 = vtanh.pop %v1298
    %1301 = vrot.lane.b32.xlu0 %v1299, 16
    %v1302 = vpop.permute.xlu0 %1301
    %v1304 = vmul.f32 %v1282, %v1302
    %v1306 = vrot.slane %v1304, 4
    %1307 = vrot.lane.b32.xlu0 %v1306, 104
    %v1308 = vpop.permute.xlu0 %1307
    %v1309 = vsel %vm134, %v1308, 0
    %1311 = vmatprep.subr.mxu0 0.0
    %1312 = vmatpush1.msra.mxu0 %v132
    %1313 = vmatprep.subr.mxu0 0.0
    %1314 = vmatpush1.msra.mxu0 0.0
    %1315 = vmatprep.subr.mxu0 0.0
    %1316 = vmatpush1.msra.mxu0 0.0
    %1317 = vmatprep.subr.mxu0 0.0
    %1318 = vmatpush1.msra.mxu0 0.0
    %1319 = vmatprep.subr.mxu0 0.0
    %1320 = vmatpush1.msra.mxu0 0.0
    %1321 = vmatprep.subr.mxu0 0.0
    %1322 = vmatpush1.msra.mxu0 0.0
    %1323 = vmatprep.subr.mxu0 0.0
    %1324 = vmatpush1.msra.mxu0 0.0
    %1325 = vmatprep.subr.mxu0 0.0
    %1326 = vmatpush1.msra.mxu0 0.0
    %1327 = vmatprep.subr.mxu0 0.0
    %1328 = vmatpush1.msra.mxu0 0.0
    %1329 = vmatprep.subr.mxu0 0.0
    %1330 = vmatpush1.msra.mxu0 0.0
    %1331 = vmatprep.subr.mxu0 0.0
    %1332 = vmatpush1.msra.mxu0 0.0
    %1333 = vmatprep.subr.mxu0 0.0
    %1334 = vmatpush1.msra.mxu0 0.0
    %1335 = vmatprep.subr.mxu0 0.0
    %1336 = vmatpush1.msra.mxu0 0.0
    %1337 = vmatprep.subr.mxu0 0.0
    %1338 = vmatpush1.msra.mxu0 0.0
    %1339 = vmatprep.subr.mxu0 0.0
    %1340 = vmatpush1.msra.mxu0 0.0
    %1341 = vmatprep.subr.mxu0 0.0
    %1342 = vmatpush1.msra.mxu0 0.0
    %1343 = vmatprep.subr.mxu0 0.0
    %1344 = vmatpush1.msra.mxu0 0.0
    %1345 = vmatprep.subr.mxu0 0.0
    %1346 = vmatpush1.msra.mxu0 0.0
    %1347 = vmatprep.subr.mxu0 0.0
    %1348 = vmatpush1.msra.mxu0 0.0
    %1349 = vmatprep.subr.mxu0 0.0
    %1350 = vmatpush1.msra.mxu0 0.0
    %1351 = vmatprep.subr.mxu0 0.0
    %1352 = vmatpush1.msra.mxu0 0.0
    %1353 = vmatprep.subr.mxu0 0.0
    %1354 = vmatpush1.msra.mxu0 0.0
    %1355 = vmatprep.subr.mxu0 0.0
    %1356 = vmatpush1.msra.mxu0 0.0
    %1357 = vmatprep.subr.mxu0 0.0
    %1358 = vmatpush1.msra.mxu0 0.0
    %1359 = vmatprep.subr.mxu0 0.0
    %1360 = vmatpush1.msra.mxu0 0.0
    %1361 = vmatprep.subr.mxu0 0.0
    %1362 = vmatpush1.msra.mxu0 0.0
    %1363 = vmatprep.subr.mxu0 0.0
    %1364 = vmatpush1.msra.mxu0 0.0
    %1365 = vmatprep.subr.mxu0 0.0
    %1366 = vmatpush1.msra.mxu0 0.0
    %1367 = vmatprep.subr.mxu0 0.0
    %1368 = vmatpush1.msra.mxu0 0.0
    %1369 = vmatprep.subr.mxu0 0.0
    %1370 = vmatpush1.msra.mxu0 0.0
    %1371 = vmatprep.subr.mxu0 0.0
    %1372 = vmatpush1.msra.mxu0 0.0
    %1373 = vmatprep.subr.mxu0 0.0
    %1374 = vmatpush1.msra.mxu0 0.0
    %1375 = vmatprep.mubr.f32.mxu0 0.0
    %1376 = vmatmul.mubr.f32.gmra.mrb[0].mxu0 %v1309
    %v1377 = vpop.f32.mrb[0].mxu0
    %v1378 = vadd.f32 0.0, %v1377
    %v1379 = vpop.f32.mrb[0].mxu0
    %1380 = vdwg.mxu0
    %v1382 = vrot.slane %v1378, 2
    %v1384 = vadd.f32 %v122, %v1382
    %v1385 = vxor.u32 %v1384, 2147483648
    %v1386 = vmul.f32 %v1385, 1.442695
    %v1387 = vpow.pop %v1386
    %v1388 = vadd.f32 %v1387, 1.0
    %v1389 = vrcp.pop %v1388
    %v1390 = vmul.f32 1.0, %v1389
    %v1391 = vmul.f32 %v1390, 2.0
    %v1392 = vsub.f32 %v1391, 1.0
    %v1394 = vrot.slane %v1298, 6
    %v1396 = vmul.f32 %v1390, %v1394
    %1398 = vrot.lane.b32.xlu0 %v1392, 112
    %v1399 = vpop.permute.xlu0 %1398
    %v1401 = vmul.f32 %v1390, %v1399
    %1403 = vrot.lane.b32.xlu0 %v1401, 8
    %v1404 = vpop.permute.xlu0 %1403
    %v1406 = vadd.f32 %v1396, %v1404
    %v1407 = vtanh.pop %v1406
    %1409 = vrot.lane.b32.xlu0 %v1407, 16
    %v1410 = vpop.permute.xlu0 %1409
    %v1412 = vmul.f32 %v1390, %v1410
    %v1414 = vrot.slane %v1412, 6
    %1415 = vrot.lane.b32.xlu0 %v1414, 104
    %v1416 = vpop.permute.xlu0 %1415
    %v1417 = vsel %vm134, %v1416, 0
    %1419 = vmatprep.subr.mxu0 0.0
    %1420 = vmatpush1.msra.mxu0 %v132
    %1421 = vmatprep.subr.mxu0 0.0
    %1422 = vmatpush1.msra.mxu0 0.0
    %1423 = vmatprep.subr.mxu0 0.0
    %1424 = vmatpush1.msra.mxu0 0.0
    %1425 = vmatprep.subr.mxu0 0.0
    %1426 = vmatpush1.msra.mxu0 0.0
    %1427 = vmatprep.subr.mxu0 0.0
    %1428 = vmatpush1.msra.mxu0 0.0
    %1429 = vmatprep.subr.mxu0 0.0
    %1430 = vmatpush1.msra.mxu0 0.0
    %1431 = vmatprep.subr.mxu0 0.0
    %1432 = vmatpush1.msra.mxu0 0.0
    %1433 = vmatprep.subr.mxu0 0.0
    %1434 = vmatpush1.msra.mxu0 0.0
    %1435 = vmatprep.subr.mxu0 0.0
    %1436 = vmatpush1.msra.mxu0 0.0
    %1437 = vmatprep.subr.mxu0 0.0
    %1438 = vmatpush1.msra.mxu0 0.0
    %1439 = vmatprep.subr.mxu0 0.0
    %1440 = vmatpush1.msra.mxu0 0.0
    %1441 = vmatprep.subr.mxu0 0.0
    %1442 = vmatpush1.msra.mxu0 0.0
    %1443 = vmatprep.subr.mxu0 0.0
    %1444 = vmatpush1.msra.mxu0 0.0
    %1445 = vmatprep.subr.mxu0 0.0
    %1446 = vmatpush1.msra.mxu0 0.0
    %1447 = vmatprep.subr.mxu0 0.0
    %1448 = vmatpush1.msra.mxu0 0.0
    %1449 = vmatprep.subr.mxu0 0.0
    %1450 = vmatpush1.msra.mxu0 0.0
    %1451 = vmatprep.subr.mxu0 0.0
    %1452 = vmatpush1.msra.mxu0 0.0
    %1453 = vmatprep.subr.mxu0 0.0
    %1454 = vmatpush1.msra.mxu0 0.0
    %1455 = vmatprep.subr.mxu0 0.0
    %1456 = vmatpush1.msra.mxu0 0.0
    %1457 = vmatprep.subr.mxu0 0.0
    %1458 = vmatpush1.msra.mxu0 0.0
    %1459 = vmatprep.subr.mxu0 0.0
    %1460 = vmatpush1.msra.mxu0 0.0
    %1461 = vmatprep.subr.mxu0 0.0
    %1462 = vmatpush1.msra.mxu0 0.0
    %1463 = vmatprep.subr.mxu0 0.0
    %1464 = vmatpush1.msra.mxu0 0.0
    %1465 = vmatprep.subr.mxu0 0.0
    %1466 = vmatpush1.msra.mxu0 0.0
    %1467 = vmatprep.subr.mxu0 0.0
    %1468 = vmatpush1.msra.mxu0 0.0
    %1469 = vmatprep.subr.mxu0 0.0
    %1470 = vmatpush1.msra.mxu0 0.0
    %1471 = vmatprep.subr.mxu0 0.0
    %1472 = vmatpush1.msra.mxu0 0.0
    %1473 = vmatprep.subr.mxu0 0.0
    %1474 = vmatpush1.msra.mxu0 0.0
    %1475 = vmatprep.subr.mxu0 0.0
    %1476 = vmatpush1.msra.mxu0 0.0
    %1477 = vmatprep.subr.mxu0 0.0
    %1478 = vmatpush1.msra.mxu0 0.0
    %1479 = vmatprep.subr.mxu0 0.0
    %1480 = vmatpush1.msra.mxu0 0.0
    %1481 = vmatprep.subr.mxu0 0.0
    %1482 = vmatpush1.msra.mxu0 0.0
    %1483 = vmatprep.mubr.f32.mxu0 0.0
    %1484 = vmatmul.mubr.f32.gmra.mrb[0].mxu0 %v1417
    %v1485 = vpop.f32.mrb[0].mxu0
    %v1486 = vadd.f32 0.0, %v1485
    %v1487 = vpop.f32.mrb[0].mxu0
    %1488 = vdwg.mxu0
    %v1489 = vadd.f32 %v127, %v1486
    %v1490 = vxor.u32 %v1489, 2147483648
    %v1491 = vmul.f32 %v1490, 1.442695
    %v1492 = vpow.pop %v1491
    %v1493 = vadd.f32 %v1492, 1.0
    %v1494 = vrcp.pop %v1493
    %v1495 = vmul.f32 1.0, %v1494
    %v1496 = vmul.f32 %v1495, 2.0
    %v1497 = vsub.f32 %v1496, 1.0
    %v1499 = vrot.slane %v1406, 6
    %v1501 = vmul.f32 %v1495, %v1499
    %1503 = vrot.lane.b32.xlu0 %v1497, 112
    %v1504 = vpop.permute.xlu0 %1503
    %v1506 = vmul.f32 %v1495, %v1504
    %1508 = vrot.lane.b32.xlu0 %v1506, 8
    %v1509 = vpop.permute.xlu0 %1508
    %v1511 = vadd.f32 %v1501, %v1509
    %v1512 = vtanh.pop %v1511
    %1514 = vrot.lane.b32.xlu0 %v1512, 16
    %v1515 = vpop.permute.xlu0 %1514
    %v1517 = vmul.f32 %v1495, %v1515
    %1519 = vrot.lane.b32.xlu0 %v1517, 104
    %v1520 = vpop.permute.xlu0 %1519
    %v1521 = vsel %vm134, %v1520, 0
    %1523 = vmatprep.subr.mxu0 0.0
    %1524 = vmatpush1.msra.mxu0 %v132
    %1525 = vmatprep.subr.mxu0 0.0
    %1526 = vmatpush1.msra.mxu0 0.0
    %1527 = vmatprep.subr.mxu0 0.0
    %1528 = vmatpush1.msra.mxu0 0.0
    %1529 = vmatprep.subr.mxu0 0.0
    %1530 = vmatpush1.msra.mxu0 0.0
    %1531 = vmatprep.subr.mxu0 0.0
    %1532 = vmatpush1.msra.mxu0 0.0
    %1533 = vmatprep.subr.mxu0 0.0
    %1534 = vmatpush1.msra.mxu0 0.0
    %1535 = vmatprep.subr.mxu0 0.0
    %1536 = vmatpush1.msra.mxu0 0.0
    %1537 = vmatprep.subr.mxu0 0.0
    %1538 = vmatpush1.msra.mxu0 0.0
    %1539 = vmatprep.subr.mxu0 0.0
    %1540 = vmatpush1.msra.mxu0 0.0
    %1541 = vmatprep.subr.mxu0 0.0
    %1542 = vmatpush1.msra.mxu0 0.0
    %1543 = vmatprep.subr.mxu0 0.0
    %1544 = vmatpush1.msra.mxu0 0.0
    %1545 = vmatprep.subr.mxu0 0.0
    %1546 = vmatpush1.msra.mxu0 0.0
    %1547 = vmatprep.subr.mxu0 0.0
    %1548 = vmatpush1.msra.mxu0 0.0
    %1549 = vmatprep.subr.mxu0 0.0
    %1550 = vmatpush1.msra.mxu0 0.0
    %1551 = vmatprep.subr.mxu0 0.0
    %1552 = vmatpush1.msra.mxu0 0.0
    %1553 = vmatprep.subr.mxu0 0.0
    %1554 = vmatpush1.msra.mxu0 0.0
    %1555 = vmatprep.subr.mxu0 0.0
    %1556 = vmatpush1.msra.mxu0 0.0
    %1557 = vmatprep.subr.mxu0 0.0
    %1558 = vmatpush1.msra.mxu0 0.0
    %1559 = vmatprep.subr.mxu0 0.0
    %1560 = vmatpush1.msra.mxu0 0.0
    %1561 = vmatprep.subr.mxu0 0.0
    %1562 = vmatpush1.msra.mxu0 0.0
    %1563 = vmatprep.subr.mxu0 0.0
    %1564 = vmatpush1.msra.mxu0 0.0
    %1565 = vmatprep.subr.mxu0 0.0
    %1566 = vmatpush1.msra.mxu0 0.0
    %1567 = vmatprep.subr.mxu0 0.0
    %1568 = vmatpush1.msra.mxu0 0.0
    %1569 = vmatprep.subr.mxu0 0.0
    %1570 = vmatpush1.msra.mxu0 0.0
    %1571 = vmatprep.subr.mxu0 0.0
    %1572 = vmatpush1.msra.mxu0 0.0
    %1573 = vmatprep.subr.mxu0 0.0
    %1574 = vmatpush1.msra.mxu0 0.0
    %1575 = vmatprep.subr.mxu0 0.0
    %1576 = vmatpush1.msra.mxu0 0.0
    %1577 = vmatprep.subr.mxu0 0.0
    %1578 = vmatpush1.msra.mxu0 0.0
    %1579 = vmatprep.subr.mxu0 0.0
    %1580 = vmatpush1.msra.mxu0 0.0
    %1581 = vmatprep.subr.mxu0 0.0
    %1582 = vmatpush1.msra.mxu0 0.0
    %1583 = vmatprep.subr.mxu0 0.0
    %1584 = vmatpush1.msra.mxu0 0.0
    %1585 = vmatprep.subr.mxu0 0.0
    %1586 = vmatpush1.msra.mxu0 0.0
    %1587 = vmatprep.mubr.f32.mxu0 0.0
    %1588 = vmatmul.mubr.f32.gmra.mrb[0].mxu0 %v1521
    %v1589 = vpop.f32.mrb[0].mxu0
    %v1590 = vadd.f32 0.0, %v1589
    %v1591 = vpop.f32.mrb[0].mxu0
    %1592 = vdwg.mxu0
    %v1594 = vrot.slane %v1590, 6
    %v1596 = vadd.f32 %v127, %v1594
    %v1597 = vxor.u32 %v1596, 2147483648
    %v1598 = vmul.f32 %v1597, 1.442695
    %v1599 = vpow.pop %v1598
    %v1600 = vadd.f32 %v1599, 1.0
    %v1601 = vrcp.pop %v1600
    %v1602 = vmul.f32 1.0, %v1601
    %v1603 = vmul.f32 %v1602, 2.0
    %v1604 = vsub.f32 %v1603, 1.0
    %v1606 = vrot.slane %v1511, 6
    %v1608 = vmul.f32 %v1602, %v1606
    %1610 = vrot.lane.b32.xlu0 %v1604, 112
    %v1611 = vpop.permute.xlu0 %1610
    %v1613 = vmul.f32 %v1602, %v1611
    %1615 = vrot.lane.b32.xlu0 %v1613, 8
    %v1616 = vpop.permute.xlu0 %1615
    %v1618 = vadd.f32 %v1608, %v1616
    %v1619 = vtanh.pop %v1618
    %1621 = vrot.lane.b32.xlu0 %v1619, 16
    %v1622 = vpop.permute.xlu0 %1621
    %v1624 = vmul.f32 %v1602, %v1622
    %v1626 = vrot.slane %v1624, 2
    %1627 = vrot.lane.b32.xlu0 %v1626, 104
    %v1628 = vpop.permute.xlu0 %1627
    %v1629 = vsel %vm134, %v1628, 0
    %1631 = vmatprep.subr.mxu0 0.0
    %1632 = vmatpush1.msra.mxu0 %v132
    %1633 = vmatprep.subr.mxu0 0.0
    %1634 = vmatpush1.msra.mxu0 0.0
    %1635 = vmatprep.subr.mxu0 0.0
    %1636 = vmatpush1.msra.mxu0 0.0
    %1637 = vmatprep.subr.mxu0 0.0
    %1638 = vmatpush1.msra.mxu0 0.0
    %1639 = vmatprep.subr.mxu0 0.0
    %1640 = vmatpush1.msra.mxu0 0.0
    %1641 = vmatprep.subr.mxu0 0.0
    %1642 = vmatpush1.msra.mxu0 0.0
    %1643 = vmatprep.subr.mxu0 0.0
    %1644 = vmatpush1.msra.mxu0 0.0
    %1645 = vmatprep.subr.mxu0 0.0
    %1646 = vmatpush1.msra.mxu0 0.0
    %1647 = vmatprep.subr.mxu0 0.0
    %1648 = vmatpush1.msra.mxu0 0.0
    %1649 = vmatprep.subr.mxu0 0.0
    %1650 = vmatpush1.msra.mxu0 0.0
    %1651 = vmatprep.subr.mxu0 0.0
    %1652 = vmatpush1.msra.mxu0 0.0
    %1653 = vmatprep.subr.mxu0 0.0
    %1654 = vmatpush1.msra.mxu0 0.0
    %1655 = vmatprep.subr.mxu0 0.0
    %1656 = vmatpush1.msra.mxu0 0.0
    %1657 = vmatprep.subr.mxu0 0.0
    %1658 = vmatpush1.msra.mxu0 0.0
    %1659 = vmatprep.subr.mxu0 0.0
    %1660 = vmatpush1.msra.mxu0 0.0
    %1661 = vmatprep.subr.mxu0 0.0
    %1662 = vmatpush1.msra.mxu0 0.0
    %1663 = vmatprep.subr.mxu0 0.0
    %1664 = vmatpush1.msra.mxu0 0.0
    %1665 = vmatprep.subr.mxu0 0.0
    %1666 = vmatpush1.msra.mxu0 0.0
    %1667 = vmatprep.subr.mxu0 0.0
    %1668 = vmatpush1.msra.mxu0 0.0
    %1669 = vmatprep.subr.mxu0 0.0
    %1670 = vmatpush1.msra.mxu0 0.0
    %1671 = vmatprep.subr.mxu0 0.0
    %1672 = vmatpush1.msra.mxu0 0.0
    %1673 = vmatprep.subr.mxu0 0.0
    %1674 = vmatpush1.msra.mxu0 0.0
    %1675 = vmatprep.subr.mxu0 0.0
    %1676 = vmatpush1.msra.mxu0 0.0
    %1677 = vmatprep.subr.mxu0 0.0
    %1678 = vmatpush1.msra.mxu0 0.0
    %1679 = vmatprep.subr.mxu0 0.0
    %1680 = vmatpush1.msra.mxu0 0.0
    %1681 = vmatprep.subr.mxu0 0.0
    %1682 = vmatpush1.msra.mxu0 0.0
    %1683 = vmatprep.subr.mxu0 0.0
    %1684 = vmatpush1.msra.mxu0 0.0
    %1685 = vmatprep.subr.mxu0 0.0
    %1686 = vmatpush1.msra.mxu0 0.0
    %1687 = vmatprep.subr.mxu0 0.0
    %1688 = vmatpush1.msra.mxu0 0.0
    %1689 = vmatprep.subr.mxu0 0.0
    %1690 = vmatpush1.msra.mxu0 0.0
    %1691 = vmatprep.subr.mxu0 0.0
    %1692 = vmatpush1.msra.mxu0 0.0
    %1693 = vmatprep.subr.mxu0 0.0
    %1694 = vmatpush1.msra.mxu0 0.0
    %1695 = vmatprep.mubr.f32.mxu0 0.0
    %1696 = vmatmul.mubr.f32.gmra.mrb[0].mxu0 %v1629
    %v1697 = vpop.f32.mrb[0].mxu0
    %v1698 = vadd.f32 0.0, %v1697
    %v1699 = vpop.f32.mrb[0].mxu0
    %1700 = vdwg.mxu0
    %v1702 = vrot.slane %v1698, 4
    %v1704 = vadd.f32 %v127, %v1702
    %v1705 = vxor.u32 %v1704, 2147483648
    %v1706 = vmul.f32 %v1705, 1.442695
    %v1707 = vpow.pop %v1706
    %v1708 = vadd.f32 %v1707, 1.0
    %v1709 = vrcp.pop %v1708
    %v1710 = vmul.f32 1.0, %v1709
    %v1711 = vmul.f32 %v1710, 2.0
    %v1712 = vsub.f32 %v1711, 1.0
    %v1714 = vrot.slane %v1618, 6
    %v1716 = vmul.f32 %v1710, %v1714
    %1718 = vrot.lane.b32.xlu0 %v1712, 112
    %v1719 = vpop.permute.xlu0 %1718
    %v1721 = vmul.f32 %v1710, %v1719
    %1723 = vrot.lane.b32.xlu0 %v1721, 8
    %v1724 = vpop.permute.xlu0 %1723
    %v1726 = vadd.f32 %v1716, %v1724
    %v1727 = vtanh.pop %v1726
    %1729 = vrot.lane.b32.xlu0 %v1727, 16
    %v1730 = vpop.permute.xlu0 %1729
    %v1732 = vmul.f32 %v1710, %v1730
    %v1734 = vrot.slane %v1732, 4
    %1735 = vrot.lane.b32.xlu0 %v1734, 104
    %v1736 = vpop.permute.xlu0 %1735
    %v1737 = vsel %vm134, %v1736, 0
    %1739 = vmatprep.subr.mxu0 0.0
    %1740 = vmatpush1.msra.mxu0 %v132
    %1741 = vmatprep.subr.mxu0 0.0
    %1742 = vmatpush1.msra.mxu0 0.0
    %1743 = vmatprep.subr.mxu0 0.0
    %1744 = vmatpush1.msra.mxu0 0.0
    %1745 = vmatprep.subr.mxu0 0.0
    %1746 = vmatpush1.msra.mxu0 0.0
    %1747 = vmatprep.subr.mxu0 0.0
    %1748 = vmatpush1.msra.mxu0 0.0
    %1749 = vmatprep.subr.mxu0 0.0
    %1750 = vmatpush1.msra.mxu0 0.0
    %1751 = vmatprep.subr.mxu0 0.0
    %1752 = vmatpush1.msra.mxu0 0.0
    %1753 = vmatprep.subr.mxu0 0.0
    %1754 = vmatpush1.msra.mxu0 0.0
    %1755 = vmatprep.subr.mxu0 0.0
    %1756 = vmatpush1.msra.mxu0 0.0
    %1757 = vmatprep.subr.mxu0 0.0
    %1758 = vmatpush1.msra.mxu0 0.0
    %1759 = vmatprep.subr.mxu0 0.0
    %1760 = vmatpush1.msra.mxu0 0.0
    %1761 = vmatprep.subr.mxu0 0.0
    %1762 = vmatpush1.msra.mxu0 0.0
    %1763 = vmatprep.subr.mxu0 0.0
    %1764 = vmatpush1.msra.mxu0 0.0
    %1765 = vmatprep.subr.mxu0 0.0
    %1766 = vmatpush1.msra.mxu0 0.0
    %1767 = vmatprep.subr.mxu0 0.0
    %1768 = vmatpush1.msra.mxu0 0.0
    %1769 = vmatprep.subr.mxu0 0.0
    %1770 = vmatpush1.msra.mxu0 0.0
    %1771 = vmatprep.subr.mxu0 0.0
    %1772 = vmatpush1.msra.mxu0 0.0
    %1773 = vmatprep.subr.mxu0 0.0
    %1774 = vmatpush1.msra.mxu0 0.0
    %1775 = vmatprep.subr.mxu0 0.0
    %1776 = vmatpush1.msra.mxu0 0.0
    %1777 = vmatprep.subr.mxu0 0.0
    %1778 = vmatpush1.msra.mxu0 0.0
    %1779 = vmatprep.subr.mxu0 0.0
    %1780 = vmatpush1.msra.mxu0 0.0
    %1781 = vmatprep.subr.mxu0 0.0
    %1782 = vmatpush1.msra.mxu0 0.0
    %1783 = vmatprep.subr.mxu0 0.0
    %1784 = vmatpush1.msra.mxu0 0.0
    %1785 = vmatprep.subr.mxu0 0.0
    %1786 = vmatpush1.msra.mxu0 0.0
    %1787 = vmatprep.subr.mxu0 0.0
    %1788 = vmatpush1.msra.mxu0 0.0
    %1789 = vmatprep.subr.mxu0 0.0
    %1790 = vmatpush1.msra.mxu0 0.0
    %1791 = vmatprep.subr.mxu0 0.0
    %1792 = vmatpush1.msra.mxu0 0.0
    %1793 = vmatprep.subr.mxu0 0.0
    %1794 = vmatpush1.msra.mxu0 0.0
    %1795 = vmatprep.subr.mxu0 0.0
    %1796 = vmatpush1.msra.mxu0 0.0
    %1797 = vmatprep.subr.mxu0 0.0
    %1798 = vmatpush1.msra.mxu0 0.0
    %1799 = vmatprep.subr.mxu0 0.0
    %1800 = vmatpush1.msra.mxu0 0.0
    %1801 = vmatprep.subr.mxu0 0.0
    %1802 = vmatpush1.msra.mxu0 0.0
    %1803 = vmatprep.mubr.f32.mxu0 0.0
    %1804 = vmatmul.mubr.f32.gmra.mrb[0].mxu0 %v1737
    %v1805 = vpop.f32.mrb[0].mxu0
    %v1806 = vadd.f32 0.0, %v1805
    %v1807 = vpop.f32.mrb[0].mxu0
    %1808 = vdwg.mxu0
    %v1810 = vrot.slane %v1806, 2
    %v1812 = vadd.f32 %v127, %v1810
    %v1813 = vxor.u32 %v1812, 2147483648
    %v1814 = vmul.f32 %v1813, 1.442695
    %v1815 = vpow.pop %v1814
    %v1816 = vadd.f32 %v1815, 1.0
    %v1817 = vrcp.pop %v1816
    %v1818 = vmul.f32 1.0, %v1817
    %v1819 = vmul.f32 %v1818, 2.0
    %v1820 = vsub.f32 %v1819, 1.0
    %v1822 = vrot.slane %v1726, 6
    %v1824 = vmul.f32 %v1818, %v1822
    %1826 = vrot.lane.b32.xlu0 %v1820, 112
    %v1827 = vpop.permute.xlu0 %1826
    %v1829 = vmul.f32 %v1818, %v1827
    %1831 = vrot.lane.b32.xlu0 %v1829, 8
    %v1832 = vpop.permute.xlu0 %1831
    %v1834 = vadd.f32 %v1824, %v1832
    %v1835 = vtanh.pop %v1834
    %1837 = vrot.lane.b32.xlu0 %v1835, 16
    %v1838 = vpop.permute.xlu0 %1837
    %v1840 = vmul.f32 %v1818, %v1838
    %v1841 = vsel %vm41, %v233, %v340
    %vm1842 = vcmask 1043456
    %v1843 = vsel %vm1842, %v1841, %v448
    %vm1844 = vcmask 1045504
    %v1845 = vsel %vm1844, %v1843, %v556
    %v1846 = vsel %vm41, %v661, %v768
    %v1847 = vsel %vm1842, %v1846, %v876
    %v1848 = vsel %vm1844, %v1847, %v984
    %v1849 = vsel %vm41, %v1089, %v1196
    %v1850 = vsel %vm1842, %v1849, %v1304
    %v1851 = vsel %vm1844, %v1850, %v1412
    %v1852 = vsel %vm41, %v1517, %v1624
    %v1853 = vsel %vm1842, %v1852, %v1732
    %v1854 = vsel %vm1844, %v1853, %v1840
    %v1856 = vrot.slane %v1840, 6
    %v1858 = vrot.slane %v1732, 2
    %v1860 = vrot.slane %v1624, 6
    %v1862 = vrot.slane %v1517, 2
    %v1865 = vrot.slane %v1304, 2
    %v1867 = vrot.slane %v1196, 6
    %v1869 = vrot.slane %v1089, 2
    %v1872 = vrot.slane %v876, 2
    %v1874 = vrot.slane %v768, 6
    %v1876 = vrot.slane %v661, 2
    %v1879 = vrot.slane %v448, 2
    %v1881 = vrot.slane %v340, 6
    %v1883 = vrot.slane %v233, 2
    %v1885 = vsel %vm41, %v1856, %v1858
    %v1886 = vsel %vm1842, %v1885, %v1860
    %v1887 = vsel %vm1844, %v1886, %v1862
    %v1888 = vsel %vm41, %v1414, %v1865
    %v1889 = vsel %vm1842, %v1888, %v1867
    %v1890 = vsel %vm1844, %v1889, %v1869
    %v1891 = vsel %vm41, %v986, %v1872
    %v1892 = vsel %vm1842, %v1891, %v1874
    %v1893 = vsel %vm1844, %v1892, %v1876
    %v1894 = vsel %vm41, %v558, %v1879
    %v1895 = vsel %vm1842, %v1894, %v1881
    %v1896 = vsel %vm1844, %v1895, %v1883
    %1901 = vrot.lane.b32.xlu0 %v1845, 104
    %v1902 = vpop.permute.xlu0 %1901
    %1903 = vrot.lane.b32.xlu0 %v1848, 104
    %v1904 = vpop.permute.xlu0 %1903
    %1905 = vrot.lane.b32.xlu0 %v1851, 104
    %v1906 = vpop.permute.xlu0 %1905
    %1907 = vrot.lane.b32.xlu0 %v1854, 104
    %v1908 = vpop.permute.xlu0 %1907
    %1917 = vrot.lane.b32.xlu0 %v1887, 104
    %v1918 = vpop.permute.xlu0 %1917
    %1919 = vrot.lane.b32.xlu0 %v1890, 104
    %v1920 = vpop.permute.xlu0 %1919
    %1921 = vrot.lane.b32.xlu0 %v1893, 104
    %v1922 = vpop.permute.xlu0 %1921
    %1923 = vrot.lane.b32.xlu0 %v1896, 104
    %v1924 = vpop.permute.xlu0 %1923
    %vm1929 = vcmask 31744
    %v1930 = vsel %vm1929, %v1902, %v1918
    %v1931 = vsel %vm1929, %v1904, %v1920
    %v1932 = vsel %vm1929, %v1906, %v1922
    %v1933 = vsel %vm1929, %v1908, %v1924
    %1934 = vrot.lane.b32.xlu0 %v15, 64
    %v1935 = vpop.permute.xlu0 %1934
    %v1938 = vsel %vm134, %v1930, 0
    %v1941 = vsel %vm134, %v1931, 0
    %v1944 = vsel %vm134, %v1932, 0
    %v1947 = vsel %vm134, %v1933, 0
    %1949 = vmatprep.subr.mxu0 0.0
    %1950 = vmatpush1.msra.mxu0 %v1935
    %1951 = vmatprep.subr.mxu0 0.0
    %1952 = vmatpush1.msra.mxu0 0.0
    %1953 = vmatprep.subr.mxu0 0.0
    %1954 = vmatpush1.msra.mxu0 0.0
    %1955 = vmatprep.subr.mxu0 0.0
    %1956 = vmatpush1.msra.mxu0 0.0
    %1957 = vmatprep.subr.mxu0 0.0
    %1958 = vmatpush1.msra.mxu0 0.0
    %1959 = vmatprep.subr.mxu0 0.0
    %1960 = vmatpush1.msra.mxu0 0.0
    %1961 = vmatprep.subr.mxu0 0.0
    %1962 = vmatpush1.msra.mxu0 0.0
    %1963 = vmatprep.subr.mxu0 0.0
    %1964 = vmatpush1.msra.mxu0 0.0
    %1965 = vmatprep.subr.mxu0 0.0
    %1966 = vmatpush1.msra.mxu0 0.0
    %1967 = vmatprep.subr.mxu0 0.0
    %1968 = vmatpush1.msra.mxu0 0.0
    %1969 = vmatprep.subr.mxu0 0.0
    %1970 = vmatpush1.msra.mxu0 0.0
    %1971 = vmatprep.subr.mxu0 0.0
    %1972 = vmatpush1.msra.mxu0 0.0
    %1973 = vmatprep.subr.mxu0 0.0
    %1974 = vmatpush1.msra.mxu0 0.0
    %1975 = vmatprep.subr.mxu0 0.0
    %1976 = vmatpush1.msra.mxu0 0.0
    %1977 = vmatprep.subr.mxu0 0.0
    %1978 = vmatpush1.msra.mxu0 0.0
    %1979 = vmatprep.subr.mxu0 0.0
    %1980 = vmatpush1.msra.mxu0 0.0
    %1981 = vmatprep.subr.mxu0 0.0
    %1982 = vmatpush1.msra.mxu0 0.0
    %1983 = vmatprep.subr.mxu0 0.0
    %1984 = vmatpush1.msra.mxu0 0.0
    %1985 = vmatprep.subr.mxu0 0.0
    %1986 = vmatpush1.msra.mxu0 0.0
    %1987 = vmatprep.subr.mxu0 0.0
    %1988 = vmatpush1.msra.mxu0 0.0
    %1989 = vmatprep.subr.mxu0 0.0
    %1990 = vmatpush1.msra.mxu0 0.0
    %1991 = vmatprep.subr.mxu0 0.0
    %1992 = vmatpush1.msra.mxu0 0.0
    %1993 = vmatprep.subr.mxu0 0.0
    %1994 = vmatpush1.msra.mxu0 0.0
    %1995 = vmatprep.subr.mxu0 0.0
    %1996 = vmatpush1.msra.mxu0 0.0
    %1997 = vmatprep.subr.mxu0 0.0
    %1998 = vmatpush1.msra.mxu0 0.0
    %1999 = vmatprep.subr.mxu0 0.0
    %2000 = vmatpush1.msra.mxu0 0.0
    %2001 = vmatprep.subr.mxu0 0.0
    %2002 = vmatpush1.msra.mxu0 0.0
    %2003 = vmatprep.subr.mxu0 0.0
    %2004 = vmatpush1.msra.mxu0 0.0
    %2005 = vmatprep.subr.mxu0 0.0
    %2006 = vmatpush1.msra.mxu0 0.0
    %2007 = vmatprep.subr.mxu0 0.0
    %2008 = vmatpush1.msra.mxu0 0.0
    %2009 = vmatprep.subr.mxu0 0.0
    %2010 = vmatpush1.msra.mxu0 0.0
    %2011 = vmatprep.subr.mxu0 0.0
    %2012 = vmatpush1.msra.mxu0 0.0
    %2013 = vmatprep.mubr.f32.mxu0 0.0
    %2014 = vmatmul.mubr.f32.gmra.mrb[0].mxu0 %v1938
    %v2015 = vpop.f32.mrb[0].mxu0
    %v2016 = vadd.f32 0.0, %v2015
    %v2017 = vpop.f32.mrb[0].mxu0
    %2018 = vmatprep.mubr.f32.mxu0 0.0
    %2019 = vmatmul.mubr.f32.gmra.mrb[0].mxu0 %v1941
    %v2020 = vpop.f32.mrb[0].mxu0
    %v2021 = vadd.f32 0.0, %v2020
    %v2022 = vpop.f32.mrb[0].mxu0
    %2023 = vmatprep.mubr.f32.mxu0 0.0
    %2024 = vmatmul.mubr.f32.gmra.mrb[0].mxu0 %v1944
    %v2025 = vpop.f32.mrb[0].mxu0
    %v2026 = vadd.f32 0.0, %v2025
    %v2027 = vpop.f32.mrb[0].mxu0
    %2028 = vmatprep.mubr.f32.mxu0 0.0
    %2029 = vmatmul.mubr.f32.gmra.mrb[0].mxu0 %v1947
    %v2030 = vpop.f32.mrb[0].mxu0
    %v2031 = vadd.f32 0.0, %v2030
    %v2032 = vpop.f32.mrb[0].mxu0
    %2033 = vdwg.mxu0
    %v2038 = vrot.slane %v2016, 2
    %v2039 = vrot.slane %v2021, 2
    %v2040 = vsel %vm1844, %v2038, %v2039
    %v2041 = vrot.slane %v2026, 2
    %v2042 = vsel %vm1844, %v2039, %v2041
    %v2043 = vrot.slane %v2031, 2
    %v2044 = vsel %vm1844, %v2041, %v2043
    %2045 = vrot.lane.b32.xlu0 %v2040, 126
    %v2046 = vpop.permute.xlu0 %2045
    %2047 = vrot.lane.b32.xlu0 %v2042, 126
    %v2048 = vpop.permute.xlu0 %2047
    %2049 = vrot.lane.b32.xlu0 %v2044, 126
    %v2050 = vpop.permute.xlu0 %2049
    %2051 = vrot.lane.b32.xlu0 %v2043, 126
    %v2052 = vpop.permute.xlu0 %2051
    %v2057 = vadd.f32 %v2016, %v2046
    %v2058 = vadd.f32 %v2021, %v2048
    %v2059 = vadd.f32 %v2026, %v2050
    %v2060 = vadd.f32 %v2031, %v2052
    %v2062 = vrot.slane %v2057, 2
    %v2064 = vmax.f32 %v2057, %v2062
    %v2066 = vrot.slane %v2058, 2
    %v2068 = vmax.f32 %v2058, %v2066
    %v2070 = vrot.slane %v2059, 2
    %v2072 = vmax.f32 %v2059, %v2070
    %v2074 = vrot.slane %v2060, 2
    %v2076 = vmax.f32 %v2060, %v2074
    %v2078 = vrot.slane %v2064, 4
    %v2080 = vmax.f32 %v2064, %v2078
    %v2082 = vrot.slane %v2068, 4
    %v2084 = vmax.f32 %v2068, %v2082
    %v2086 = vrot.slane %v2072, 4
    %v2088 = vmax.f32 %v2072, %v2086
    %v2089 = vrot.slane %v2060, 4
    %v2091 = vmax.f32 %v2076, %v2089
    %v2092 = vmax.f32 %v2080, %v2084
    %v2093 = vmax.f32 %v2088, %v2091
    %v2094 = vmax.f32 %v2092, %v2093
    %v2095 = vrot.slane %v2016, 4
    %v2096 = vrot.slane %v2021, 4
    %v2097 = vsel %vm1842, %v2095, %v2096
    %v2098 = vrot.slane %v2026, 4
    %v2099 = vsel %vm1842, %v2096, %v2098
    %v2100 = vrot.slane %v2031, 4
    %v2101 = vsel %vm1842, %v2098, %v2100
    %2102 = vrot.lane.b32.xlu0 %v2097, 124
    %v2103 = vpop.permute.xlu0 %2102
    %2104 = vrot.lane.b32.xlu0 %v2099, 124
    %v2105 = vpop.permute.xlu0 %2104
    %2106 = vrot.lane.b32.xlu0 %v2101, 124
    %v2107 = vpop.permute.xlu0 %2106
    %2108 = vrot.lane.b32.xlu0 %v2100, 124
    %v2109 = vpop.permute.xlu0 %2108
    %v2114 = vadd.f32 %v2057, %v2103
    %v2115 = vadd.f32 %v2058, %v2105
    %v2116 = vadd.f32 %v2059, %v2107
    %v2117 = vadd.f32 %v2060, %v2109
    %v2119 = vrot.slane %v2114, 2
    %v2121 = vmax.f32 %v2114, %v2119
    %v2123 = vrot.slane %v2115, 2
    %v2125 = vmax.f32 %v2115, %v2123
    %v2127 = vrot.slane %v2116, 2
    %v2129 = vmax.f32 %v2116, %v2127
    %v2131 = vrot.slane %v2117, 2
    %v2133 = vmax.f32 %v2117, %v2131
    %v2135 = vrot.slane %v2121, 4
    %v2137 = vmax.f32 %v2121, %v2135
    %v2139 = vrot.slane %v2125, 4
    %v2141 = vmax.f32 %v2125, %v2139
    %v2143 = vrot.slane %v2129, 4
    %v2145 = vmax.f32 %v2129, %v2143
    %v2146 = vmax.f32 %v2137, %v2141
    %v2147 = vmax.f32 %v2145, %v2133
    %v2148 = vmax.f32 %v2146, %v2147
    %v2149 = vrot.slane %v2057, 4
    %v2150 = vrot.slane %v2058, 4
    %v2151 = vsel %vm1842, %v2149, %v2150
    %v2152 = vrot.slane %v2059, 4
    %v2153 = vsel %vm1842, %v2150, %v2152
    %v2154 = vsel %vm1842, %v2152, %v2089
    %2155 = vrot.lane.b32.xlu0 %v2151, 124
    %v2156 = vpop.permute.xlu0 %2155
    %2157 = vrot.lane.b32.xlu0 %v2153, 124
    %v2158 = vpop.permute.xlu0 %2157
    %2159 = vrot.lane.b32.xlu0 %v2154, 124
    %v2160 = vpop.permute.xlu0 %2159
    %2161 = vrot.lane.b32.xlu0 %v2089, 124
    %v2162 = vpop.permute.xlu0 %2161
    %v2167 = vadd.f32 %v2057, %v2156
    %v2168 = vadd.f32 %v2058, %v2158
    %v2169 = vadd.f32 %v2059, %v2160
    %v2170 = vadd.f32 %v2060, %v2162
    %v2172 = vrot.slane %v2167, 2
    %v2174 = vmax.f32 %v2167, %v2172
    %v2176 = vrot.slane %v2168, 2
    %v2178 = vmax.f32 %v2168, %v2176
    %v2180 = vrot.slane %v2169, 2
    %v2182 = vmax.f32 %v2169, %v2180
    %v2184 = vrot.slane %v2174, 4
    %v2186 = vmax.f32 %v2174, %v2184
    %v2188 = vrot.slane %v2178, 4
    %v2190 = vmax.f32 %v2178, %v2188
    %v2192 = vrot.slane %v2182, 4
    %v2194 = vmax.f32 %v2182, %v2192
    %v2195 = vmax.f32 %v2186, %v2190
    %v2196 = vmax.f32 %v2194, %v2170
    %v2197 = vmax.f32 %v2195, %v2196
    %2198 = vrot.lane.b32.xlu0 %v2021, 120
    %v2199 = vpop.permute.xlu0 %2198
    %2200 = vrot.lane.b32.xlu0 %v2026, 120
    %v2201 = vpop.permute.xlu0 %2200
    %2202 = vrot.lane.b32.xlu0 %v2031, 120
    %v2203 = vpop.permute.xlu0 %2202
    %v2207 = vadd.f32 %v2167, %v2199
    %v2208 = vadd.f32 %v2168, %v2201
    %v2209 = vadd.f32 %v2169, %v2203
    %v2211 = vrot.slane %v2207, 2
    %v2213 = vmax.f32 %v2207, %v2211
    %v2215 = vrot.slane %v2208, 2
    %v2217 = vmax.f32 %v2208, %v2215
    %v2219 = vrot.slane %v2209, 2
    %v2221 = vmax.f32 %v2209, %v2219
    %v2223 = vrot.slane %v2213, 4
    %v2225 = vmax.f32 %v2213, %v2223
    %v2227 = vrot.slane %v2217, 4
    %v2229 = vmax.f32 %v2217, %v2227
    %v2231 = vrot.slane %v2221, 4
    %v2233 = vmax.f32 %v2221, %v2231
    %v2234 = vmax.f32 %v2225, %v2229
    %v2235 = vmax.f32 %v2234, %v2233
    %2237 = vrot.lane.b32.xlu0 %v2148, 126
    %v2238 = vpop.permute.xlu0 %2237
    %2241 = vrot.lane.b32.xlu0 %v2197, 122
    %v2242 = vpop.permute.xlu0 %2241
    %2245 = vrot.lane.b32.xlu0 %v2235, 116
    %v2246 = vpop.permute.xlu0 %2245
    %vm2248 = vcmask 15360
    %v2249 = vsel %vm2248, %v2094, %v2238
    %v2250 = vsel %vm1929, %v2249, %v2242
    %vm2251 = vcmask 48128
    %v2252 = vsel %vm2251, %v2250, %v2246
    %2253 = vrot.lane.b32.xlu0 %v26, 96
    %v2254 = vpop.permute.xlu0 %2253
    %v2256 = vadd.f32 %v2252, %v2254
    %v2257 = vmax.f32 %v2256, 0.0
    %2258 = vrot.lane.b32.xlu0 %v15, 36
    %v2259 = vpop.permute.xlu0 %2258
    %2261 = vrot.lane.b32.xlu0 %v26, 88
    %v2262 = vpop.permute.xlu0 %2261
    %v2265 = vsel %vm134, %v2257, 0
    %2267 = vmatprep.subr.mxu0 0.0
    %2268 = vmatpush1.msra.mxu0 %v2259
    %2269 = vmatprep.subr.mxu0 0.0
    %2270 = vmatpush1.msra.mxu0 0.0
    %2271 = vmatprep.subr.mxu0 0.0
    %2272 = vmatpush1.msra.mxu0 0.0
    %2273 = vmatprep.subr.mxu0 0.0
    %2274 = vmatpush1.msra.mxu0 0.0
    %2275 = vmatprep.subr.mxu0 0.0
    %2276 = vmatpush1.msra.mxu0 0.0
    %2277 = vmatprep.subr.mxu0 0.0
    %2278 = vmatpush1.msra.mxu0 0.0
    %2279 = vmatprep.subr.mxu0 0.0
    %2280 = vmatpush1.msra.mxu0 0.0
    %2281 = vmatprep.subr.mxu0 0.0
    %2282 = vmatpush1.msra.mxu0 0.0
    %2283 = vmatprep.subr.mxu0 0.0
    %2284 = vmatpush1.msra.mxu0 0.0
    %2285 = vmatprep.subr.mxu0 0.0
    %2286 = vmatpush1.msra.mxu0 0.0
    %2287 = vmatprep.subr.mxu0 0.0
    %2288 = vmatpush1.msra.mxu0 0.0
    %2289 = vmatprep.subr.mxu0 0.0
    %2290 = vmatpush1.msra.mxu0 0.0
    %2291 = vmatprep.subr.mxu0 0.0
    %2292 = vmatpush1.msra.mxu0 0.0
    %2293 = vmatprep.subr.mxu0 0.0
    %2294 = vmatpush1.msra.mxu0 0.0
    %2295 = vmatprep.subr.mxu0 0.0
    %2296 = vmatpush1.msra.mxu0 0.0
    %2297 = vmatprep.subr.mxu0 0.0
    %2298 = vmatpush1.msra.mxu0 0.0
    %2299 = vmatprep.subr.mxu0 0.0
    %2300 = vmatpush1.msra.mxu0 0.0
    %2301 = vmatprep.subr.mxu0 0.0
    %2302 = vmatpush1.msra.mxu0 0.0
    %2303 = vmatprep.subr.mxu0 0.0
    %2304 = vmatpush1.msra.mxu0 0.0
    %2305 = vmatprep.subr.mxu0 0.0
    %2306 = vmatpush1.msra.mxu0 0.0
    %2307 = vmatprep.subr.mxu0 0.0
    %2308 = vmatpush1.msra.mxu0 0.0
    %2309 = vmatprep.subr.mxu0 0.0
    %2310 = vmatpush1.msra.mxu0 0.0
    %2311 = vmatprep.subr.mxu0 0.0
    %2312 = vmatpush1.msra.mxu0 0.0
    %2313 = vmatprep.subr.mxu0 0.0
    %2314 = vmatpush1.msra.mxu0 0.0
    %2315 = vmatprep.subr.mxu0 0.0
    %2316 = vmatpush1.msra.mxu0 0.0
    %2317 = vmatprep.subr.mxu0 0.0
    %2318 = vmatpush1.msra.mxu0 0.0
    %2319 = vmatprep.subr.mxu0 0.0
    %2320 = vmatpush1.msra.mxu0 0.0
    %2321 = vmatprep.subr.mxu0 0.0
    %2322 = vmatpush1.msra.mxu0 0.0
    %2323 = vmatprep.subr.mxu0 0.0
    %2324 = vmatpush1.msra.mxu0 0.0
    %2325 = vmatprep.subr.mxu0 0.0
    %2326 = vmatpush1.msra.mxu0 0.0
    %2327 = vmatprep.subr.mxu0 0.0
    %2328 = vmatpush1.msra.mxu0 0.0
    %2329 = vmatprep.subr.mxu0 0.0
    %2330 = vmatpush1.msra.mxu0 0.0
    %2331 = vmatprep.mubr.f32.mxu0 0.0
    %2332 = vmatmul.mubr.f32.gmra.mrb[0].mxu0 %v2265
    %v2333 = vpop.f32.mrb[0].mxu0
    %v2334 = vadd.f32 %v2262, %v2333
    %v2335 = vpop.f32.mrb[0].mxu0
    %2336 = vdwg.mxu0
    %v2337 = vmax.f32 %v2334, 0.0
    %2338 = vrot.lane.b32.xlu0 %v15, 32
    %v2339 = vpop.permute.xlu0 %2338
    %2340 = vrot.lane.b32.xlu0 %v26, 84
    %v2341 = vpop.permute.xlu0 %2340
    %v2344 = vsel %vm1929, %v2337, 0
    %v2346 = vsel %vm1842, %v2339, 0
    %2348 = vmatprep.subr.mxu0 0.0
    %2349 = vmatpush1.msra.mxu0 %v2346
    %2350 = vmatprep.subr.mxu0 0.0
    %2351 = vmatpush1.msra.mxu0 0.0
    %2352 = vmatprep.subr.mxu0 0.0
    %2353 = vmatpush1.msra.mxu0 0.0
    %2354 = vmatprep.subr.mxu0 0.0
    %2355 = vmatpush1.msra.mxu0 0.0
    %2356 = vmatprep.subr.mxu0 0.0
    %2357 = vmatpush1.msra.mxu0 0.0
    %2358 = vmatprep.subr.mxu0 0.0
    %2359 = vmatpush1.msra.mxu0 0.0
    %2360 = vmatprep.subr.mxu0 0.0
    %2361 = vmatpush1.msra.mxu0 0.0
    %2362 = vmatprep.subr.mxu0 0.0
    %2363 = vmatpush1.msra.mxu0 0.0
    %2364 = vmatprep.subr.mxu0 0.0
    %2365 = vmatpush1.msra.mxu0 0.0
    %2366 = vmatprep.subr.mxu0 0.0
    %2367 = vmatpush1.msra.mxu0 0.0
    %2368 = vmatprep.subr.mxu0 0.0
    %2369 = vmatpush1.msra.mxu0 0.0
    %2370 = vmatprep.subr.mxu0 0.0
    %2371 = vmatpush1.msra.mxu0 0.0
    %2372 = vmatprep.subr.mxu0 0.0
    %2373 = vmatpush1.msra.mxu0 0.0
    %2374 = vmatprep.subr.mxu0 0.0
    %2375 = vmatpush1.msra.mxu0 0.0
    %2376 = vmatprep.subr.mxu0 0.0
    %2377 = vmatpush1.msra.mxu0 0.0
    %2378 = vmatprep.subr.mxu0 0.0
    %2379 = vmatpush1.msra.mxu0 0.0
    %2380 = vmatprep.subr.mxu0 0.0
    %2381 = vmatpush1.msra.mxu0 0.0
    %2382 = vmatprep.subr.mxu0 0.0
    %2383 = vmatpush1.msra.mxu0 0.0
    %2384 = vmatprep.subr.mxu0 0.0
    %2385 = vmatpush1.msra.mxu0 0.0
    %2386 = vmatprep.subr.mxu0 0.0
    %2387 = vmatpush1.msra.mxu0 0.0
    %2388 = vmatprep.subr.mxu0 0.0
    %2389 = vmatpush1.msra.mxu0 0.0
    %2390 = vmatprep.subr.mxu0 0.0
    %2391 = vmatpush1.msra.mxu0 0.0
    %2392 = vmatprep.subr.mxu0 0.0
    %2393 = vmatpush1.msra.mxu0 0.0
    %2394 = vmatprep.subr.mxu0 0.0
    %2395 = vmatpush1.msra.mxu0 0.0
    %2396 = vmatprep.subr.mxu0 0.0
    %2397 = vmatpush1.msra.mxu0 0.0
    %2398 = vmatprep.subr.mxu0 0.0
    %2399 = vmatpush1.msra.mxu0 0.0
    %2400 = vmatprep.subr.mxu0 0.0
    %2401 = vmatpush1.msra.mxu0 0.0
    %2402 = vmatprep.subr.mxu0 0.0
    %2403 = vmatpush1.msra.mxu0 0.0
    %2404 = vmatprep.subr.mxu0 0.0
    %2405 = vmatpush1.msra.mxu0 0.0
    %2406 = vmatprep.subr.mxu0 0.0
    %2407 = vmatpush1.msra.mxu0 0.0
    %2408 = vmatprep.subr.mxu0 0.0
    %2409 = vmatpush1.msra.mxu0 0.0
    %2410 = vmatprep.subr.mxu0 0.0
    %2411 = vmatpush1.msra.mxu0 0.0
    %2412 = vmatprep.mubr.f32.mxu0 0.0
    %2413 = vmatmul.mubr.f32.gmra.mrb[0].mxu0 %v2344
    %v2414 = vpop.f32.mrb[0].mxu0
    %v2415 = vadd.f32 %v2341, %v2414
    %v2416 = vpop.f32.mrb[0].mxu0
    %2417 = vdwg.mxu0
    %vm2418 = vcmask 17408
    %2419 = vst.msk [vmem:[#allocation2] sm:$0x3] %vm2418, %v2415
    // Predicated region
    $region14: #{lstm_cnn_pallas.1} parent=1 // pred_check
      _
    $region15: #{lstm_cnn_pallas.1} parent=1 // pred_check_branch
      %2421 = sbr.rel (0) target = $region17
    $region16: #{lstm_cnn_pallas.1} parent=1 // pred_region
      %s2423 = ssub.s32 32, 32
      %2424 = vsyncadd [#allocation3], %s2423
      %s2426 = sshll.u32 [#allocation2], 4
      %s2427 = int_to_ptr.vmem [resolvable:$true] %s2426
      %2429 = dma.vmem_to_hbm [thread:$0]  %s2427, 32, %s3, [#allocation3]
    $region17: #{lstm_cnn_pallas.1} parent=1 // pred_fallthru
      _
    // Predicated region
    $region18: #{lstm_cnn_pallas.1} parent=1 // pred_check
      _
    $region19: #{lstm_cnn_pallas.1} parent=1 // pred_check_branch
      %2431 = sbr.rel (0) target = $region21
    $region20: #{lstm_cnn_pallas.1} parent=1 // pred_region
      %2432 = dma.done [#allocation3], 32
    $region21: #{lstm_cnn_pallas.1} parent=1 // pred_fallthru
      _
    %2433 = vsyncpa [#allocation3], 1

</llo_original>
